<compile_context>
chip_gen: v7x
topology: tpu7x:2x2x1
jax: 0.10.0
libtpu: 0.0.40
codegen_flags: <defaults>
</compile_context>

<pallas_src>
import functools

import jax
import jax.numpy as jnp
from jax.experimental import pallas as pl
from jax.experimental.pallas import tpu as pltpu


# ------------------------------ helpers -------------------------------------

def _layernorm(x, g, b, eps=1e-5):
    mu = jnp.mean(x, axis=-1, keepdims=True)
    var = jnp.mean((x - mu) ** 2, axis=-1, keepdims=True)
    return (x - mu) * jax.lax.rsqrt(var + eps) * g + b


def _swap01(t):
    """(a, b, c) -> (b, a, c); minor (lane) dim untouched."""
    if hasattr(pltpu, "einshape"):
        return pltpu.einshape("abc->bac", t)
    return jnp.swapaxes(t, 0, 1)


# ------------------------------ kernel --------------------------------------

def encoder_kernel(x_img_ref, pos_ref,
                   wp_ref, bp_ref, cls_ref, lnfg_ref, lnfb_ref,
                   ln1g_ref, ln1b_ref, wqk_ref, bqk_ref, wv_ref, bv_ref,
                   wo_ref, bo_ref, ln2g_ref, ln2b_ref,
                   w1_ref, b1_ref, w2_ref, b2_ref,
                   out_ref,
                   x_sc,
                   *, heads, seq_real):
    f32, bf16 = jnp.float32, jnp.bfloat16

    l = pl.program_id(1)
    n_layers = pl.num_programs(1)

    Bt, S_pad, D = x_sc.shape
    N, C = x_img_ref.shape[1], x_img_ref.shape[2]
    S = seq_real                       # real tokens: N image tokens + 1 cls
    R = Bt * S_pad                     # flattened matmul M-dim
    hd = D // heads
    scale = 1.0 / (float(hd) ** 0.5)

    # ---- l == 0: img_proj on the whole (Bt*N, C) slab + cls/pad assembly ----
    @pl.when(l == 0)
    def _init():
        xi = x_img_ref[...].reshape(Bt * N, C).astype(bf16)
        proj = jnp.dot(xi, wp_ref[...], preferred_element_type=f32) + bp_ref[...]
        if S_pad > S:
            x_sc[:, S:, :] = jnp.zeros((Bt, S_pad - S, D), f32)
        x_sc[:, 0:N, :] = proj.reshape(Bt, N, D)        # store starts at row 0
        x_sc[:, N:S, :] = jnp.broadcast_to(
            cls_ref[...].reshape(1, 1, D), (Bt, 1, D))  # cls in the last real row

    x = x_sc[...].reshape(R, D)          # f32 residual stream
    pos = pos_ref[...].reshape(R, D)     # wrapper-assembled (patch + cls + pad)

    # ---- multi-head self-attention (pre-norm, pos added to q/k only) --------
    h = _layernorm(x, ln1g_ref[0], ln1b_ref[0])
    qk_in = (h + pos).astype(bf16)

    qk = jnp.dot(qk_in, wqk_ref[0], preferred_element_type=f32) + bqk_ref[0]   # (R, 2D)
    v = jnp.dot(h.astype(bf16), wv_ref[0], preferred_element_type=f32) + bv_ref[0]

    def split_heads(t):                  # (R, D) -> (heads*Bt, S_pad, hd)
        t = t.reshape(R, heads, hd)
        t = _swap01(t)                   # (heads, R, hd)
        return t.reshape(heads * Bt, S_pad, hd)

    qh = split_heads(qk[:, :D] * scale).astype(bf16)    # scale folded into q
    kh = split_heads(qk[:, D:]).astype(bf16)
    vh = split_heads(v).astype(bf16)

    # batched logits: contract last dims -> no materialized K transpose
    s = jnp.einsum("bqd,bkd->bqk", qh, kh, preferred_element_type=f32)
    if S_pad > S:                        # mask padded key columns
        kidx = jax.lax.broadcasted_iota(jnp.int32, s.shape, 2)
        s = jnp.where(kidx < S, s, -1e30)
    s = s - jnp.max(s, axis=-1, keepdims=True)
    e = jnp.exp(s)
    p = e / jnp.sum(e, axis=-1, keepdims=True)

    o = jnp.einsum("bqk,bkd->bqd", p.astype(bf16), vh, preferred_element_type=f32)
    o = _swap01(o.reshape(heads, R, hd)).reshape(R, D)  # back to token-major

    attn = jnp.dot(o.astype(bf16), wo_ref[0], preferred_element_type=f32) + bo_ref[0]
    x = x + attn

    # ---- MLP -----------------------------------------------------------------
    h2 = _layernorm(x, ln2g_ref[0], ln2b_ref[0])
    m = jnp.dot(h2.astype(bf16), w1_ref[0], preferred_element_type=f32) + b1_ref[0]
    m = jax.nn.gelu(m, approximate=True)
    m = jnp.dot(m.astype(bf16), w2_ref[0], preferred_element_type=f32) + b2_ref[0]
    x = x + m

    x_sc[...] = x.reshape(Bt, S_pad, D)

    # ---- l == L-1: final LayerNorm + single dense output store ---------------
    @pl.when(l == n_layers - 1)
    def _finalize():
        out_ref[...] = _layernorm(
            x, lnfg_ref[...], lnfb_ref[...]).reshape(Bt, S_pad, D)


# ------------------------------ wrapper --------------------------------------

def encoder_forward(img_bottom, pos_embed, params, *, heads):
    f32, bf16 = jnp.float32, jnp.bfloat16

    B, C, d, h, w = img_bottom.shape
    N = d * h * w
    D = params["wp"].shape[1]
    M = params["w1"].shape[-1]
    L = params["wq"].shape[0]
    S = N + 1
    S_pad = ((S + 7) // 8) * 8
    assert D % heads == 0, "tokens_dim must be divisible by heads"
    hd = D // heads

    # ---- batch packing: Bt samples per grid step -----------------------------
    target_rows = 256                                   # fill MXU M-dim
    Bt = max(1, min(B, (target_rows + S_pad - 1) // S_pad))
    while Bt > 1 and Bt * heads * S_pad * S_pad * 4 > (8 << 20):
        Bt -= 1                                         # cap attention logits VMEM
    B_pad = ((B + Bt - 1) // Bt) * Bt

    # NCDHW -> (B, N, C) tokens (same as flatten(2).permute(0, 2, 1))
    x_tok = img_bottom.reshape(B, C, N).transpose(0, 2, 1).astype(f32)

    # pos layout: rows [0, N) = patch pos, row N = cls pos, rows [S, S_pad) = 0
    pos_full = jnp.zeros((B, S_pad, D), f32)
    pos_full = pos_full.at[:, :N, :].set(pos_embed.astype(f32))
    pos_full = pos_full.at[:, N, :].set(params["clspos"][0])

    if B_pad > B:                                       # pad batch with zero samples
        x_tok = jnp.concatenate([x_tok, jnp.zeros((B_pad - B, N, C), f32)], 0)
        pos_full = jnp.concatenate(
            [pos_full, jnp.zeros((B_pad - B, S_pad, D), f32)], 0)

    # fused Wq|Wk (shared LN(x)+pos input); bf16 weights, f32 accumulation
    wqk = jnp.concatenate([params["wq"], params["wk"]], axis=-1).astype(bf16)
    bqk = jnp.concatenate([params["bq"], params["bk"]], axis=-1).reshape(L, 1, 2 * D)
    wv = params["wv"].astype(bf16)
    bv = params["bv"].reshape(L, 1, D)
    wo = params["wo"].astype(bf16)
    bo = params["bo"].reshape(L, 1, D)
    w1 = params["w1"].astype(bf16)
    b1 = params["b1"].reshape(L, 1, M)
    w2 = params["w2"].astype(bf16)
    b2 = params["b2"].reshape(L, 1, D)
    ln1g = params["ln1g"].reshape(L, 1, D)
    ln1b = params["ln1b"].reshape(L, 1, D)
    ln2g = params["ln2g"].reshape(L, 1, D)
    ln2b = params["ln2b"].reshape(L, 1, D)
    wp = params["wp"].astype(bf16)
    bp, cls = params["bp"], params["cls"]
    lnfg, lnfb = params["lnfg"], params["lnfb"]

    # ---- generation-aware VMEM budget / buffer depth --------------------------
    try:
        phys = int(getattr(pltpu.get_tpu_info(), "vmem_capacity_bytes", 64 << 20))
    except Exception:
        phys = 64 << 20                                  # conservative (v7x-like)
    big_buffers = 3 if phys >= (100 << 20) else None     # deeper only on 128 MiB parts

    w_layer_bytes = 2 * (D * 2 * D + D * D + D * D + D * M + M * D)  # bf16
    nbuf = 3 if big_buffers else 2
    need = (nbuf * w_layer_bytes
            + 2 * Bt * (N * C + S_pad * D) * 4           # input blocks
            + 2 * Bt * S_pad * D * 4                     # output block
            + Bt * S_pad * D * 4                         # residual scratch
            + 2 * Bt * heads * S_pad * S_pad * 4         # logits + probs
            + 8 * Bt * S_pad * max(D, M) * 4)            # activation temporaries
    vmem_limit = int(min(phys * 3 // 4, max(2 * need, 32 << 20)))

    # ---- BlockSpecs ------------------------------------------------------------
    def _spec(block_shape, index_map, buffers=None):
        if buffers is not None and hasattr(pl, "Buffered"):
            try:
                return pl.BlockSpec(block_shape, index_map,
                                    pipeline_mode=pl.Buffered(buffers))
            except Exception:
                pass
        return pl.BlockSpec(block_shape, index_map)

    def const_spec(arr):                         # same block for every (b, l)
        nd = arr.ndim
        return _spec(arr.shape, lambda b, l, _n=nd: (0,) * _n, buffers=1)

    def batch_spec(arr):                         # per batch-block, one-shot per b
        return _spec((Bt,) + arr.shape[1:], lambda b, l: (b, 0, 0), buffers=1)

    def layer_spec(arr, buffers=None):           # stream layer l's slice
        return _spec((1,) + arr.shape[1:], lambda b, l: (l, 0, 0), buffers=buffers)

    in_specs = [
        batch_spec(x_tok), batch_spec(pos_full),
        const_spec(wp), const_spec(bp), const_spec(cls),
        const_spec(lnfg), const_spec(lnfb),
        layer_spec(ln1g), layer_spec(ln1b),
        layer_spec(wqk, buffers=big_buffers), layer_spec(bqk),
        layer_spec(wv), layer_spec(bv),
        layer_spec(wo), layer_spec(bo),
        layer_spec(ln2g), layer_spec(ln2b),
        layer_spec(w1, buffers=big_buffers), layer_spec(b1),
        layer_spec(w2, buffers=big_buffers), layer_spec(b2),
    ]
    out_specs = pl.BlockSpec((Bt, S_pad, D), lambda b, l: (b, 0, 0))
    out_shape = jax.ShapeDtypeStruct((B_pad, S_pad, D), f32)

    # advisory cost estimate for XLA's scheduler
    flops_layer = (2 * S_pad * D * (2 * D) + 2 * S_pad * D * D
                   + 4 * heads * S_pad * S_pad * hd
                   + 2 * S_pad * D * D + 4 * S_pad * D * M)
    flops = 2 * B_pad * N * C * D + B_pad * L * flops_layer
    transcendentals = B_pad * L * (heads * S_pad * S_pad + S_pad * M)
    bytes_accessed = (B_pad * (N * C + 2 * S_pad * D) * 4
                      + (B_pad // Bt) * L * w_layer_bytes)

    grid_spec = pltpu.PrefetchScalarGridSpec(
        num_scalar_prefetch=0,
        grid=(B_pad // Bt, L),
        in_specs=in_specs,
        out_specs=out_specs,
        scratch_shapes=[pltpu.VMEM((Bt, S_pad, D), f32)],   # residual stream
    )

    kern = functools.partial(encoder_kernel, heads=heads, seq_real=S)
    x_out = pl.pallas_call(
        kern,
        grid_spec=grid_spec,
        out_shape=out_shape,
        compiler_params=pltpu.CompilerParams(
            dimension_semantics=("parallel", "arbitrary"),
            vmem_limit_bytes=vmem_limit),
        cost_estimate=pl.CostEstimate(
            flops=flops, transcendentals=transcendentals,
            bytes_accessed=bytes_accessed),
    )(x_tok, pos_full, wp, bp, cls, lnfg, lnfb,
      ln1g, ln1b, wqk, bqk, wv, bv, wo, bo, ln2g, ln2b, w1, b1, w2, b2)

    # Split cls / image tokens in the wrapper; drop pad rows & pad samples.
    cls_tok = x_out[:B, N:N + 1, :]
    img_toks = x_out[:B, :N, :]
    return cls_tok, img_toks


# --------------------------- parameter init ----------------------------------

def init_params(key, *, img_dim, tokens_dim, mlp_dim, layers):
    D, M, L = tokens_dim, mlp_dim, layers
    keys = jax.random.split(key, 9)

    def tn(k, shape, std=0.02):
        return (std * jax.random.truncated_normal(k, -2.0, 2.0, shape)).astype(jnp.float32)

    p = {}
    p["wp"] = tn(keys[0], (img_dim, D))
    p["bp"] = jnp.zeros((1, D), jnp.float32)
    p["cls"] = tn(keys[1], (1, D))
    p["clspos"] = tn(keys[2], (1, D))
    p["ln1g"] = jnp.ones((L, D), jnp.float32)
    p["ln1b"] = jnp.zeros((L, D), jnp.float32)
    p["wq"] = tn(keys[3], (L, D, D))
    p["bq"] = jnp.zeros((L, D), jnp.float32)
    p["wk"] = tn(keys[4], (L, D, D))
    p["bk"] = jnp.zeros((L, D), jnp.float32)
    p["wv"] = tn(keys[5], (L, D, D))
    p["bv"] = jnp.zeros((L, D), jnp.float32)
    p["wo"] = tn(keys[6], (L, D, D))
    p["bo"] = jnp.zeros((L, D), jnp.float32)
    p["ln2g"] = jnp.ones((L, D), jnp.float32)
    p["ln2b"] = jnp.zeros((L, D), jnp.float32)
    p["w1"] = tn(keys[7], (L, D, M))
    p["b1"] = jnp.zeros((L, M), jnp.float32)
    p["w2"] = tn(keys[8], (L, M, D))
    p["b2"] = jnp.zeros((L, D), jnp.float32)
    p["lnfg"] = jnp.ones((1, D), jnp.float32)
    p["lnfb"] = jnp.zeros((1, D), jnp.float32)
    return p


# ------------------------- pure-JAX reference (f32) ---------------------------

def encoder_reference(img_bottom, pos_embed, p, *, heads):
    B, C, d, h, w = img_bottom.shape
    N = d * h * w
    D = p["wp"].shape[1]
    L = p["wq"].shape[0]
    hd = D // heads

    x = img_bottom.reshape(B, C, N).transpose(0, 2, 1) @ p["wp"] + p["bp"]
    x = jnp.concatenate([jnp.tile(p["cls"][None], (B, 1, 1)), x], axis=1)
    pos = jnp.concatenate([jnp.tile(p["clspos"][None], (B, 1, 1)), pos_embed], axis=1)
    S = x.shape[1]

    def ln(z, g, b):
        mu = z.mean(-1, keepdims=True)
        var = ((z - mu) ** 2).mean(-1, keepdims=True)
        return (z - mu) * jax.lax.rsqrt(var + 1e-5) * g + b

    for l in range(L):
        hx = ln(x, p["ln1g"][l], p["ln1b"][l])
        qk = hx + pos
        q = (qk @ p["wq"][l] + p["bq"][l]).reshape(B, S, heads, hd).transpose(0, 2, 1, 3)
        k = (qk @ p["wk"][l] + p["bk"][l]).reshape(B, S, heads, hd).transpose(0, 2, 1, 3)
        v = (hx @ p["wv"][l] + p["bv"][l]).reshape(B, S, heads, hd).transpose(0, 2, 1, 3)
        s = (q @ k.transpose(0, 1, 3, 2)) / (float(hd) ** 0.5)
        s = s - jnp.max(s, axis=-1, keepdims=True)
        e = jnp.exp(s)
        att = e / jnp.sum(e, axis=-1, keepdims=True)
        o = (att @ v).transpose(0, 2, 1, 3).reshape(B, S, D)
        x = x + o @ p["wo"][l] + p["bo"][l]
        h2 = ln(x, p["ln2g"][l], p["ln2b"][l])
        x = x + jax.nn.gelu(h2 @ p["w1"][l] + p["b1"][l], approximate=True) @ p["w2"][l] + p["b2"][l]

    x = ln(x, p["lnfg"], p["lnfb"])
    return x[:, :1, :], x[:, 1:, :]


# ------------------------------- main -----------------------------------------

if __name__ == "__main__":
    B = 2
    spatial = (2, 2, 2)          # (d, h, w) -> num_patches = 8, S = 9, S_pad = 16
    img_dim = 32
    tokens_dim = 128
    mlp_dim = 256
    heads = 4
    layers = 2

    key = jax.random.PRNGKey(0)
    k_img, k_pos, k_par = jax.random.split(key, 3)

    img_bottom = jax.random.normal(
        k_img, (B, img_dim) + spatial, dtype=jnp.float32)
    num_patches = spatial[0] * spatial[1] * spatial[2]
    pos_embed = jax.random.normal(
        k_pos, (B, num_patches, tokens_dim), dtype=jnp.float32)

    params = init_params(k_par, img_dim=img_dim, tokens_dim=tokens_dim,
                         mlp_dim=mlp_dim, layers=layers)

    cls_tok, img_toks = encoder_forward(img_bottom, pos_embed, params, heads=heads)
    jax.block_until_ready((cls_tok, img_toks))

    ref_cls, ref_img = encoder_reference(img_bottom, pos_embed, params, heads=heads)
    err_cls = float(jnp.max(jnp.abs(cls_tok - ref_cls)))
    err_img = float(jnp.max(jnp.abs(img_toks - ref_img)))
    assert cls_tok.shape == (B, 1, tokens_dim)
    assert img_toks.shape == (B, num_patches, tokens_dim)
    # bf16 matmuls vs f32 reference -> loose-ish tolerance
    assert err_cls < 1e-1 and err_img < 1e-1, (err_cls, err_img)

    print("KERNEL_OK")
</pallas_src>

<mosaic_0001>
module attributes {stable_mosaic.version = 11 : i64} {
  func.func @encoder_kernel(%arg0: i32, %arg1: i32, %arg2: memref<2x8x32xf32, #tpu.memory_space<vmem>>, %arg3: memref<2x16x128xf32, #tpu.memory_space<vmem>>, %arg4: memref<32x128xbf16, #tpu.memory_space<vmem>>, %arg5: memref<1x128xf32, #tpu.memory_space<vmem>>, %arg6: memref<1x128xf32, #tpu.memory_space<vmem>>, %arg7: memref<1x128xf32, #tpu.memory_space<vmem>>, %arg8: memref<1x128xf32, #tpu.memory_space<vmem>>, %arg9: memref<1x1x128xf32, #tpu.memory_space<vmem>>, %arg10: memref<1x1x128xf32, #tpu.memory_space<vmem>>, %arg11: memref<1x128x256xbf16, #tpu.memory_space<vmem>>, %arg12: memref<1x1x256xf32, #tpu.memory_space<vmem>>, %arg13: memref<1x128x128xbf16, #tpu.memory_space<vmem>>, %arg14: memref<1x1x128xf32, #tpu.memory_space<vmem>>, %arg15: memref<1x128x128xbf16, #tpu.memory_space<vmem>>, %arg16: memref<1x1x128xf32, #tpu.memory_space<vmem>>, %arg17: memref<1x1x128xf32, #tpu.memory_space<vmem>>, %arg18: memref<1x1x128xf32, #tpu.memory_space<vmem>>, %arg19: memref<1x128x256xbf16, #tpu.memory_space<vmem>>, %arg20: memref<1x1x256xf32, #tpu.memory_space<vmem>>, %arg21: memref<1x256x128xbf16, #tpu.memory_space<vmem>>, %arg22: memref<1x1x128xf32, #tpu.memory_space<vmem>>, %arg23: memref<2x16x128xf32, #tpu.memory_space<vmem>>, %arg24: memref<2x16x128xf32, #tpu.memory_space<vmem>>) attributes {dimension_semantics = [#tpu.dimension_semantics<parallel>, #tpu.dimension_semantics<arbitrary>], iteration_bounds = array<i64: 1, 2>, scalar_prefetch = 0 : i64, scratch_operands = 1 : i64, tpu.core_type = #tpu.core_type<tc>, window_params = [{pipeline_mode = #tpu.pipeline_mode<synchronous>, transform_indices = @transform_0, window_bounds = array<i64: 2, 8, 32>}, {pipeline_mode = #tpu.pipeline_mode<synchronous>, transform_indices = @transform_1, window_bounds = array<i64: 2, 16, 128>}, {pipeline_mode = #tpu.pipeline_mode<synchronous>, transform_indices = @transform_2, window_bounds = array<i64: 32, 128>}, {pipeline_mode = #tpu.pipeline_mode<synchronous>, transform_indices = @transform_3, window_bounds = array<i64: 1, 128>}, {pipeline_mode = #tpu.pipeline_mode<synchronous>, transform_indices = @transform_4, window_bounds = array<i64: 1, 128>}, {pipeline_mode = #tpu.pipeline_mode<synchronous>, transform_indices = @transform_5, window_bounds = array<i64: 1, 128>}, {pipeline_mode = #tpu.pipeline_mode<synchronous>, transform_indices = @transform_6, window_bounds = array<i64: 1, 128>}, {transform_indices = @transform_7, window_bounds = array<i64: 1, 1, 128>}, {transform_indices = @transform_8, window_bounds = array<i64: 1, 1, 128>}, {transform_indices = @transform_9, window_bounds = array<i64: 1, 128, 256>}, {transform_indices = @transform_10, window_bounds = array<i64: 1, 1, 256>}, {transform_indices = @transform_11, window_bounds = array<i64: 1, 128, 128>}, {transform_indices = @transform_12, window_bounds = array<i64: 1, 1, 128>}, {transform_indices = @transform_13, window_bounds = array<i64: 1, 128, 128>}, {transform_indices = @transform_14, window_bounds = array<i64: 1, 1, 128>}, {transform_indices = @transform_15, window_bounds = array<i64: 1, 1, 128>}, {transform_indices = @transform_16, window_bounds = array<i64: 1, 1, 128>}, {transform_indices = @transform_17, window_bounds = array<i64: 1, 128, 256>}, {transform_indices = @transform_18, window_bounds = array<i64: 1, 1, 256>}, {transform_indices = @transform_19, window_bounds = array<i64: 1, 256, 128>}, {transform_indices = @transform_20, window_bounds = array<i64: 1, 1, 128>}, {transform_indices = @transform_21, window_bounds = array<i64: 2, 16, 128>}]} {
    %c0_i32 = arith.constant 0 : i32
    %0 = arith.cmpi eq, %arg1, %c0_i32 : i32
    %1 = arith.extui %0 : i1 to i32
    %c0_i32_0 = arith.constant 0 : i32
    %2 = arith.cmpi ne, %1, %c0_i32_0 : i32
    scf.if %2 {
      %c0_76 = arith.constant 0 : index
      %c0_77 = arith.constant 0 : index
      %c0_78 = arith.constant 0 : index
      %156 = vector.load %arg2[%c0_76, %c0_77, %c0_78] : memref<2x8x32xf32, #tpu.memory_space<vmem>>, vector<2x8x32xf32>
      %157 = vector.shape_cast %156 : vector<2x8x32xf32> to vector<16x32xf32>
      %158 = arith.truncf %157 : vector<16x32xf32> to vector<16x32xbf16>
      %c0_79 = arith.constant 0 : index
      %c0_80 = arith.constant 0 : index
      %159 = vector.load %arg4[%c0_79, %c0_80] : memref<32x128xbf16, #tpu.memory_space<vmem>>, vector<32x128xbf16>
      %cst_81 = arith.constant dense<0.000000e+00> : vector<16x128xf32>
      %160 = tpu.matmul %158, %159, %cst_81 {dimension_numbers = #tpu.dot_dimension_numbers<[1], [0], [0], [1], [0, 0, 1, 1], [], []>} : vector<16x32xbf16>, vector<32x128xbf16>, vector<16x128xf32> -> vector<16x128xf32>
      %c0_82 = arith.constant 0 : index
      %c0_83 = arith.constant 0 : index
      %161 = vector.load %arg5[%c0_82, %c0_83] : memref<1x128xf32, #tpu.memory_space<vmem>>, vector<1x128xf32>
      %162 = vector.broadcast %161 : vector<1x128xf32> to vector<16x128xf32>
      %163 = arith.addf %160, %162 : vector<16x128xf32>
      %cst_84 = arith.constant 0.000000e+00 : f32
      %164 = vector.broadcast %cst_84 : f32 to vector<2x7x128xf32>
      %c0_85 = arith.constant 0 : index
      %c9 = arith.constant 9 : index
      %c0_86 = arith.constant 0 : index
      %165 = vector.load %arg24[%c0_85, %c9, %c0_86] : memref<2x16x128xf32, #tpu.memory_space<vmem>>, vector<2x7x128xf32>
      tpu.vector_store %arg24[%c0_85, %c9, %c0_86], %164 {strides = array<i32>} : memref<2x16x128xf32, #tpu.memory_space<vmem>>, vector<2x7x128xf32>,
      %166 = vector.shape_cast %163 : vector<16x128xf32> to vector<2x8x128xf32>
      %c0_87 = arith.constant 0 : index
      %c0_88 = arith.constant 0 : index
      %c0_89 = arith.constant 0 : index
      %167 = vector.load %arg24[%c0_87, %c0_88, %c0_89] : memref<2x16x128xf32, #tpu.memory_space<vmem>>, vector<2x8x128xf32>
      tpu.vector_store %arg24[%c0_87, %c0_88, %c0_89], %166 {strides = array<i32>} : memref<2x16x128xf32, #tpu.memory_space<vmem>>, vector<2x8x128xf32>,
      %c0_90 = arith.constant 0 : index
      %c0_91 = arith.constant 0 : index
      %168 = vector.load %arg6[%c0_90, %c0_91] : memref<1x128xf32, #tpu.memory_space<vmem>>, vector<1x128xf32>
      %169 = vector.shape_cast %168 : vector<1x128xf32> to vector<1x1x128xf32>
      %170 = vector.shape_cast %169 : vector<1x1x128xf32> to vector<1x1x128xf32>
      %171 = vector.broadcast %170 : vector<1x1x128xf32> to vector<2x1x128xf32>
      %c0_92 = arith.constant 0 : index
      %c8 = arith.constant 8 : index
      %c0_93 = arith.constant 0 : index
      %172 = vector.load %arg24[%c0_92, %c8, %c0_93] : memref<2x16x128xf32, #tpu.memory_space<vmem>>, vector<2x1x128xf32>
      tpu.vector_store %arg24[%c0_92, %c8, %c0_93], %171 {strides = array<i32>} : memref<2x16x128xf32, #tpu.memory_space<vmem>>, vector<2x1x128xf32>,
    } else {
    }
    %c0 = arith.constant 0 : index
    %c0_1 = arith.constant 0 : index
    %c0_2 = arith.constant 0 : index
    %3 = vector.load %arg24[%c0, %c0_1, %c0_2] : memref<2x16x128xf32, #tpu.memory_space<vmem>>, vector<2x16x128xf32>
    %4 = vector.shape_cast %3 : vector<2x16x128xf32> to vector<32x128xf32>
    %c0_3 = arith.constant 0 : index
    %c0_4 = arith.constant 0 : index
    %c0_5 = arith.constant 0 : index
    %5 = vector.load %arg3[%c0_3, %c0_4, %c0_5] : memref<2x16x128xf32, #tpu.memory_space<vmem>>, vector<2x16x128xf32>
    %6 = vector.shape_cast %5 : vector<2x16x128xf32> to vector<32x128xf32>
    %c0_6 = arith.constant 0 : index
    %c0_7 = arith.constant 0 : index
    %c0_8 = arith.constant 0 : index
    %7 = vector.load %arg9[%c0_6, %c0_7, %c0_8] : memref<1x1x128xf32, #tpu.memory_space<vmem>>, vector<1x1x128xf32>
    %8 = vector.shape_cast %7 : vector<1x1x128xf32> to vector<1x128xf32>
    %c0_9 = arith.constant 0 : index
    %c0_10 = arith.constant 0 : index
    %c0_11 = arith.constant 0 : index
    %9 = vector.load %arg10[%c0_9, %c0_10, %c0_11] : memref<1x1x128xf32, #tpu.memory_space<vmem>>, vector<1x1x128xf32>
    %10 = vector.shape_cast %9 : vector<1x1x128xf32> to vector<1x128xf32>
    %cst = arith.constant dense<0.000000e+00> : vector<32xf32>
    %11 = vector.multi_reduction <add>, %4, %cst [1] : vector<32x128xf32> to vector<32xf32>
    %12 = vector.shape_cast %11 : vector<32xf32> to vector<32x1xf32>
    %cst_12 = arith.constant 1.280000e+02 : f32
    %13 = vector.broadcast %cst_12 : f32 to vector<32x1xf32>
    %14 = arith.divf %12, %13 : vector<32x1xf32>
    %15 = vector.broadcast %14 : vector<32x1xf32> to vector<32x128xf32>
    %16 = arith.subf %4, %15 : vector<32x128xf32>
    %17 = arith.mulf %16, %16 : vector<32x128xf32>
    %cst_13 = arith.constant dense<0.000000e+00> : vector<32xf32>
    %18 = vector.multi_reduction <add>, %17, %cst_13 [1] : vector<32x128xf32> to vector<32xf32>
    %19 = vector.shape_cast %18 : vector<32xf32> to vector<32x1xf32>
    %cst_14 = arith.constant 1.280000e+02 : f32
    %20 = vector.broadcast %cst_14 : f32 to vector<32x1xf32>
    %21 = arith.divf %19, %20 : vector<32x1xf32>
    %22 = vector.broadcast %14 : vector<32x1xf32> to vector<32x128xf32>
    %23 = arith.subf %4, %22 : vector<32x128xf32>
    %cst_15 = arith.constant 9.99999974E-6 : f32
    %24 = vector.broadcast %cst_15 : f32 to vector<32x1xf32>
    %25 = arith.addf %21, %24 : vector<32x1xf32>
    %26 = math.rsqrt %25 : vector<32x1xf32>
    %27 = vector.broadcast %26 : vector<32x1xf32> to vector<32x128xf32>
    %28 = arith.mulf %23, %27 : vector<32x128xf32>
    %29 = vector.broadcast %8 : vector<1x128xf32> to vector<32x128xf32>
    %30 = arith.mulf %28, %29 : vector<32x128xf32>
    %31 = vector.broadcast %10 : vector<1x128xf32> to vector<32x128xf32>
    %32 = arith.addf %30, %31 : vector<32x128xf32>
    %33 = arith.addf %32, %6 : vector<32x128xf32>
    %34 = arith.truncf %33 : vector<32x128xf32> to vector<32x128xbf16>
    %c0_16 = arith.constant 0 : index
    %c0_17 = arith.constant 0 : index
    %c0_18 = arith.constant 0 : index
    %35 = vector.load %arg11[%c0_16, %c0_17, %c0_18] : memref<1x128x256xbf16, #tpu.memory_space<vmem>>, vector<1x128x256xbf16>
    %36 = vector.shape_cast %35 : vector<1x128x256xbf16> to vector<128x256xbf16>
    %cst_19 = arith.constant dense<0.000000e+00> : vector<32x256xf32>
    %37 = tpu.matmul %34, %36, %cst_19 {dimension_numbers = #tpu.dot_dimension_numbers<[1], [0], [0], [1], [0, 0, 1, 1], [], []>} : vector<32x128xbf16>, vector<128x256xbf16>, vector<32x256xf32> -> vector<32x256xf32>
    %c0_20 = arith.constant 0 : index
    %c0_21 = arith.constant 0 : index
    %c0_22 = arith.constant 0 : index
    %38 = vector.load %arg12[%c0_20, %c0_21, %c0_22] : memref<1x1x256xf32, #tpu.memory_space<vmem>>, vector<1x1x256xf32>
    %39 = vector.shape_cast %38 : vector<1x1x256xf32> to vector<1x256xf32>
    %40 = vector.broadcast %39 : vector<1x256xf32> to vector<32x256xf32>
    %41 = arith.addf %37, %40 : vector<32x256xf32>
    %42 = arith.truncf %32 : vector<32x128xf32> to vector<32x128xbf16>
    %c0_23 = arith.constant 0 : index
    %c0_24 = arith.constant 0 : index
    %c0_25 = arith.constant 0 : index
    %43 = vector.load %arg13[%c0_23, %c0_24, %c0_25] : memref<1x128x128xbf16, #tpu.memory_space<vmem>>, vector<1x128x128xbf16>
    %44 = vector.shape_cast %43 : vector<1x128x128xbf16> to vector<128x128xbf16>
    %cst_26 = arith.constant dense<0.000000e+00> : vector<32x128xf32>
    %45 = tpu.matmul %42, %44, %cst_26 {dimension_numbers = #tpu.dot_dimension_numbers<[1], [0], [0], [1], [0, 0, 1, 1], [], []>} : vector<32x128xbf16>, vector<128x128xbf16>, vector<32x128xf32> -> vector<32x128xf32>
    %c0_27 = arith.constant 0 : index
    %c0_28 = arith.constant 0 : index
    %c0_29 = arith.constant 0 : index
    %46 = vector.load %arg14[%c0_27, %c0_28, %c0_29] : memref<1x1x128xf32, #tpu.memory_space<vmem>>, vector<1x1x128xf32>
    %47 = vector.shape_cast %46 : vector<1x1x128xf32> to vector<1x128xf32>
    %48 = vector.broadcast %47 : vector<1x128xf32> to vector<32x128xf32>
    %49 = arith.addf %45, %48 : vector<32x128xf32>
    %50 = vector.extract_strided_slice %41 {offsets = [0, 0], sizes = [32, 128], strides = [1, 1]} : vector<32x256xf32> to vector<32x128xf32>
    %cst_30 = arith.constant 0.176776692 : f32
    %51 = vector.broadcast %cst_30 : f32 to vector<32x128xf32>
    %52 = arith.mulf %50, %51 : vector<32x128xf32>
    %53 = vector.shape_cast %52 : vector<32x128xf32> to vector<32x4x32xf32>
    %54 = tpu.transpose %53, [1, 0, 2] : vector<32x4x32xf32> -> vector<4x32x32xf32>
    %55 = vector.shape_cast %54 : vector<4x32x32xf32> to vector<8x16x32xf32>
    %56 = arith.truncf %55 : vector<8x16x32xf32> to vector<8x16x32xbf16>
    %57 = vector.extract_strided_slice %41 {offsets = [0, 128], sizes = [32, 128], strides = [1, 1]} : vector<32x256xf32> to vector<32x128xf32>
    %58 = vector.shape_cast %57 : vector<32x128xf32> to vector<32x4x32xf32>
    %59 = tpu.transpose %58, [1, 0, 2] : vector<32x4x32xf32> -> vector<4x32x32xf32>
    %60 = vector.shape_cast %59 : vector<4x32x32xf32> to vector<8x16x32xf32>
    %61 = arith.truncf %60 : vector<8x16x32xf32> to vector<8x16x32xbf16>
    %62 = vector.shape_cast %49 : vector<32x128xf32> to vector<32x4x32xf32>
    %63 = tpu.transpose %62, [1, 0, 2] : vector<32x4x32xf32> -> vector<4x32x32xf32>
    %64 = vector.shape_cast %63 : vector<4x32x32xf32> to vector<8x16x32xf32>
    %65 = arith.truncf %64 : vector<8x16x32xf32> to vector<8x16x32xbf16>
    "tpu.trace_start"() <{level = 10 : i32, message = "bqd,bkd->bqk"}> : () -> ()
    %cst_31 = arith.constant dense<0.000000e+00> : vector<8x16x16xf32>
    %66 = tpu.matmul %56, %61, %cst_31 {dimension_numbers = #tpu.dot_dimension_numbers<[2], [2], [1], [1], [0, 0, 0, 1, 1, 1], [0], [0]>} : vector<8x16x32xbf16>, vector<8x16x32xbf16>, vector<8x16x16xf32> -> vector<8x16x16xf32>
    "tpu.trace_stop"() : () -> ()
    %67 = tpu.iota {dimensions = array<i32: 2>} : vector<8x16x16xi32>
    %c9_i32 = arith.constant 9 : i32
    %68 = vector.broadcast %c9_i32 : i32 to vector<8x16x16xi32>
    %69 = arith.cmpi slt, %67, %68 : vector<8x16x16xi32>
    %cst_32 = arith.constant -1.000000e+30 : f32
    %70 = vector.broadcast %cst_32 : f32 to vector<8x16x16xf32>
    %71 = arith.select %69, %66, %70 : vector<8x16x16xi1>, vector<8x16x16xf32>
    %cst_33 = arith.constant dense<0xFF800000> : vector<8x16xf32>
    %72 = vector.multi_reduction <maximumf>, %71, %cst_33 [2] : vector<8x16x16xf32> to vector<8x16xf32>
    %73 = vector.shape_cast %72 : vector<8x16xf32> to vector<8x16x1xf32>
    %74 = vector.broadcast %73 : vector<8x16x1xf32> to vector<8x16x16xf32>
    %75 = arith.subf %71, %74 : vector<8x16x16xf32>
    %76 = math.exp %75 : vector<8x16x16xf32>
    %cst_34 = arith.constant dense<0.000000e+00> : vector<8x16xf32>
    %77 = vector.multi_reduction <add>, %76, %cst_34 [2] : vector<8x16x16xf32> to vector<8x16xf32>
    %78 = vector.shape_cast %77 : vector<8x16xf32> to vector<8x16x1xf32>
    %79 = vector.broadcast %78 : vector<8x16x1xf32> to vector<8x16x16xf32>
    %80 = arith.divf %76, %79 : vector<8x16x16xf32>
    %81 = arith.truncf %80 : vector<8x16x16xf32> to vector<8x16x16xbf16>
    "tpu.trace_start"() <{level = 10 : i32, message = "bqk,bkd->bqd"}> : () -> ()
    %cst_35 = arith.constant dense<0.000000e+00> : vector<8x16x32xf32>
    %82 = tpu.matmul %81, %65, %cst_35 {dimension_numbers = #tpu.dot_dimension_numbers<[2], [1], [1], [2], [0, 0, 0, 1, 1, 2], [0], [0]>} : vector<8x16x16xbf16>, vector<8x16x32xbf16>, vector<8x16x32xf32> -> vector<8x16x32xf32>
    "tpu.trace_stop"() : () -> ()
    %83 = vector.shape_cast %82 : vector<8x16x32xf32> to vector<4x32x32xf32>
    %84 = tpu.transpose %83, [1, 0, 2] : vector<4x32x32xf32> -> vector<32x4x32xf32>
    %85 = vector.shape_cast %84 : vector<32x4x32xf32> to vector<32x128xf32>
    %86 = arith.truncf %85 : vector<32x128xf32> to vector<32x128xbf16>
    %c0_36 = arith.constant 0 : index
    %c0_37 = arith.constant 0 : index
    %c0_38 = arith.constant 0 : index
    %87 = vector.load %arg15[%c0_36, %c0_37, %c0_38] : memref<1x128x128xbf16, #tpu.memory_space<vmem>>, vector<1x128x128xbf16>
    %88 = vector.shape_cast %87 : vector<1x128x128xbf16> to vector<128x128xbf16>
    %cst_39 = arith.constant dense<0.000000e+00> : vector<32x128xf32>
    %89 = tpu.matmul %86, %88, %cst_39 {dimension_numbers = #tpu.dot_dimension_numbers<[1], [0], [0], [1], [0, 0, 1, 1], [], []>} : vector<32x128xbf16>, vector<128x128xbf16>, vector<32x128xf32> -> vector<32x128xf32>
    %c0_40 = arith.constant 0 : index
    %c0_41 = arith.constant 0 : index
    %c0_42 = arith.constant 0 : index
    %90 = vector.load %arg16[%c0_40, %c0_41, %c0_42] : memref<1x1x128xf32, #tpu.memory_space<vmem>>, vector<1x1x128xf32>
    %91 = vector.shape_cast %90 : vector<1x1x128xf32> to vector<1x128xf32>
    %92 = vector.broadcast %91 : vector<1x128xf32> to vector<32x128xf32>
    %93 = arith.addf %89, %92 : vector<32x128xf32>
    %94 = arith.addf %4, %93 : vector<32x128xf32>
    %c0_43 = arith.constant 0 : index
    %c0_44 = arith.constant 0 : index
    %c0_45 = arith.constant 0 : index
    %95 = vector.load %arg17[%c0_43, %c0_44, %c0_45] : memref<1x1x128xf32, #tpu.memory_space<vmem>>, vector<1x1x128xf32>
    %96 = vector.shape_cast %95 : vector<1x1x128xf32> to vector<1x128xf32>
    %c0_46 = arith.constant 0 : index
    %c0_47 = arith.constant 0 : index
    %c0_48 = arith.constant 0 : index
    %97 = vector.load %arg18[%c0_46, %c0_47, %c0_48] : memref<1x1x128xf32, #tpu.memory_space<vmem>>, vector<1x1x128xf32>
    %98 = vector.shape_cast %97 : vector<1x1x128xf32> to vector<1x128xf32>
    %cst_49 = arith.constant dense<0.000000e+00> : vector<32xf32>
    %99 = vector.multi_reduction <add>, %94, %cst_49 [1] : vector<32x128xf32> to vector<32xf32>
    %100 = vector.shape_cast %99 : vector<32xf32> to vector<32x1xf32>
    %cst_50 = arith.constant 1.280000e+02 : f32
    %101 = vector.broadcast %cst_50 : f32 to vector<32x1xf32>
    %102 = arith.divf %100, %101 : vector<32x1xf32>
    %103 = vector.broadcast %102 : vector<32x1xf32> to vector<32x128xf32>
    %104 = arith.subf %94, %103 : vector<32x128xf32>
    %105 = arith.mulf %104, %104 : vector<32x128xf32>
    %cst_51 = arith.constant dense<0.000000e+00> : vector<32xf32>
    %106 = vector.multi_reduction <add>, %105, %cst_51 [1] : vector<32x128xf32> to vector<32xf32>
    %107 = vector.shape_cast %106 : vector<32xf32> to vector<32x1xf32>
    %cst_52 = arith.constant 1.280000e+02 : f32
    %108 = vector.broadcast %cst_52 : f32 to vector<32x1xf32>
    %109 = arith.divf %107, %108 : vector<32x1xf32>
    %110 = vector.broadcast %102 : vector<32x1xf32> to vector<32x128xf32>
    %111 = arith.subf %94, %110 : vector<32x128xf32>
    %cst_53 = arith.constant 9.99999974E-6 : f32
    %112 = vector.broadcast %cst_53 : f32 to vector<32x1xf32>
    %113 = arith.addf %109, %112 : vector<32x1xf32>
    %114 = math.rsqrt %113 : vector<32x1xf32>
    %115 = vector.broadcast %114 : vector<32x1xf32> to vector<32x128xf32>
    %116 = arith.mulf %111, %115 : vector<32x128xf32>
    %117 = vector.broadcast %96 : vector<1x128xf32> to vector<32x128xf32>
    %118 = arith.mulf %116, %117 : vector<32x128xf32>
    %119 = vector.broadcast %98 : vector<1x128xf32> to vector<32x128xf32>
    %120 = arith.addf %118, %119 : vector<32x128xf32>
    %121 = arith.truncf %120 : vector<32x128xf32> to vector<32x128xbf16>
    %c0_54 = arith.constant 0 : index
    %c0_55 = arith.constant 0 : index
    %c0_56 = arith.constant 0 : index
    %122 = vector.load %arg19[%c0_54, %c0_55, %c0_56] : memref<1x128x256xbf16, #tpu.memory_space<vmem>>, vector<1x128x256xbf16>
    %123 = vector.shape_cast %122 : vector<1x128x256xbf16> to vector<128x256xbf16>
    %cst_57 = arith.constant dense<0.000000e+00> : vector<32x256xf32>
    %124 = tpu.matmul %121, %123, %cst_57 {dimension_numbers = #tpu.dot_dimension_numbers<[1], [0], [0], [1], [0, 0, 1, 1], [], []>} : vector<32x128xbf16>, vector<128x256xbf16>, vector<32x256xf32> -> vector<32x256xf32>
    %c0_58 = arith.constant 0 : index
    %c0_59 = arith.constant 0 : index
    %c0_60 = arith.constant 0 : index
    %125 = vector.load %arg20[%c0_58, %c0_59, %c0_60] : memref<1x1x256xf32, #tpu.memory_space<vmem>>, vector<1x1x256xf32>
    %126 = vector.shape_cast %125 : vector<1x1x256xf32> to vector<1x256xf32>
    %127 = vector.broadcast %126 : vector<1x256xf32> to vector<32x256xf32>
    %128 = arith.addf %124, %127 : vector<32x256xf32>
    %129 = arith.mulf %128, %128 : vector<32x256xf32>
    %130 = arith.mulf %128, %129 : vector<32x256xf32>
    %cst_61 = arith.constant 4.471500e-02 : f32
    %131 = vector.broadcast %cst_61 : f32 to vector<32x256xf32>
    %132 = arith.mulf %131, %130 : vector<32x256xf32>
    %133 = arith.addf %128, %132 : vector<32x256xf32>
    %cst_62 = arith.constant 0.797884583 : f32
    %134 = vector.broadcast %cst_62 : f32 to vector<32x256xf32>
    %135 = arith.mulf %134, %133 : vector<32x256xf32>
    %136 = math.tanh %135 : vector<32x256xf32>
    %cst_63 = arith.constant 1.000000e+00 : f32
    %137 = vector.broadcast %cst_63 : f32 to vector<32x256xf32>
    %138 = arith.addf %137, %136 : vector<32x256xf32>
    %cst_64 = arith.constant 5.000000e-01 : f32
    %139 = vector.broadcast %cst_64 : f32 to vector<32x256xf32>
    %140 = arith.mulf %139, %138 : vector<32x256xf32>
    %141 = arith.mulf %128, %140 : vector<32x256xf32>
    %142 = arith.truncf %141 : vector<32x256xf32> to vector<32x256xbf16>
    %c0_65 = arith.constant 0 : index
    %c0_66 = arith.constant 0 : index
    %c0_67 = arith.constant 0 : index
    %143 = vector.load %arg21[%c0_65, %c0_66, %c0_67] : memref<1x256x128xbf16, #tpu.memory_space<vmem>>, vector<1x256x128xbf16>
    %144 = vector.shape_cast %143 : vector<1x256x128xbf16> to vector<256x128xbf16>
    %cst_68 = arith.constant dense<0.000000e+00> : vector<32x128xf32>
    %145 = tpu.matmul %142, %144, %cst_68 {dimension_numbers = #tpu.dot_dimension_numbers<[1], [0], [0], [1], [0, 0, 1, 1], [], []>} : vector<32x256xbf16>, vector<256x128xbf16>, vector<32x128xf32> -> vector<32x128xf32>
    %c0_69 = arith.constant 0 : index
    %c0_70 = arith.constant 0 : index
    %c0_71 = arith.constant 0 : index
    %146 = vector.load %arg22[%c0_69, %c0_70, %c0_71] : memref<1x1x128xf32, #tpu.memory_space<vmem>>, vector<1x1x128xf32>
    %147 = vector.shape_cast %146 : vector<1x1x128xf32> to vector<1x128xf32>
    %148 = vector.broadcast %147 : vector<1x128xf32> to vector<32x128xf32>
    %149 = arith.addf %145, %148 : vector<32x128xf32>
    %150 = arith.addf %94, %149 : vector<32x128xf32>
    %151 = vector.shape_cast %150 : vector<32x128xf32> to vector<2x16x128xf32>
    %c0_72 = arith.constant 0 : index
    %c0_73 = arith.constant 0 : index
    %c0_74 = arith.constant 0 : index
    %152 = vector.load %arg24[%c0_72, %c0_73, %c0_74] : memref<2x16x128xf32, #tpu.memory_space<vmem>>, vector<2x16x128xf32>
    tpu.vector_store %arg24[%c0_72, %c0_73, %c0_74], %151 {strides = array<i32>} : memref<2x16x128xf32, #tpu.memory_space<vmem>>, vector<2x16x128xf32>,
    %c1_i32 = arith.constant 1 : i32
    %153 = arith.cmpi eq, %arg1, %c1_i32 : i32
    %154 = arith.extui %153 : i1 to i32
    %c0_i32_75 = arith.constant 0 : i32
    %155 = arith.cmpi ne, %154, %c0_i32_75 : i32
    scf.if %155 {
      %c0_76 = arith.constant 0 : index
      %c0_77 = arith.constant 0 : index
      %156 = vector.load %arg7[%c0_76, %c0_77] : memref<1x128xf32, #tpu.memory_space<vmem>>, vector<1x128xf32>
      %c0_78 = arith.constant 0 : index
      %c0_79 = arith.constant 0 : index
      %157 = vector.load %arg8[%c0_78, %c0_79] : memref<1x128xf32, #tpu.memory_space<vmem>>, vector<1x128xf32>
      %cst_80 = arith.constant dense<0.000000e+00> : vector<32xf32>
      %158 = vector.multi_reduction <add>, %150, %cst_80 [1] : vector<32x128xf32> to vector<32xf32>
      %159 = vector.shape_cast %158 : vector<32xf32> to vector<32x1xf32>
      %cst_81 = arith.constant 1.280000e+02 : f32
      %160 = vector.broadcast %cst_81 : f32 to vector<32x1xf32>
      %161 = arith.divf %159, %160 : vector<32x1xf32>
      %162 = vector.broadcast %161 : vector<32x1xf32> to vector<32x128xf32>
      %163 = arith.subf %150, %162 : vector<32x128xf32>
      %164 = arith.mulf %163, %163 : vector<32x128xf32>
      %cst_82 = arith.constant dense<0.000000e+00> : vector<32xf32>
      %165 = vector.multi_reduction <add>, %164, %cst_82 [1] : vector<32x128xf32> to vector<32xf32>
      %166 = vector.shape_cast %165 : vector<32xf32> to vector<32x1xf32>
      %cst_83 = arith.constant 1.280000e+02 : f32
      %167 = vector.broadcast %cst_83 : f32 to vector<32x1xf32>
      %168 = arith.divf %166, %167 : vector<32x1xf32>
      %169 = vector.broadcast %161 : vector<32x1xf32> to vector<32x128xf32>
      %170 = arith.subf %150, %169 : vector<32x128xf32>
      %cst_84 = arith.constant 9.99999974E-6 : f32
      %171 = vector.broadcast %cst_84 : f32 to vector<32x1xf32>
      %172 = arith.addf %168, %171 : vector<32x1xf32>
      %173 = math.rsqrt %172 : vector<32x1xf32>
      %174 = vector.broadcast %173 : vector<32x1xf32> to vector<32x128xf32>
      %175 = arith.mulf %170, %174 : vector<32x128xf32>
      %176 = vector.broadcast %156 : vector<1x128xf32> to vector<32x128xf32>
      %177 = arith.mulf %175, %176 : vector<32x128xf32>
      %178 = vector.broadcast %157 : vector<1x128xf32> to vector<32x128xf32>
      %179 = arith.addf %177, %178 : vector<32x128xf32>
      %180 = vector.shape_cast %179 : vector<32x128xf32> to vector<2x16x128xf32>
      %c0_85 = arith.constant 0 : index
      %c0_86 = arith.constant 0 : index
      %c0_87 = arith.constant 0 : index
      %181 = vector.load %arg23[%c0_85, %c0_86, %c0_87] : memref<2x16x128xf32, #tpu.memory_space<vmem>>, vector<2x16x128xf32>
      tpu.vector_store %arg23[%c0_85, %c0_86, %c0_87], %180 {strides = array<i32>} : memref<2x16x128xf32, #tpu.memory_space<vmem>>, vector<2x16x128xf32>,
    } else {
    }
    return
  }
  func.func @transform_0(%arg0: i32, %arg1: i32) -> (i32, i32, i32) {
    %c0_i32 = arith.constant 0 : i32
    %c0_i32_0 = arith.constant 0 : i32
    %c0_i32_1 = arith.constant 0 : i32
    return %arg0, %c0_i32, %c0_i32_0 : i32, i32, i32
  }
  func.func @transform_1(%arg0: i32, %arg1: i32) -> (i32, i32, i32) {
    %c0_i32 = arith.constant 0 : i32
    %c0_i32_0 = arith.constant 0 : i32
    %c0_i32_1 = arith.constant 0 : i32
    return %arg0, %c0_i32, %c0_i32_0 : i32, i32, i32
  }
  func.func @transform_2(%arg0: i32, %arg1: i32) -> (i32, i32) {
    %c0_i32 = arith.constant 0 : i32
    %c0_i32_0 = arith.constant 0 : i32
    %c0_i32_1 = arith.constant 0 : i32
    return %c0_i32, %c0_i32_0 : i32, i32
  }
  func.func @transform_3(%arg0: i32, %arg1: i32) -> (i32, i32) {
    %c0_i32 = arith.constant 0 : i32
    %c0_i32_0 = arith.constant 0 : i32
    %c0_i32_1 = arith.constant 0 : i32
    return %c0_i32, %c0_i32_0 : i32, i32
  }
  func.func @transform_4(%arg0: i32, %arg1: i32) -> (i32, i32) {
    %c0_i32 = arith.constant 0 : i32
    %c0_i32_0 = arith.constant 0 : i32
    %c0_i32_1 = arith.constant 0 : i32
    return %c0_i32, %c0_i32_0 : i32, i32
  }
  func.func @transform_5(%arg0: i32, %arg1: i32) -> (i32, i32) {
    %c0_i32 = arith.constant 0 : i32
    %c0_i32_0 = arith.constant 0 : i32
    %c0_i32_1 = arith.constant 0 : i32
    return %c0_i32, %c0_i32_0 : i32, i32
  }
  func.func @transform_6(%arg0: i32, %arg1: i32) -> (i32, i32) {
    %c0_i32 = arith.constant 0 : i32
    %c0_i32_0 = arith.constant 0 : i32
    %c0_i32_1 = arith.constant 0 : i32
    return %c0_i32, %c0_i32_0 : i32, i32
  }
  func.func @transform_7(%arg0: i32, %arg1: i32) -> (i32, i32, i32) {
    %c0_i32 = arith.constant 0 : i32
    %c0_i32_0 = arith.constant 0 : i32
    %c0_i32_1 = arith.constant 0 : i32
    return %arg1, %c0_i32, %c0_i32_0 : i32, i32, i32
  }
  func.func @transform_8(%arg0: i32, %arg1: i32) -> (i32, i32, i32) {
    %c0_i32 = arith.constant 0 : i32
    %c0_i32_0 = arith.constant 0 : i32
    %c0_i32_1 = arith.constant 0 : i32
    return %arg1, %c0_i32, %c0_i32_0 : i32, i32, i32
  }
  func.func @transform_9(%arg0: i32, %arg1: i32) -> (i32, i32, i32) {
    %c0_i32 = arith.constant 0 : i32
    %c0_i32_0 = arith.constant 0 : i32
    %c0_i32_1 = arith.constant 0 : i32
    return %arg1, %c0_i32, %c0_i32_0 : i32, i32, i32
  }
  func.func @transform_10(%arg0: i32, %arg1: i32) -> (i32, i32, i32) {
    %c0_i32 = arith.constant 0 : i32
    %c0_i32_0 = arith.constant 0 : i32
    %c0_i32_1 = arith.constant 0 : i32
    return %arg1, %c0_i32, %c0_i32_0 : i32, i32, i32
  }
  func.func @transform_11(%arg0: i32, %arg1: i32) -> (i32, i32, i32) {
    %c0_i32 = arith.constant 0 : i32
    %c0_i32_0 = arith.constant 0 : i32
    %c0_i32_1 = arith.constant 0 : i32
    return %arg1, %c0_i32, %c0_i32_0 : i32, i32, i32
  }
  func.func @transform_12(%arg0: i32, %arg1: i32) -> (i32, i32, i32) {
    %c0_i32 = arith.constant 0 : i32
    %c0_i32_0 = arith.constant 0 : i32
    %c0_i32_1 = arith.constant 0 : i32
    return %arg1, %c0_i32, %c0_i32_0 : i32, i32, i32
  }
  func.func @transform_13(%arg0: i32, %arg1: i32) -> (i32, i32, i32) {
    %c0_i32 = arith.constant 0 : i32
    %c0_i32_0 = arith.constant 0 : i32
    %c0_i32_1 = arith.constant 0 : i32
    return %arg1, %c0_i32, %c0_i32_0 : i32, i32, i32
  }
  func.func @transform_14(%arg0: i32, %arg1: i32) -> (i32, i32, i32) {
    %c0_i32 = arith.constant 0 : i32
    %c0_i32_0 = arith.constant 0 : i32
    %c0_i32_1 = arith.constant 0 : i32
    return %arg1, %c0_i32, %c0_i32_0 : i32, i32, i32
  }
  func.func @transform_15(%arg0: i32, %arg1: i32) -> (i32, i32, i32) {
    %c0_i32 = arith.constant 0 : i32
    %c0_i32_0 = arith.constant 0 : i32
    %c0_i32_1 = arith.constant 0 : i32
    return %arg1, %c0_i32, %c0_i32_0 : i32, i32, i32
  }
  func.func @transform_16(%arg0: i32, %arg1: i32) -> (i32, i32, i32) {
    %c0_i32 = arith.constant 0 : i32
    %c0_i32_0 = arith.constant 0 : i32
    %c0_i32_1 = arith.constant 0 : i32
    return %arg1, %c0_i32, %c0_i32_0 : i32, i32, i32
  }
  func.func @transform_17(%arg0: i32, %arg1: i32) -> (i32, i32, i32) {
    %c0_i32 = arith.constant 0 : i32
    %c0_i32_0 = arith.constant 0 : i32
    %c0_i32_1 = arith.constant 0 : i32
    return %arg1, %c0_i32, %c0_i32_0 : i32, i32, i32
  }
  func.func @transform_18(%arg0: i32, %arg1: i32) -> (i32, i32, i32) {
    %c0_i32 = arith.constant 0 : i32
    %c0_i32_0 = arith.constant 0 : i32
    %c0_i32_1 = arith.constant 0 : i32
    return %arg1, %c0_i32, %c0_i32_0 : i32, i32, i32
  }
  func.func @transform_19(%arg0: i32, %arg1: i32) -> (i32, i32, i32) {
    %c0_i32 = arith.constant 0 : i32
    %c0_i32_0 = arith.constant 0 : i32
    %c0_i32_1 = arith.constant 0 : i32
    return %arg1, %c0_i32, %c0_i32_0 : i32, i32, i32
  }
  func.func @transform_20(%arg0: i32, %arg1: i32) -> (i32, i32, i32) {
    %c0_i32 = arith.constant 0 : i32
    %c0_i32_0 = arith.constant 0 : i32
    %c0_i32_1 = arith.constant 0 : i32
    return %arg1, %c0_i32, %c0_i32_0 : i32, i32, i32
  }
  func.func @transform_21(%arg0: i32, %arg1: i32) -> (i32, i32, i32) {
    %c0_i32 = arith.constant 0 : i32
    %c0_i32_0 = arith.constant 0 : i32
    %c0_i32_1 = arith.constant 0 : i32
    return %arg0, %c0_i32, %c0_i32_0 : i32, i32, i32
  }
}

</mosaic_0001>

<llo_original>
// kernel: tpu_custom_call.1
$region0: #{tpu_custom_call.1}
  #allocation0 [shape = 'u32[]', space=smem, size = 0x4, offset = 0x4, fixed_abs, tag = 'smem constant byte address 0x4 - core index']
  #allocation1 [shape = 'u32[144,128]{1,0:T(1,128)}', space=vmem, size = 0x12000, scoped, tag = 'internal scratch']
  #allocation2 [shape = 'f32[2,16,128]{2,1,0:T(8,128)}', space=vmem, size = 0x4000, scoped, tag = 'scratch operand']
  %s0 = inlined_call_operand.hbm [shape: f32[2,8,32], index: 0, kind: input, shape index: {}]
  %s1 = inlined_call_operand.hbm [shape: f32[2,16,128], index: 1, kind: input, shape index: {}]
  %s2 = inlined_call_operand.hbm [shape: bf16[32,128], index: 2, kind: input, shape index: {}]
  %s3 = inlined_call_operand.hbm [shape: f32[1,128], index: 3, kind: input, shape index: {}]
  %s4 = inlined_call_operand.hbm [shape: f32[1,128], index: 4, kind: input, shape index: {}]
  %s5 = inlined_call_operand.hbm [shape: f32[1,128], index: 5, kind: input, shape index: {}]
  %s6 = inlined_call_operand.hbm [shape: f32[1,128], index: 6, kind: input, shape index: {}]
  %s7 = inlined_call_operand.vmem [shape: f32[2,1,128], index: 7, kind: input, shape index: {}]
  %s8 = inlined_call_operand.vmem [shape: f32[2,1,128], index: 8, kind: input, shape index: {}]
  %s9 = inlined_call_operand.hbm [shape: bf16[2,128,256], index: 9, kind: input, shape index: {}]
  %s10 = inlined_call_operand.vmem [shape: f32[2,1,256], index: 10, kind: input, shape index: {}]
  %s11 = inlined_call_operand.hbm [shape: bf16[2,128,128], index: 11, kind: input, shape index: {}]
  %s12 = inlined_call_operand.vmem [shape: f32[2,1,128], index: 12, kind: input, shape index: {}]
  %s13 = inlined_call_operand.hbm [shape: bf16[2,128,128], index: 13, kind: input, shape index: {}]
  %s14 = inlined_call_operand.vmem [shape: f32[2,1,128], index: 14, kind: input, shape index: {}]
  %s15 = inlined_call_operand.vmem [shape: f32[2,1,128], index: 15, kind: input, shape index: {}]
  %s16 = inlined_call_operand.vmem [shape: f32[2,1,128], index: 16, kind: input, shape index: {}]
  %s17 = inlined_call_operand.hbm [shape: bf16[2,128,256], index: 17, kind: input, shape index: {}]
  %s18 = inlined_call_operand.vmem [shape: f32[2,1,256], index: 18, kind: input, shape index: {}]
  %s19 = inlined_call_operand.hbm [shape: bf16[2,256,128], index: 19, kind: input, shape index: {}]
  %s20 = inlined_call_operand.vmem [shape: f32[2,1,128], index: 20, kind: input, shape index: {}]
  %s21 = inlined_call_operand.hbm [shape: f32[2,16,128], index: 21, kind: output, shape index: {}]
  %s22 = sld [smem:[#allocation0]]
  $region173: #{tpu_custom_call.1} parent=0
    _
  %s24 = ssub.s32 1, %s22
  %s25 = scalar_select 0, %s24, %s22
  $region1: #{tpu_custom_call.1} parent=0
    #allocation3 [shape = 'u8[8192]{0}', space=vmem, size = 0x2000, scoped, tag = 'input window, operand 0, single buffered']
    #allocation4 [shape = 's32[2]{0}', space=sflag, size = 0x8, scoped, tag = 'scoped memory for tpu_custom_call.1']
    #allocation5 [shape = 's32[2]{0}', space=sflag, size = 0x8, scoped, tag = 'scoped memory for tpu_custom_call.1']
    #allocation6 [shape = 'u8[16384]{0}', space=vmem, size = 0x4000, scoped, tag = 'input window, operand 1, single buffered']
    #allocation7 [shape = 's32[1]{0}', space=sflag, size = 0x4, scoped, tag = 'scoped memory for tpu_custom_call.1']
    #allocation8 [shape = 'u8[8192]{0}', space=vmem, size = 0x2000, scoped, tag = 'input window, operand 2, single buffered']
    #allocation9 [shape = 'u8[512]{0}', space=vmem, size = 0x400, scoped, tag = 'input window, operand 3, single buffered']
    #allocation10 [shape = 's32[1]{0}', space=sflag, size = 0x4, scoped, tag = 'scoped memory for tpu_custom_call.1']
    #allocation11 [shape = 'u8[512]{0}', space=vmem, size = 0x400, scoped, tag = 'input window, operand 4, single buffered']
    #allocation12 [shape = 'u8[512]{0}', space=vmem, size = 0x400, scoped, tag = 'input window, operand 5, single buffered']
    #allocation13 [shape = 's32[1]{0}', space=sflag, size = 0x4, scoped, tag = 'scoped memory for tpu_custom_call.1']
    #allocation14 [shape = 'u8[512]{0}', space=vmem, size = 0x400, scoped, tag = 'input window, operand 6, single buffered']
    #allocation15 [shape = 'u8[131072]{0}', space=vmem, size = 0x20000, scoped, tag = 'input window, operand 9']
    #allocation16 [shape = 's32[2]{0}', space=sflag, size = 0x8, scoped, tag = 'scoped memory for tpu_custom_call.1']
    #allocation17 [shape = 'u8[65536]{0}', space=vmem, size = 0x10000, scoped, tag = 'input window, operand 11']
    #allocation18 [shape = 'u8[65536]{0}', space=vmem, size = 0x10000, scoped, tag = 'input window, operand 13']
    #allocation19 [shape = 's32[2]{0}', space=sflag, size = 0x8, scoped, tag = 'scoped memory for tpu_custom_call.1']
    #allocation20 [shape = 'u8[131072]{0}', space=vmem, size = 0x20000, scoped, tag = 'input window, operand 17']
    #allocation21 [shape = 'u8[131072]{0}', space=vmem, size = 0x20000, scoped, tag = 'input window, operand 19']
    #allocation22 [shape = 's32[2]{0}', space=sflag, size = 0x8, scoped, tag = 'scoped memory for tpu_custom_call.1']
    #allocation23 [shape = 'u8[16384]{0}', space=vmem, size = 0x4000, scoped, tag = 'output window, operand 0, single buffered']
    %26 = vsyncpa [#allocation4], 0
    %27 = vsyncpa [#allocation7], 0
    %28 = vsyncpa [#allocation10], 0
    %29 = vsyncpa [#allocation13], 0
    %30 = vsyncpa [#allocation16], 0
    %s31 = scalar_lea.sflag [#allocation16], 1
    %32 = vsyncpa %s31, 0
    %33 = vsyncpa [#allocation19], 0
    %s34 = scalar_lea.sflag [#allocation19], 1
    %35 = vsyncpa %s34, 0
    %36 = vsyncpa [#allocation22], 0
    %s37 = scalar_lea.sflag [#allocation22], 1
    %38 = vsyncpa %s37, 0
    %39 = vsyncpa [#allocation5], 0
    loop: start=0, step=1, limit=4
    $region2: #{tpu_custom_call.1} parent=1 // loop_pre_header
      _
    $region3: #{tpu_custom_call.1} parent=1 // loop_header
      %s41 = sphi 0, %s45
      %p42 = scmp.ge.s32.totalorder %s41, 4
      %s48 = sphi 0, %s60
      %s49 = sphi 0, %s56
      %s50 = sphi 0, %s48
      %s51 = sphi 0, %s49
      %s52 = sphi 0, %s50
      %s53 = sphi 0, %s51
      %s63 = sphi 0, %s65
      %s66 = sphi 0, %s63
      %s67 = sphi 0, %s66
      %s83 = sphi 0, %s67
      %s89 = sphi 0, %s91
      %s92 = sphi 0, %s89
      %s93 = sphi 0, %s92
      %s109 = sphi 0, %s93
      %s113 = sphi 0, %s113
      %s115 = sphi 0, %s113
      %s116 = sphi 0, %s115
      %s130 = sphi 0, %s116
      %s134 = sphi 0, %s134
      %s136 = sphi 0, %s134
      %s137 = sphi 0, %s136
      %s151 = sphi 0, %s137
      %s155 = sphi 0, %s155
      %s157 = sphi 0, %s155
      %s158 = sphi 0, %s157
      %s172 = sphi 0, %s158
      %s176 = sphi 0, %s176
      %s178 = sphi 0, %s176
      %s179 = sphi 0, %s178
      %s193 = sphi 0, %s179
      %s197 = sphi 0, %s197
      %s199 = sphi 0, %s197
      %s200 = sphi 0, %s199
      %s214 = sphi 0, %s200
      %s220 = sphi 0, %s222
      %s223 = sphi 0, %s220
      %s224 = sphi 0, %s223
      %s240 = sphi 0, %s224
      %s246 = sphi 0, %s248
      %s249 = sphi 0, %s246
      %s250 = sphi 0, %s249
      %s266 = sphi 0, %s250
      %s272 = sphi 0, %s274
      %s275 = sphi 0, %s272
      %s276 = sphi 0, %s275
      %s292 = sphi 0, %s276
      %s298 = sphi 0, %s300
      %s301 = sphi 0, %s298
      %s302 = sphi 0, %s301
      %s318 = sphi 0, %s302
      %s324 = sphi 0, %s326
      %s327 = sphi 0, %s324
      %s328 = sphi 0, %s327
      %s344 = sphi 0, %s328
      %s350 = sphi 0, %s352
      %s353 = sphi 0, %s350
      %s354 = sphi 0, %s353
      %s370 = sphi 0, %s354
      %s376 = sphi 0, %s378
      %s379 = sphi 0, %s376
      %s380 = sphi 0, %s379
      %s396 = sphi 0, %s380
      %s402 = sphi 0, %s404
      %s405 = sphi 0, %s402
      %s406 = sphi 0, %s405
      %s422 = sphi 0, %s406
      %s428 = sphi 0, %s430
      %s431 = sphi 0, %s428
      %s432 = sphi 0, %s431
      %s448 = sphi 0, %s432
      %s454 = sphi 0, %s456
      %s457 = sphi 0, %s454
      %s458 = sphi 0, %s457
      %s474 = sphi 0, %s458
      %s480 = sphi 0, %s482
      %s483 = sphi 0, %s480
      %s484 = sphi 0, %s483
      %s500 = sphi 0, %s484
      %s506 = sphi 0, %s508
      %s509 = sphi 0, %s506
      %s510 = sphi 0, %s509
      %s526 = sphi 0, %s510
      %s532 = sphi 0, %s534
      %s535 = sphi 0, %s532
      %s536 = sphi 0, %s535
      %s552 = sphi 0, %s536
      %s558 = sphi 0, %s560
      %s561 = sphi 0, %s558
      %s562 = sphi 0, %s561
      %s578 = sphi 0, %s562
      %s584 = sphi 0, %s586
      %s587 = sphi 0, %s584
      %s588 = sphi 0, %s587
      %s604 = sphi 0, %s588
    $region4: #{tpu_custom_call.1} parent=1 // loop_header_branch
      %44 = sbr.rel (%p42) target = $region8
    $region5: #{tpu_custom_call.1} parent=1 // loop_body
      %s46 = ssub.s32 %s41, 1
      %s47 = ssub.s32 %s41, 2
      %s54 = sadd.s32 1, %s49
      %p55 = scmp.ge.s32.totalorder %s54, 2
      %s56 = scalar_select %p55, 0, %s54
      %s57 = sadd.s32 1, %s48
      %s58 = scalar_select %p55, %s57, %s48
      %p59 = scmp.ge.s32.totalorder %s58, 1
      %s60 = scalar_select %p59, 0, %s58
      %s61 = ssub.s32 %s48, %s60
      %p62 = scmp.eq.s32.totalorder %s61, 0
      %s64 = sadd.s32 %s63, 1
      %s65 = scalar_select %p62, %s63, %s64
      %p68 = pneg %p62
      %p69 = scmp.eq.s32.totalorder %s41, 1
      %p70 = por %p68, %p69
      %p71 = scmp.ne.s32.totalorder %s63, %s66
      %p72 = scmp.eq.s32.totalorder %s41, 0
      %p73 = por %p71, %p72
      %p74 = scmp.ne.s32.totalorder %s63, %s66
      %p75 = scmp.eq.s32.totalorder %s46, 1
      %p76 = por %p74, %p75
      %p77 = scmp.ne.s32.totalorder %s66, %s67
      %p78 = scmp.eq.s32.totalorder %s46, 0
      %p79 = por %p77, %p78
      %p80 = scmp.ne.s32.totalorder %s66, %s67
      %p81 = scmp.eq.s32.totalorder %s47, 1
      %p82 = por %p80, %p81
      %p84 = scmp.ne.s32.totalorder %s67, %s83
      %p85 = scmp.eq.s32.totalorder %s47, 0
      %p86 = por %p84, %p85
      %s87 = ssub.s32 %s48, %s60
      %p88 = scmp.eq.s32.totalorder %s87, 0
      %s90 = sadd.s32 %s89, 1
      %s91 = scalar_select %p88, %s89, %s90
      %p94 = pneg %p88
      %p95 = scmp.eq.s32.totalorder %s41, 1
      %p96 = por %p94, %p95
      %p97 = scmp.ne.s32.totalorder %s89, %s92
      %p98 = scmp.eq.s32.totalorder %s41, 0
      %p99 = por %p97, %p98
      %p100 = scmp.ne.s32.totalorder %s89, %s92
      %p101 = scmp.eq.s32.totalorder %s46, 1
      %p102 = por %p100, %p101
      %p103 = scmp.ne.s32.totalorder %s92, %s93
      %p104 = scmp.eq.s32.totalorder %s46, 0
      %p105 = por %p103, %p104
      %p106 = scmp.ne.s32.totalorder %s92, %s93
      %p107 = scmp.eq.s32.totalorder %s47, 1
      %p108 = por %p106, %p107
      %p110 = scmp.ne.s32.totalorder %s93, %s109
      %p111 = scmp.eq.s32.totalorder %s47, 0
      %p112 = por %p110, %p111
      %s114 = sadd.s32 %s113, 1
      %p117 = scmp.eq.s32.totalorder %s41, 1
      %p118 = scmp.ne.s32.totalorder %s113, %s115
      %p119 = scmp.eq.s32.totalorder %s41, 0
      %p120 = por %p118, %p119
      %p121 = scmp.ne.s32.totalorder %s113, %s115
      %p122 = scmp.eq.s32.totalorder %s46, 1
      %p123 = por %p121, %p122
      %p124 = scmp.ne.s32.totalorder %s115, %s116
      %p125 = scmp.eq.s32.totalorder %s46, 0
      %p126 = por %p124, %p125
      %p127 = scmp.ne.s32.totalorder %s115, %s116
      %p128 = scmp.eq.s32.totalorder %s47, 1
      %p129 = por %p127, %p128
      %p131 = scmp.ne.s32.totalorder %s116, %s130
      %p132 = scmp.eq.s32.totalorder %s47, 0
      %p133 = por %p131, %p132
      %s135 = sadd.s32 %s134, 1
      %p138 = scmp.eq.s32.totalorder %s41, 1
      %p139 = scmp.ne.s32.totalorder %s134, %s136
      %p140 = scmp.eq.s32.totalorder %s41, 0
      %p141 = por %p139, %p140
      %p142 = scmp.ne.s32.totalorder %s134, %s136
      %p143 = scmp.eq.s32.totalorder %s46, 1
      %p144 = por %p142, %p143
      %p145 = scmp.ne.s32.totalorder %s136, %s137
      %p146 = scmp.eq.s32.totalorder %s46, 0
      %p147 = por %p145, %p146
      %p148 = scmp.ne.s32.totalorder %s136, %s137
      %p149 = scmp.eq.s32.totalorder %s47, 1
      %p150 = por %p148, %p149
      %p152 = scmp.ne.s32.totalorder %s137, %s151
      %p153 = scmp.eq.s32.totalorder %s47, 0
      %p154 = por %p152, %p153
      %s156 = sadd.s32 %s155, 1
      %p159 = scmp.eq.s32.totalorder %s41, 1
      %p160 = scmp.ne.s32.totalorder %s155, %s157
      %p161 = scmp.eq.s32.totalorder %s41, 0
      %p162 = por %p160, %p161
      %p163 = scmp.ne.s32.totalorder %s155, %s157
      %p164 = scmp.eq.s32.totalorder %s46, 1
      %p165 = por %p163, %p164
      %p166 = scmp.ne.s32.totalorder %s157, %s158
      %p167 = scmp.eq.s32.totalorder %s46, 0
      %p168 = por %p166, %p167
      %p169 = scmp.ne.s32.totalorder %s157, %s158
      %p170 = scmp.eq.s32.totalorder %s47, 1
      %p171 = por %p169, %p170
      %p173 = scmp.ne.s32.totalorder %s158, %s172
      %p174 = scmp.eq.s32.totalorder %s47, 0
      %p175 = por %p173, %p174
      %s177 = sadd.s32 %s176, 1
      %p180 = scmp.eq.s32.totalorder %s41, 1
      %p181 = scmp.ne.s32.totalorder %s176, %s178
      %p182 = scmp.eq.s32.totalorder %s41, 0
      %p183 = por %p181, %p182
      %p184 = scmp.ne.s32.totalorder %s176, %s178
      %p185 = scmp.eq.s32.totalorder %s46, 1
      %p186 = por %p184, %p185
      %p187 = scmp.ne.s32.totalorder %s178, %s179
      %p188 = scmp.eq.s32.totalorder %s46, 0
      %p189 = por %p187, %p188
      %p190 = scmp.ne.s32.totalorder %s178, %s179
      %p191 = scmp.eq.s32.totalorder %s47, 1
      %p192 = por %p190, %p191
      %p194 = scmp.ne.s32.totalorder %s179, %s193
      %p195 = scmp.eq.s32.totalorder %s47, 0
      %p196 = por %p194, %p195
      %s198 = sadd.s32 %s197, 1
      %p201 = scmp.eq.s32.totalorder %s41, 1
      %p202 = scmp.ne.s32.totalorder %s197, %s199
      %p203 = scmp.eq.s32.totalorder %s41, 0
      %p204 = por %p202, %p203
      %p205 = scmp.ne.s32.totalorder %s197, %s199
      %p206 = scmp.eq.s32.totalorder %s46, 1
      %p207 = por %p205, %p206
      %p208 = scmp.ne.s32.totalorder %s199, %s200
      %p209 = scmp.eq.s32.totalorder %s46, 0
      %p210 = por %p208, %p209
      %p211 = scmp.ne.s32.totalorder %s199, %s200
      %p212 = scmp.eq.s32.totalorder %s47, 1
      %p213 = por %p211, %p212
      %p215 = scmp.ne.s32.totalorder %s200, %s214
      %p216 = scmp.eq.s32.totalorder %s47, 0
      %p217 = por %p215, %p216
      %s218 = ssub.s32 %s49, %s56
      %p219 = scmp.eq.s32.totalorder %s218, 0
      %s221 = sadd.s32 %s220, 1
      %s222 = scalar_select %p219, %s220, %s221
      %p225 = pneg %p219
      %p226 = scmp.eq.s32.totalorder %s41, 1
      %p227 = por %p225, %p226
      %p228 = scmp.ne.s32.totalorder %s220, %s223
      %p229 = scmp.eq.s32.totalorder %s41, 0
      %p230 = por %p228, %p229
      %p231 = scmp.ne.s32.totalorder %s220, %s223
      %p232 = scmp.eq.s32.totalorder %s46, 1
      %p233 = por %p231, %p232
      %p234 = scmp.ne.s32.totalorder %s223, %s224
      %p235 = scmp.eq.s32.totalorder %s46, 0
      %p236 = por %p234, %p235
      %p237 = scmp.ne.s32.totalorder %s223, %s224
      %p238 = scmp.eq.s32.totalorder %s47, 1
      %p239 = por %p237, %p238
      %p241 = scmp.ne.s32.totalorder %s224, %s240
      %p242 = scmp.eq.s32.totalorder %s47, 0
      %p243 = por %p241, %p242
      %s244 = ssub.s32 %s49, %s56
      %p245 = scmp.eq.s32.totalorder %s244, 0
      %s247 = sadd.s32 %s246, 1
      %s248 = scalar_select %p245, %s246, %s247
      %p251 = pneg %p245
      %p252 = scmp.eq.s32.totalorder %s41, 1
      %p253 = por %p251, %p252
      %p254 = scmp.ne.s32.totalorder %s246, %s249
      %p255 = scmp.eq.s32.totalorder %s41, 0
      %p256 = por %p254, %p255
      %p257 = scmp.ne.s32.totalorder %s246, %s249
      %p258 = scmp.eq.s32.totalorder %s46, 1
      %p259 = por %p257, %p258
      %p260 = scmp.ne.s32.totalorder %s249, %s250
      %p261 = scmp.eq.s32.totalorder %s46, 0
      %p262 = por %p260, %p261
      %p263 = scmp.ne.s32.totalorder %s249, %s250
      %p264 = scmp.eq.s32.totalorder %s47, 1
      %p265 = por %p263, %p264
      %p267 = scmp.ne.s32.totalorder %s250, %s266
      %p268 = scmp.eq.s32.totalorder %s47, 0
      %p269 = por %p267, %p268
      %s270 = ssub.s32 %s49, %s56
      %p271 = scmp.eq.s32.totalorder %s270, 0
      %s273 = sadd.s32 %s272, 1
      %s274 = scalar_select %p271, %s272, %s273
      %p277 = pneg %p271
      %p278 = scmp.eq.s32.totalorder %s41, 1
      %p279 = por %p277, %p278
      %p280 = scmp.ne.s32.totalorder %s272, %s275
      %p281 = scmp.eq.s32.totalorder %s41, 0
      %p282 = por %p280, %p281
      %p283 = scmp.ne.s32.totalorder %s272, %s275
      %p284 = scmp.eq.s32.totalorder %s46, 1
      %p285 = por %p283, %p284
      %p286 = scmp.ne.s32.totalorder %s275, %s276
      %p287 = scmp.eq.s32.totalorder %s46, 0
      %p288 = por %p286, %p287
      %p289 = scmp.ne.s32.totalorder %s275, %s276
      %p290 = scmp.eq.s32.totalorder %s47, 1
      %p291 = por %p289, %p290
      %p293 = scmp.ne.s32.totalorder %s276, %s292
      %p294 = scmp.eq.s32.totalorder %s47, 0
      %p295 = por %p293, %p294
      %s296 = ssub.s32 %s49, %s56
      %p297 = scmp.eq.s32.totalorder %s296, 0
      %s299 = sadd.s32 %s298, 1
      %s300 = scalar_select %p297, %s298, %s299
      %p303 = pneg %p297
      %p304 = scmp.eq.s32.totalorder %s41, 1
      %p305 = por %p303, %p304
      %p306 = scmp.ne.s32.totalorder %s298, %s301
      %p307 = scmp.eq.s32.totalorder %s41, 0
      %p308 = por %p306, %p307
      %p309 = scmp.ne.s32.totalorder %s298, %s301
      %p310 = scmp.eq.s32.totalorder %s46, 1
      %p311 = por %p309, %p310
      %p312 = scmp.ne.s32.totalorder %s301, %s302
      %p313 = scmp.eq.s32.totalorder %s46, 0
      %p314 = por %p312, %p313
      %p315 = scmp.ne.s32.totalorder %s301, %s302
      %p316 = scmp.eq.s32.totalorder %s47, 1
      %p317 = por %p315, %p316
      %p319 = scmp.ne.s32.totalorder %s302, %s318
      %p320 = scmp.eq.s32.totalorder %s47, 0
      %p321 = por %p319, %p320
      %s322 = ssub.s32 %s49, %s56
      %p323 = scmp.eq.s32.totalorder %s322, 0
      %s325 = sadd.s32 %s324, 1
      %s326 = scalar_select %p323, %s324, %s325
      %p329 = pneg %p323
      %p330 = scmp.eq.s32.totalorder %s41, 1
      %p331 = por %p329, %p330
      %p332 = scmp.ne.s32.totalorder %s324, %s327
      %p333 = scmp.eq.s32.totalorder %s41, 0
      %p334 = por %p332, %p333
      %p335 = scmp.ne.s32.totalorder %s324, %s327
      %p336 = scmp.eq.s32.totalorder %s46, 1
      %p337 = por %p335, %p336
      %p338 = scmp.ne.s32.totalorder %s327, %s328
      %p339 = scmp.eq.s32.totalorder %s46, 0
      %p340 = por %p338, %p339
      %p341 = scmp.ne.s32.totalorder %s327, %s328
      %p342 = scmp.eq.s32.totalorder %s47, 1
      %p343 = por %p341, %p342
      %p345 = scmp.ne.s32.totalorder %s328, %s344
      %p346 = scmp.eq.s32.totalorder %s47, 0
      %p347 = por %p345, %p346
      %s348 = ssub.s32 %s49, %s56
      %p349 = scmp.eq.s32.totalorder %s348, 0
      %s351 = sadd.s32 %s350, 1
      %s352 = scalar_select %p349, %s350, %s351
      %p355 = pneg %p349
      %p356 = scmp.eq.s32.totalorder %s41, 1
      %p357 = por %p355, %p356
      %p358 = scmp.ne.s32.totalorder %s350, %s353
      %p359 = scmp.eq.s32.totalorder %s41, 0
      %p360 = por %p358, %p359
      %p361 = scmp.ne.s32.totalorder %s350, %s353
      %p362 = scmp.eq.s32.totalorder %s46, 1
      %p363 = por %p361, %p362
      %p364 = scmp.ne.s32.totalorder %s353, %s354
      %p365 = scmp.eq.s32.totalorder %s46, 0
      %p366 = por %p364, %p365
      %p367 = scmp.ne.s32.totalorder %s353, %s354
      %p368 = scmp.eq.s32.totalorder %s47, 1
      %p369 = por %p367, %p368
      %p371 = scmp.ne.s32.totalorder %s354, %s370
      %p372 = scmp.eq.s32.totalorder %s47, 0
      %p373 = por %p371, %p372
      %s374 = ssub.s32 %s49, %s56
      %p375 = scmp.eq.s32.totalorder %s374, 0
      %s377 = sadd.s32 %s376, 1
      %s378 = scalar_select %p375, %s376, %s377
      %p381 = pneg %p375
      %p382 = scmp.eq.s32.totalorder %s41, 1
      %p383 = por %p381, %p382
      %p384 = scmp.ne.s32.totalorder %s376, %s379
      %p385 = scmp.eq.s32.totalorder %s41, 0
      %p386 = por %p384, %p385
      %p387 = scmp.ne.s32.totalorder %s376, %s379
      %p388 = scmp.eq.s32.totalorder %s46, 1
      %p389 = por %p387, %p388
      %p390 = scmp.ne.s32.totalorder %s379, %s380
      %p391 = scmp.eq.s32.totalorder %s46, 0
      %p392 = por %p390, %p391
      %p393 = scmp.ne.s32.totalorder %s379, %s380
      %p394 = scmp.eq.s32.totalorder %s47, 1
      %p395 = por %p393, %p394
      %p397 = scmp.ne.s32.totalorder %s380, %s396
      %p398 = scmp.eq.s32.totalorder %s47, 0
      %p399 = por %p397, %p398
      %s400 = ssub.s32 %s49, %s56
      %p401 = scmp.eq.s32.totalorder %s400, 0
      %s403 = sadd.s32 %s402, 1
      %s404 = scalar_select %p401, %s402, %s403
      %p407 = pneg %p401
      %p408 = scmp.eq.s32.totalorder %s41, 1
      %p409 = por %p407, %p408
      %p410 = scmp.ne.s32.totalorder %s402, %s405
      %p411 = scmp.eq.s32.totalorder %s41, 0
      %p412 = por %p410, %p411
      %p413 = scmp.ne.s32.totalorder %s402, %s405
      %p414 = scmp.eq.s32.totalorder %s46, 1
      %p415 = por %p413, %p414
      %p416 = scmp.ne.s32.totalorder %s405, %s406
      %p417 = scmp.eq.s32.totalorder %s46, 0
      %p418 = por %p416, %p417
      %p419 = scmp.ne.s32.totalorder %s405, %s406
      %p420 = scmp.eq.s32.totalorder %s47, 1
      %p421 = por %p419, %p420
      %p423 = scmp.ne.s32.totalorder %s406, %s422
      %p424 = scmp.eq.s32.totalorder %s47, 0
      %p425 = por %p423, %p424
      %s426 = ssub.s32 %s49, %s56
      %p427 = scmp.eq.s32.totalorder %s426, 0
      %s429 = sadd.s32 %s428, 1
      %s430 = scalar_select %p427, %s428, %s429
      %p433 = pneg %p427
      %p434 = scmp.eq.s32.totalorder %s41, 1
      %p435 = por %p433, %p434
      %p436 = scmp.ne.s32.totalorder %s428, %s431
      %p437 = scmp.eq.s32.totalorder %s41, 0
      %p438 = por %p436, %p437
      %p439 = scmp.ne.s32.totalorder %s428, %s431
      %p440 = scmp.eq.s32.totalorder %s46, 1
      %p441 = por %p439, %p440
      %p442 = scmp.ne.s32.totalorder %s431, %s432
      %p443 = scmp.eq.s32.totalorder %s46, 0
      %p444 = por %p442, %p443
      %p445 = scmp.ne.s32.totalorder %s431, %s432
      %p446 = scmp.eq.s32.totalorder %s47, 1
      %p447 = por %p445, %p446
      %p449 = scmp.ne.s32.totalorder %s432, %s448
      %p450 = scmp.eq.s32.totalorder %s47, 0
      %p451 = por %p449, %p450
      %s452 = ssub.s32 %s49, %s56
      %p453 = scmp.eq.s32.totalorder %s452, 0
      %s455 = sadd.s32 %s454, 1
      %s456 = scalar_select %p453, %s454, %s455
      %p459 = pneg %p453
      %p460 = scmp.eq.s32.totalorder %s41, 1
      %p461 = por %p459, %p460
      %p462 = scmp.ne.s32.totalorder %s454, %s457
      %p463 = scmp.eq.s32.totalorder %s41, 0
      %p464 = por %p462, %p463
      %p465 = scmp.ne.s32.totalorder %s454, %s457
      %p466 = scmp.eq.s32.totalorder %s46, 1
      %p467 = por %p465, %p466
      %p468 = scmp.ne.s32.totalorder %s457, %s458
      %p469 = scmp.eq.s32.totalorder %s46, 0
      %p470 = por %p468, %p469
      %p471 = scmp.ne.s32.totalorder %s457, %s458
      %p472 = scmp.eq.s32.totalorder %s47, 1
      %p473 = por %p471, %p472
      %p475 = scmp.ne.s32.totalorder %s458, %s474
      %p476 = scmp.eq.s32.totalorder %s47, 0
      %p477 = por %p475, %p476
      %s478 = ssub.s32 %s49, %s56
      %p479 = scmp.eq.s32.totalorder %s478, 0
      %s481 = sadd.s32 %s480, 1
      %s482 = scalar_select %p479, %s480, %s481
      %p485 = pneg %p479
      %p486 = scmp.eq.s32.totalorder %s41, 1
      %p487 = por %p485, %p486
      %p488 = scmp.ne.s32.totalorder %s480, %s483
      %p489 = scmp.eq.s32.totalorder %s41, 0
      %p490 = por %p488, %p489
      %p491 = scmp.ne.s32.totalorder %s480, %s483
      %p492 = scmp.eq.s32.totalorder %s46, 1
      %p493 = por %p491, %p492
      %p494 = scmp.ne.s32.totalorder %s483, %s484
      %p495 = scmp.eq.s32.totalorder %s46, 0
      %p496 = por %p494, %p495
      %p497 = scmp.ne.s32.totalorder %s483, %s484
      %p498 = scmp.eq.s32.totalorder %s47, 1
      %p499 = por %p497, %p498
      %p501 = scmp.ne.s32.totalorder %s484, %s500
      %p502 = scmp.eq.s32.totalorder %s47, 0
      %p503 = por %p501, %p502
      %s504 = ssub.s32 %s49, %s56
      %p505 = scmp.eq.s32.totalorder %s504, 0
      %s507 = sadd.s32 %s506, 1
      %s508 = scalar_select %p505, %s506, %s507
      %p511 = pneg %p505
      %p512 = scmp.eq.s32.totalorder %s41, 1
      %p513 = por %p511, %p512
      %p514 = scmp.ne.s32.totalorder %s506, %s509
      %p515 = scmp.eq.s32.totalorder %s41, 0
      %p516 = por %p514, %p515
      %p517 = scmp.ne.s32.totalorder %s506, %s509
      %p518 = scmp.eq.s32.totalorder %s46, 1
      %p519 = por %p517, %p518
      %p520 = scmp.ne.s32.totalorder %s509, %s510
      %p521 = scmp.eq.s32.totalorder %s46, 0
      %p522 = por %p520, %p521
      %p523 = scmp.ne.s32.totalorder %s509, %s510
      %p524 = scmp.eq.s32.totalorder %s47, 1
      %p525 = por %p523, %p524
      %p527 = scmp.ne.s32.totalorder %s510, %s526
      %p528 = scmp.eq.s32.totalorder %s47, 0
      %p529 = por %p527, %p528
      %s530 = ssub.s32 %s49, %s56
      %p531 = scmp.eq.s32.totalorder %s530, 0
      %s533 = sadd.s32 %s532, 1
      %s534 = scalar_select %p531, %s532, %s533
      %p537 = pneg %p531
      %p538 = scmp.eq.s32.totalorder %s41, 1
      %p539 = por %p537, %p538
      %p540 = scmp.ne.s32.totalorder %s532, %s535
      %p541 = scmp.eq.s32.totalorder %s41, 0
      %p542 = por %p540, %p541
      %p543 = scmp.ne.s32.totalorder %s532, %s535
      %p544 = scmp.eq.s32.totalorder %s46, 1
      %p545 = por %p543, %p544
      %p546 = scmp.ne.s32.totalorder %s535, %s536
      %p547 = scmp.eq.s32.totalorder %s46, 0
      %p548 = por %p546, %p547
      %p549 = scmp.ne.s32.totalorder %s535, %s536
      %p550 = scmp.eq.s32.totalorder %s47, 1
      %p551 = por %p549, %p550
      %p553 = scmp.ne.s32.totalorder %s536, %s552
      %p554 = scmp.eq.s32.totalorder %s47, 0
      %p555 = por %p553, %p554
      %s556 = ssub.s32 %s49, %s56
      %p557 = scmp.eq.s32.totalorder %s556, 0
      %s559 = sadd.s32 %s558, 1
      %s560 = scalar_select %p557, %s558, %s559
      %p563 = pneg %p557
      %p564 = scmp.eq.s32.totalorder %s41, 1
      %p565 = por %p563, %p564
      %p566 = scmp.ne.s32.totalorder %s558, %s561
      %p567 = scmp.eq.s32.totalorder %s41, 0
      %p568 = por %p566, %p567
      %p569 = scmp.ne.s32.totalorder %s558, %s561
      %p570 = scmp.eq.s32.totalorder %s46, 1
      %p571 = por %p569, %p570
      %p572 = scmp.ne.s32.totalorder %s561, %s562
      %p573 = scmp.eq.s32.totalorder %s46, 0
      %p574 = por %p572, %p573
      %p575 = scmp.ne.s32.totalorder %s561, %s562
      %p576 = scmp.eq.s32.totalorder %s47, 1
      %p577 = por %p575, %p576
      %p579 = scmp.ne.s32.totalorder %s562, %s578
      %p580 = scmp.eq.s32.totalorder %s47, 0
      %p581 = por %p579, %p580
      %s582 = ssub.s32 %s48, %s60
      %p583 = scmp.eq.s32.totalorder %s582, 0
      %s585 = sadd.s32 %s584, 1
      %s586 = scalar_select %p583, %s584, %s585
      %p589 = pneg %p583
      %p590 = scmp.eq.s32.totalorder %s41, 1
      %p591 = por %p589, %p590
      %p592 = scmp.ne.s32.totalorder %s584, %s587
      %p593 = scmp.eq.s32.totalorder %s41, 0
      %p594 = por %p592, %p593
      %p595 = scmp.ne.s32.totalorder %s584, %s587
      %p596 = scmp.eq.s32.totalorder %s46, 1
      %p597 = por %p595, %p596
      %p598 = scmp.ne.s32.totalorder %s587, %s588
      %p599 = scmp.eq.s32.totalorder %s46, 0
      %p600 = por %p598, %p599
      %p601 = scmp.ne.s32.totalorder %s587, %s588
      %p602 = scmp.eq.s32.totalorder %s47, 1
      %p603 = por %p601, %p602
      %p605 = scmp.ne.s32.totalorder %s588, %s604
      %p606 = scmp.eq.s32.totalorder %s47, 0
      %p607 = por %p605, %p606
      %p608 = scmp.le.s32.totalorder 1, %s41
      %p609 = scmp.lt.s32.totalorder %s41, 3
      %p610 = pnand %p608, %p609
      %p611 = pneg %p610
      // Predicated region
      $region9: #{tpu_custom_call.1} parent=5 // pred_check
        _
      $region10: #{tpu_custom_call.1} parent=5 // pred_check_branch
        %613 = sbr.rel (%p610) target = $region12
      $region11: #{tpu_custom_call.1} parent=5 // pred_region
        %s614 = ssub.s32 %s41, 1
        // Predicated region
        $region13: #{tpu_custom_call.1} parent=11 // pred_check
          %p615 = pneg %p79
        $region14: #{tpu_custom_call.1} parent=11 // pred_check_branch
          %617 = sbr.rel (%p615) target = $region16
        $region15: #{tpu_custom_call.1} parent=11 // pred_region
          %s618 = smul.u32 2, %s50
          %s620 = ssub.s32 256, 256
          %621 = vsyncadd [#allocation4], %s620
          %s622 = smul.addr %s618, 128
          %s623 = scalar_lea.hbm %s0, %s622
          %s624 = sshll.u32 [#allocation3], 4
          %s625 = int_to_ptr.vmem [resolvable:$true] %s624
          %630 = dma.hbm_to_vmem [thread:$0]  %s623, 256, %s625, [#allocation4], 128, 128, 8
        $region16: #{tpu_custom_call.1} parent=11 // pred_fallthru
          _
        // Predicated region
        $region17: #{tpu_custom_call.1} parent=11 // pred_check
          %p631 = pneg %p105
        $region18: #{tpu_custom_call.1} parent=11 // pred_check_branch
          %633 = sbr.rel (%p631) target = $region20
        $region19: #{tpu_custom_call.1} parent=11 // pred_region
          %s634 = smul.u32 2, %s50
          %s636 = ssub.s32 512, 512
          %637 = vsyncadd [#allocation7], %s636
          %s638 = smul.addr %s634, 2
          %s639 = smul.addr %s638, 128
          %s640 = scalar_lea.hbm %s1, %s639
          %s641 = sshll.u32 [#allocation6], 4
          %s642 = int_to_ptr.vmem [resolvable:$true] %s641
          %647 = dma.hbm_to_vmem [thread:$0]  %s640, 512, %s642, [#allocation7], 128, 128, 8
        $region20: #{tpu_custom_call.1} parent=11 // pred_fallthru
          _
        // Predicated region
        $region21: #{tpu_custom_call.1} parent=11 // pred_check
          %p648 = pneg %p126
        $region22: #{tpu_custom_call.1} parent=11 // pred_check_branch
          %650 = sbr.rel (%p648) target = $region24
        $region23: #{tpu_custom_call.1} parent=11 // pred_region
          %s652 = ssub.s32 256, 256
          %653 = vsyncadd [#allocation7], %s652
          %s654 = sshll.u32 [#allocation8], 4
          %s655 = int_to_ptr.vmem [resolvable:$true] %s654
          %660 = dma.hbm_to_vmem [thread:$0]  %s2, 256, %s655, [#allocation7], 64, 64, 4
        $region24: #{tpu_custom_call.1} parent=11 // pred_fallthru
          _
        // Predicated region
        $region25: #{tpu_custom_call.1} parent=11 // pred_check
          %p661 = pneg %p147
        $region26: #{tpu_custom_call.1} parent=11 // pred_check_branch
          %663 = sbr.rel (%p661) target = $region28
        $region27: #{tpu_custom_call.1} parent=11 // pred_region
          %s665 = ssub.s32 16, 16
          %666 = vsyncadd [#allocation10], %s665
          %s668 = sshll.u32 [#allocation9], 4
          %s669 = int_to_ptr.vmem [resolvable:$true] %s668
          %671 = dma.hbm_to_vmem [thread:$0]  %s3, 16, %s669, [#allocation10]
        $region28: #{tpu_custom_call.1} parent=11 // pred_fallthru
          _
        // Predicated region
        $region29: #{tpu_custom_call.1} parent=11 // pred_check
          %p672 = pneg %p168
        $region30: #{tpu_custom_call.1} parent=11 // pred_check_branch
          %674 = sbr.rel (%p672) target = $region32
        $region31: #{tpu_custom_call.1} parent=11 // pred_region
          %s676 = ssub.s32 16, 16
          %677 = vsyncadd [#allocation10], %s676
          %s679 = sshll.u32 [#allocation11], 4
          %s680 = int_to_ptr.vmem [resolvable:$true] %s679
          %682 = dma.hbm_to_vmem [thread:$0]  %s4, 16, %s680, [#allocation10]
        $region32: #{tpu_custom_call.1} parent=11 // pred_fallthru
          _
        // Predicated region
        $region33: #{tpu_custom_call.1} parent=11 // pred_check
          %p683 = pneg %p189
        $region34: #{tpu_custom_call.1} parent=11 // pred_check_branch
          %685 = sbr.rel (%p683) target = $region36
        $region35: #{tpu_custom_call.1} parent=11 // pred_region
          %s687 = ssub.s32 16, 16
          %688 = vsyncadd [#allocation13], %s687
          %s690 = sshll.u32 [#allocation12], 4
          %s691 = int_to_ptr.vmem [resolvable:$true] %s690
          %693 = dma.hbm_to_vmem [thread:$0]  %s5, 16, %s691, [#allocation13]
        $region36: #{tpu_custom_call.1} parent=11 // pred_fallthru
          _
        // Predicated region
        $region37: #{tpu_custom_call.1} parent=11 // pred_check
          %p694 = pneg %p210
        $region38: #{tpu_custom_call.1} parent=11 // pred_check_branch
          %696 = sbr.rel (%p694) target = $region40
        $region39: #{tpu_custom_call.1} parent=11 // pred_region
          %s698 = ssub.s32 16, 16
          %699 = vsyncadd [#allocation13], %s698
          %s701 = sshll.u32 [#allocation14], 4
          %s702 = int_to_ptr.vmem [resolvable:$true] %s701
          %704 = dma.hbm_to_vmem [thread:$0]  %s6, 16, %s702, [#allocation13]
        $region40: #{tpu_custom_call.1} parent=11 // pred_fallthru
          _
      $region12: #{tpu_custom_call.1} parent=5 // pred_fallthru
        _
      %p705 = scmp.lt.s32.totalorder %s41, 2
      // Predicated region
      $region41: #{tpu_custom_call.1} parent=5 // pred_check
        %p706 = pneg %p705
      $region42: #{tpu_custom_call.1} parent=5 // pred_check_branch
        %708 = sbr.rel (%p706) target = $region44
      $region43: #{tpu_custom_call.1} parent=5 // pred_region
        // Predicated region
        $region45: #{tpu_custom_call.1} parent=43 // pred_check
          %p709 = pneg %p230
        $region46: #{tpu_custom_call.1} parent=43 // pred_check_branch
          %711 = sbr.rel (%p709) target = $region48
        $region47: #{tpu_custom_call.1} parent=43 // pred_region
          %p712 = scmp.lt.s32.totalorder %s49, 1
          %s713 = scalar_select %p712, %s49, 1
          %s714 = scalar_lea.vmem %s7, %s713
        $region48: #{tpu_custom_call.1} parent=43 // pred_fallthru
          _
        // Predicated region
        $region49: #{tpu_custom_call.1} parent=43 // pred_check
          %p715 = pneg %p256
        $region50: #{tpu_custom_call.1} parent=43 // pred_check_branch
          %717 = sbr.rel (%p715) target = $region52
        $region51: #{tpu_custom_call.1} parent=43 // pred_region
          %p718 = scmp.lt.s32.totalorder %s49, 1
          %s719 = scalar_select %p718, %s49, 1
          %s720 = scalar_lea.vmem %s8, %s719
        $region52: #{tpu_custom_call.1} parent=43 // pred_fallthru
          _
        // Predicated region
        $region53: #{tpu_custom_call.1} parent=43 // pred_check
          %p721 = pneg %p282
        $region54: #{tpu_custom_call.1} parent=43 // pred_check_branch
          %723 = sbr.rel (%p721) target = $region56
        $region55: #{tpu_custom_call.1} parent=43 // pred_region
          %s724 = sand.u32 %s41, 1
          %s725 = scalar_lea.sflag [#allocation16], %s724
          %s726 = sand.u32 %s272, 1
          %s727 = smul.addr %s726, 128
          %s728 = scalar_lea.vmem [#allocation15], %s727
          %s730 = ssub.s32 2048, 2048
          %731 = vsyncadd %s725, %s730
          %s732 = smul.addr %s49, 32
          %s733 = smul.addr %s732, 64
          %s734 = scalar_lea.hbm %s9, %s733
          %s735 = sshll.u32 %s728, 4
          %s736 = int_to_ptr.vmem [resolvable:$true] %s735
          %741 = dma.hbm_to_vmem [thread:$0]  %s734, 2048, %s736, %s725, 128, 128, 8
        $region56: #{tpu_custom_call.1} parent=43 // pred_fallthru
          _
        // Predicated region
        $region57: #{tpu_custom_call.1} parent=43 // pred_check
          %p742 = pneg %p308
        $region58: #{tpu_custom_call.1} parent=43 // pred_check_branch
          %744 = sbr.rel (%p742) target = $region60
        $region59: #{tpu_custom_call.1} parent=43 // pred_region
          %p745 = scmp.lt.s32.totalorder %s49, 1
          %s746 = scalar_select %p745, %s49, 1
          %s747 = smul.addr %s746, 2
          %s748 = scalar_lea.vmem %s10, %s747
        $region60: #{tpu_custom_call.1} parent=43 // pred_fallthru
          _
        // Predicated region
        $region61: #{tpu_custom_call.1} parent=43 // pred_check
          %p749 = pneg %p334
        $region62: #{tpu_custom_call.1} parent=43 // pred_check_branch
          %751 = sbr.rel (%p749) target = $region64
        $region63: #{tpu_custom_call.1} parent=43 // pred_region
          %s752 = sand.u32 %s41, 1
          %s753 = scalar_lea.sflag [#allocation16], %s752
          %s754 = sand.u32 %s324, 1
          %s755 = smul.addr %s754, 64
          %s756 = scalar_lea.vmem [#allocation17], %s755
          %s758 = ssub.s32 1024, 1024
          %759 = vsyncadd %s753, %s758
          %s760 = smul.addr %s49, 16
          %s761 = smul.addr %s760, 64
          %s762 = scalar_lea.hbm %s11, %s761
          %s763 = sshll.u32 %s756, 4
          %s764 = int_to_ptr.vmem [resolvable:$true] %s763
          %769 = dma.hbm_to_vmem [thread:$0]  %s762, 1024, %s764, %s753, 64, 64, 4
        $region64: #{tpu_custom_call.1} parent=43 // pred_fallthru
          _
        // Predicated region
        $region65: #{tpu_custom_call.1} parent=43 // pred_check
          %p770 = pneg %p360
        $region66: #{tpu_custom_call.1} parent=43 // pred_check_branch
          %772 = sbr.rel (%p770) target = $region68
        $region67: #{tpu_custom_call.1} parent=43 // pred_region
          %p773 = scmp.lt.s32.totalorder %s49, 1
          %s774 = scalar_select %p773, %s49, 1
          %s775 = scalar_lea.vmem %s12, %s774
        $region68: #{tpu_custom_call.1} parent=43 // pred_fallthru
          _
        // Predicated region
        $region69: #{tpu_custom_call.1} parent=43 // pred_check
          %p776 = pneg %p386
        $region70: #{tpu_custom_call.1} parent=43 // pred_check_branch
          %778 = sbr.rel (%p776) target = $region72
        $region71: #{tpu_custom_call.1} parent=43 // pred_region
          %s779 = sand.u32 %s41, 1
          %s780 = scalar_lea.sflag [#allocation19], %s779
          %s781 = sand.u32 %s376, 1
          %s782 = smul.addr %s781, 64
          %s783 = scalar_lea.vmem [#allocation18], %s782
          %s785 = ssub.s32 1024, 1024
          %786 = vsyncadd %s780, %s785
          %s787 = smul.addr %s49, 16
          %s788 = smul.addr %s787, 64
          %s789 = scalar_lea.hbm %s13, %s788
          %s790 = sshll.u32 %s783, 4
          %s791 = int_to_ptr.vmem [resolvable:$true] %s790
          %796 = dma.hbm_to_vmem [thread:$0]  %s789, 1024, %s791, %s780, 64, 64, 4
        $region72: #{tpu_custom_call.1} parent=43 // pred_fallthru
          _
        // Predicated region
        $region73: #{tpu_custom_call.1} parent=43 // pred_check
          %p797 = pneg %p412
        $region74: #{tpu_custom_call.1} parent=43 // pred_check_branch
          %799 = sbr.rel (%p797) target = $region76
        $region75: #{tpu_custom_call.1} parent=43 // pred_region
          %p800 = scmp.lt.s32.totalorder %s49, 1
          %s801 = scalar_select %p800, %s49, 1
          %s802 = scalar_lea.vmem %s14, %s801
        $region76: #{tpu_custom_call.1} parent=43 // pred_fallthru
          _
        // Predicated region
        $region77: #{tpu_custom_call.1} parent=43 // pred_check
          %p803 = pneg %p438
        $region78: #{tpu_custom_call.1} parent=43 // pred_check_branch
          %805 = sbr.rel (%p803) target = $region80
        $region79: #{tpu_custom_call.1} parent=43 // pred_region
          %p806 = scmp.lt.s32.totalorder %s49, 1
          %s807 = scalar_select %p806, %s49, 1
          %s808 = scalar_lea.vmem %s15, %s807
        $region80: #{tpu_custom_call.1} parent=43 // pred_fallthru
          _
        // Predicated region
        $region81: #{tpu_custom_call.1} parent=43 // pred_check
          %p809 = pneg %p464
        $region82: #{tpu_custom_call.1} parent=43 // pred_check_branch
          %811 = sbr.rel (%p809) target = $region84
        $region83: #{tpu_custom_call.1} parent=43 // pred_region
          %p812 = scmp.lt.s32.totalorder %s49, 1
          %s813 = scalar_select %p812, %s49, 1
          %s814 = scalar_lea.vmem %s16, %s813
        $region84: #{tpu_custom_call.1} parent=43 // pred_fallthru
          _
        // Predicated region
        $region85: #{tpu_custom_call.1} parent=43 // pred_check
          %p815 = pneg %p490
        $region86: #{tpu_custom_call.1} parent=43 // pred_check_branch
          %817 = sbr.rel (%p815) target = $region88
        $region87: #{tpu_custom_call.1} parent=43 // pred_region
          %s818 = sand.u32 %s41, 1
          %s819 = scalar_lea.sflag [#allocation19], %s818
          %s820 = sand.u32 %s480, 1
          %s821 = smul.addr %s820, 128
          %s822 = scalar_lea.vmem [#allocation20], %s821
          %s824 = ssub.s32 2048, 2048
          %825 = vsyncadd %s819, %s824
          %s826 = smul.addr %s49, 32
          %s827 = smul.addr %s826, 64
          %s828 = scalar_lea.hbm %s17, %s827
          %s829 = sshll.u32 %s822, 4
          %s830 = int_to_ptr.vmem [resolvable:$true] %s829
          %835 = dma.hbm_to_vmem [thread:$0]  %s828, 2048, %s830, %s819, 128, 128, 8
        $region88: #{tpu_custom_call.1} parent=43 // pred_fallthru
          _
        // Predicated region
        $region89: #{tpu_custom_call.1} parent=43 // pred_check
          %p836 = pneg %p516
        $region90: #{tpu_custom_call.1} parent=43 // pred_check_branch
          %838 = sbr.rel (%p836) target = $region92
        $region91: #{tpu_custom_call.1} parent=43 // pred_region
          %p839 = scmp.lt.s32.totalorder %s49, 1
          %s840 = scalar_select %p839, %s49, 1
          %s841 = smul.addr %s840, 2
          %s842 = scalar_lea.vmem %s18, %s841
        $region92: #{tpu_custom_call.1} parent=43 // pred_fallthru
          _
        // Predicated region
        $region93: #{tpu_custom_call.1} parent=43 // pred_check
          %p843 = pneg %p542
        $region94: #{tpu_custom_call.1} parent=43 // pred_check_branch
          %845 = sbr.rel (%p843) target = $region96
        $region95: #{tpu_custom_call.1} parent=43 // pred_region
          %s846 = sand.u32 %s532, 1
          %s847 = scalar_lea.sflag [#allocation22], %s846
          %s848 = sand.u32 %s532, 1
          %s849 = smul.addr %s848, 128
          %s850 = scalar_lea.vmem [#allocation21], %s849
          %s852 = ssub.s32 2048, 2048
          %853 = vsyncadd %s847, %s852
          %s854 = smul.addr %s49, 32
          %s855 = smul.addr %s854, 64
          %s856 = scalar_lea.hbm %s19, %s855
          %s857 = sshll.u32 %s850, 4
          %s858 = int_to_ptr.vmem [resolvable:$true] %s857
          %863 = dma.hbm_to_vmem [thread:$0]  %s856, 2048, %s858, %s847, 64, 64, 4
        $region96: #{tpu_custom_call.1} parent=43 // pred_fallthru
          _
        // Predicated region
        $region97: #{tpu_custom_call.1} parent=43 // pred_check
          %p864 = pneg %p568
        $region98: #{tpu_custom_call.1} parent=43 // pred_check_branch
          %866 = sbr.rel (%p864) target = $region100
        $region99: #{tpu_custom_call.1} parent=43 // pred_region
          %p867 = scmp.lt.s32.totalorder %s49, 1
          %s868 = scalar_select %p867, %s49, 1
          %s869 = scalar_lea.vmem %s20, %s868
        $region100: #{tpu_custom_call.1} parent=43 // pred_fallthru
          _
      $region44: #{tpu_custom_call.1} parent=5 // pred_fallthru
        _
      %p870 = scmp.le.s32.totalorder 1, %s41
      %p871 = scmp.lt.s32.totalorder %s41, 3
      %p872 = pnand %p870, %p871
      %p873 = pneg %p872
      // Predicated region
      $region101: #{tpu_custom_call.1} parent=5 // pred_check
        _
      $region102: #{tpu_custom_call.1} parent=5 // pred_check_branch
        %875 = sbr.rel (%p872) target = $region104
      $region103: #{tpu_custom_call.1} parent=5 // pred_region
        %s876 = ssub.s32 %s41, 1
        // Predicated region
        $region105: #{tpu_custom_call.1} parent=103 // pred_check
          %p877 = pneg %p79
        $region106: #{tpu_custom_call.1} parent=103 // pred_check_branch
          %879 = sbr.rel (%p877) target = $region108
        $region107: #{tpu_custom_call.1} parent=103 // pred_region
          %880 = dma.done [#allocation4], 256
        $region108: #{tpu_custom_call.1} parent=103 // pred_fallthru
          _
        // Predicated region
        $region109: #{tpu_custom_call.1} parent=103 // pred_check
          %p881 = pneg %p105
        $region110: #{tpu_custom_call.1} parent=103 // pred_check_branch
          %883 = sbr.rel (%p881) target = $region112
        $region111: #{tpu_custom_call.1} parent=103 // pred_region
          %884 = dma.done [#allocation7], 512
        $region112: #{tpu_custom_call.1} parent=103 // pred_fallthru
          _
        // Predicated region
        $region113: #{tpu_custom_call.1} parent=103 // pred_check
          %p885 = pneg %p126
        $region114: #{tpu_custom_call.1} parent=103 // pred_check_branch
          %887 = sbr.rel (%p885) target = $region116
        $region115: #{tpu_custom_call.1} parent=103 // pred_region
          %888 = dma.done [#allocation7], 256
        $region116: #{tpu_custom_call.1} parent=103 // pred_fallthru
          _
        // Predicated region
        $region117: #{tpu_custom_call.1} parent=103 // pred_check
          %p889 = pneg %p147
        $region118: #{tpu_custom_call.1} parent=103 // pred_check_branch
          %891 = sbr.rel (%p889) target = $region120
        $region119: #{tpu_custom_call.1} parent=103 // pred_region
          %892 = dma.done [#allocation10], 16
        $region120: #{tpu_custom_call.1} parent=103 // pred_fallthru
          _
        // Predicated region
        $region121: #{tpu_custom_call.1} parent=103 // pred_check
          %p893 = pneg %p168
        $region122: #{tpu_custom_call.1} parent=103 // pred_check_branch
          %895 = sbr.rel (%p893) target = $region124
        $region123: #{tpu_custom_call.1} parent=103 // pred_region
          %896 = dma.done [#allocation10], 16
        $region124: #{tpu_custom_call.1} parent=103 // pred_fallthru
          _
        // Predicated region
        $region125: #{tpu_custom_call.1} parent=103 // pred_check
          %p897 = pneg %p189
        $region126: #{tpu_custom_call.1} parent=103 // pred_check_branch
          %899 = sbr.rel (%p897) target = $region128
        $region127: #{tpu_custom_call.1} parent=103 // pred_region
          %900 = dma.done [#allocation13], 16
        $region128: #{tpu_custom_call.1} parent=103 // pred_fallthru
          _
        // Predicated region
        $region129: #{tpu_custom_call.1} parent=103 // pred_check
          %p901 = pneg %p210
        $region130: #{tpu_custom_call.1} parent=103 // pred_check_branch
          %903 = sbr.rel (%p901) target = $region132
        $region131: #{tpu_custom_call.1} parent=103 // pred_region
          %904 = dma.done [#allocation13], 16
        $region132: #{tpu_custom_call.1} parent=103 // pred_fallthru
          _
        %s905 = sand.u32 %s46, 1
        %s906 = scalar_lea.sflag [#allocation16], %s905
        %s907 = sand.u32 %s275, 1
        %s908 = smul.addr %s907, 128
        %s909 = scalar_lea.vmem [#allocation15], %s908
        // Predicated region
        $region133: #{tpu_custom_call.1} parent=103 // pred_check
          %p910 = pneg %p288
        $region134: #{tpu_custom_call.1} parent=103 // pred_check_branch
          %912 = sbr.rel (%p910) target = $region136
        $region135: #{tpu_custom_call.1} parent=103 // pred_region
          %913 = dma.done %s906, 2048
        $region136: #{tpu_custom_call.1} parent=103 // pred_fallthru
          _
        %s914 = sand.u32 %s46, 1
        %s915 = scalar_lea.sflag [#allocation16], %s914
        %s916 = sand.u32 %s327, 1
        %s917 = smul.addr %s916, 64
        %s918 = scalar_lea.vmem [#allocation17], %s917
        // Predicated region
        $region137: #{tpu_custom_call.1} parent=103 // pred_check
          %p919 = pneg %p340
        $region138: #{tpu_custom_call.1} parent=103 // pred_check_branch
          %921 = sbr.rel (%p919) target = $region140
        $region139: #{tpu_custom_call.1} parent=103 // pred_region
          %922 = dma.done %s915, 1024
        $region140: #{tpu_custom_call.1} parent=103 // pred_fallthru
          _
        %s923 = sand.u32 %s46, 1
        %s924 = scalar_lea.sflag [#allocation19], %s923
        %s925 = sand.u32 %s379, 1
        %s926 = smul.addr %s925, 64
        %s927 = scalar_lea.vmem [#allocation18], %s926
        // Predicated region
        $region141: #{tpu_custom_call.1} parent=103 // pred_check
          %p928 = pneg %p392
        $region142: #{tpu_custom_call.1} parent=103 // pred_check_branch
          %930 = sbr.rel (%p928) target = $region144
        $region143: #{tpu_custom_call.1} parent=103 // pred_region
          %931 = dma.done %s924, 1024
        $region144: #{tpu_custom_call.1} parent=103 // pred_fallthru
          _
        %s932 = sand.u32 %s46, 1
        %s933 = scalar_lea.sflag [#allocation19], %s932
        %s934 = sand.u32 %s483, 1
        %s935 = smul.addr %s934, 128
        %s936 = scalar_lea.vmem [#allocation20], %s935
        // Predicated region
        $region145: #{tpu_custom_call.1} parent=103 // pred_check
          %p937 = pneg %p496
        $region146: #{tpu_custom_call.1} parent=103 // pred_check_branch
          %939 = sbr.rel (%p937) target = $region148
        $region147: #{tpu_custom_call.1} parent=103 // pred_region
          %940 = dma.done %s933, 2048
        $region148: #{tpu_custom_call.1} parent=103 // pred_fallthru
          _
        %s941 = sand.u32 %s535, 1
        %s942 = scalar_lea.sflag [#allocation22], %s941
        %s943 = sand.u32 %s535, 1
        %s944 = smul.addr %s943, 128
        %s945 = scalar_lea.vmem [#allocation21], %s944
        // Predicated region
        $region149: #{tpu_custom_call.1} parent=103 // pred_check
          %p946 = pneg %p548
        $region150: #{tpu_custom_call.1} parent=103 // pred_check_branch
          %948 = sbr.rel (%p946) target = $region152
        $region151: #{tpu_custom_call.1} parent=103 // pred_region
          %949 = dma.done %s942, 2048
        $region152: #{tpu_custom_call.1} parent=103 // pred_fallthru
          _
        %p950 = pneg %p79
        %p951 = pneg %p76
        %p952 = pneg %p105
        %p953 = pneg %p102
        %p954 = pneg %p126
        %p955 = pneg %p123
        %p956 = pneg %p147
        %p957 = pneg %p144
        %p958 = pneg %p168
        %p959 = pneg %p165
        %p960 = pneg %p189
        %p961 = pneg %p186
        %p962 = pneg %p210
        %p963 = pneg %p207
        %p964 = scmp.lt.s32.totalorder %s51, 1
        %s965 = scalar_select %p964, %s51, 1
        %s966 = scalar_lea.vmem %s7, %s965
        %p967 = pneg %p236
        %p968 = pneg %p233
        %p969 = scmp.lt.s32.totalorder %s51, 1
        %s970 = scalar_select %p969, %s51, 1
        %s971 = scalar_lea.vmem %s8, %s970
        %p972 = pneg %p262
        %p973 = pneg %p259
        %s974 = sand.u32 %s46, 1
        %s975 = scalar_lea.sflag [#allocation16], %s974
        %s976 = sand.u32 %s275, 1
        %s977 = smul.addr %s976, 128
        %s978 = scalar_lea.vmem [#allocation15], %s977
        %p979 = pneg %p288
        %p980 = pneg %p285
        %p981 = scmp.lt.s32.totalorder %s51, 1
        %s982 = scalar_select %p981, %s51, 1
        %s983 = smul.addr %s982, 2
        %s984 = scalar_lea.vmem %s10, %s983
        %p985 = pneg %p314
        %p986 = pneg %p311
        %s987 = sand.u32 %s46, 1
        %s988 = scalar_lea.sflag [#allocation16], %s987
        %s989 = sand.u32 %s327, 1
        %s990 = smul.addr %s989, 64
        %s991 = scalar_lea.vmem [#allocation17], %s990
        %p992 = pneg %p340
        %p993 = pneg %p337
        %p994 = scmp.lt.s32.totalorder %s51, 1
        %s995 = scalar_select %p994, %s51, 1
        %s996 = scalar_lea.vmem %s12, %s995
        %p997 = pneg %p366
        %p998 = pneg %p363
        %s999 = sand.u32 %s46, 1
        %s1000 = scalar_lea.sflag [#allocation19], %s999
        %s1001 = sand.u32 %s379, 1
        %s1002 = smul.addr %s1001, 64
        %s1003 = scalar_lea.vmem [#allocation18], %s1002
        %p1004 = pneg %p392
        %p1005 = pneg %p389
        %p1006 = scmp.lt.s32.totalorder %s51, 1
        %s1007 = scalar_select %p1006, %s51, 1
        %s1008 = scalar_lea.vmem %s14, %s1007
        %p1009 = pneg %p418
        %p1010 = pneg %p415
        %p1011 = scmp.lt.s32.totalorder %s51, 1
        %s1012 = scalar_select %p1011, %s51, 1
        %s1013 = scalar_lea.vmem %s15, %s1012
        %p1014 = pneg %p444
        %p1015 = pneg %p441
        %p1016 = scmp.lt.s32.totalorder %s51, 1
        %s1017 = scalar_select %p1016, %s51, 1
        %s1018 = scalar_lea.vmem %s16, %s1017
        %p1019 = pneg %p470
        %p1020 = pneg %p467
        %s1021 = sand.u32 %s46, 1
        %s1022 = scalar_lea.sflag [#allocation19], %s1021
        %s1023 = sand.u32 %s483, 1
        %s1024 = smul.addr %s1023, 128
        %s1025 = scalar_lea.vmem [#allocation20], %s1024
        %p1026 = pneg %p496
        %p1027 = pneg %p493
        %p1028 = scmp.lt.s32.totalorder %s51, 1
        %s1029 = scalar_select %p1028, %s51, 1
        %s1030 = smul.addr %s1029, 2
        %s1031 = scalar_lea.vmem %s18, %s1030
        %p1032 = pneg %p522
        %p1033 = pneg %p519
        %s1034 = sand.u32 %s535, 1
        %s1035 = scalar_lea.sflag [#allocation22], %s1034
        %s1036 = sand.u32 %s535, 1
        %s1037 = smul.addr %s1036, 128
        %s1038 = scalar_lea.vmem [#allocation21], %s1037
        %p1039 = pneg %p548
        %p1040 = pneg %p545
        %p1041 = scmp.lt.s32.totalorder %s51, 1
        %s1042 = scalar_select %p1041, %s51, 1
        %s1043 = scalar_lea.vmem %s20, %s1042
        %p1044 = pneg %p574
        %p1045 = pneg %p571
        %p1046 = pneg %p600
        %p1047 = pneg %p597
        %s1048 = smul.u32 2, %s50
        %s1049 = smul.u32 2, %s50
        %p1050 = scmp.lt.s32.totalorder %s51, 1
        %s1051 = scalar_select %p1050, %s51, 1
        %s1052 = scalar_lea.vmem %s7, %s1051
        %p1053 = scmp.lt.s32.totalorder %s51, 1
        %s1054 = scalar_select %p1053, %s51, 1
        %s1055 = scalar_lea.vmem %s8, %s1054
        %p1056 = scmp.lt.s32.totalorder %s51, 1
        %s1057 = scalar_select %p1056, %s51, 1
        %s1058 = smul.addr %s1057, 2
        %s1059 = scalar_lea.vmem %s10, %s1058
        %p1060 = scmp.lt.s32.totalorder %s51, 1
        %s1061 = scalar_select %p1060, %s51, 1
        %s1062 = scalar_lea.vmem %s12, %s1061
        %p1063 = scmp.lt.s32.totalorder %s51, 1
        %s1064 = scalar_select %p1063, %s51, 1
        %s1065 = scalar_lea.vmem %s14, %s1064
        %p1066 = scmp.lt.s32.totalorder %s51, 1
        %s1067 = scalar_select %p1066, %s51, 1
        %s1068 = scalar_lea.vmem %s15, %s1067
        %p1069 = scmp.lt.s32.totalorder %s51, 1
        %s1070 = scalar_select %p1069, %s51, 1
        %s1071 = scalar_lea.vmem %s16, %s1070
        %p1072 = scmp.lt.s32.totalorder %s51, 1
        %s1073 = scalar_select %p1072, %s51, 1
        %s1074 = smul.addr %s1073, 2
        %s1075 = scalar_lea.vmem %s18, %s1074
        %p1076 = scmp.lt.s32.totalorder %s51, 1
        %s1077 = scalar_select %p1076, %s51, 1
        %s1078 = scalar_lea.vmem %s20, %s1077
        %s1079 = smul.u32 2, %s50
        %p1081 = scmp.eq.s32.totalorder %s51, 0
        // Predicated region
        $region153: #{tpu_custom_call.1} parent=103 // pred_check
          %p1082 = pneg %p1081
        $region154: #{tpu_custom_call.1} parent=103 // pred_check_branch
          %1084 = sbr.rel (%p1082) target = $region156
        $region155: #{tpu_custom_call.1} parent=103 // pred_region
          %v1085 = vld [vmem:[#allocation3] sm:$0xff]
          %v1086 = vld [vmem:[#allocation3 + $0x8] sm:$0xff]
          %v1087 = vpack.c.bf16 %v1086, %v1085
          %v1088 = vld [vmem:[#allocation8] sm:$0xf]
          %v1089 = vld [vmem:[#allocation8 + $0x4] sm:$0xf]
          %v1090 = vld [vmem:[#allocation8 + $0x8] sm:$0xf]
          %v1091 = vld [vmem:[#allocation8 + $0xc] sm:$0xf]
          %v1092 = vld [vmem:[#allocation9] sm:$0x1]
          %v1094 = vlaneseq
          %v1095 = vshrl.u32 %v1094, 7
          %v1096 = vsub.s32 0, %v1095
          %v1097 = vrot.slane %v1092, %v1096
          %v1103 = vunpack.c.l.b16 %v1088
          %v1104 = vunpack.c.l.b16 %v1089
          %v1105 = vunpack.c.l.b16 %v1090
          %v1106 = vunpack.c.l.b16 %v1091
          %v1107 = vpack.c.b16 %v1104, %v1103
          %v1108 = vpack.c.b16 %v1106, %v1105
          %vm1111 = vcmask 261120
          %v1113 = vsel %vm1111, %v1087, 0
          %1115 = vmatprep.subr.bf16.mxu0 0
          %1116 = vmatpush1.bf16.msra.mxu0 %v1107
          %1117 = vmatprep.subr.bf16.mxu0 0
          %1118 = vmatpush1.bf16.msra.mxu0 %v1108
          %1119 = vmatprep.subr.bf16.mxu0 0
          %1120 = vmatpush1.bf16.msra.mxu0 0
          %1121 = vmatprep.subr.bf16.mxu0 0
          %1122 = vmatpush1.bf16.msra.mxu0 0
          %1123 = vmatprep.subr.bf16.mxu0 0
          %1124 = vmatpush1.bf16.msra.mxu0 0
          %1125 = vmatprep.subr.bf16.mxu0 0
          %1126 = vmatpush1.bf16.msra.mxu0 0
          %1127 = vmatprep.subr.bf16.mxu0 0
          %1128 = vmatpush1.bf16.msra.mxu0 0
          %1129 = vmatprep.subr.bf16.mxu0 0
          %1130 = vmatpush1.bf16.msra.mxu0 0
          %1131 = vmatprep.subr.bf16.mxu0 0
          %1132 = vmatpush1.bf16.msra.mxu0 0
          %1133 = vmatprep.subr.bf16.mxu0 0
          %1134 = vmatpush1.bf16.msra.mxu0 0
          %1135 = vmatprep.subr.bf16.mxu0 0
          %1136 = vmatpush1.bf16.msra.mxu0 0
          %1137 = vmatprep.subr.bf16.mxu0 0
          %1138 = vmatpush1.bf16.msra.mxu0 0
          %1139 = vmatprep.subr.bf16.mxu0 0
          %1140 = vmatpush1.bf16.msra.mxu0 0
          %1141 = vmatprep.subr.bf16.mxu0 0
          %1142 = vmatpush1.bf16.msra.mxu0 0
          %1143 = vmatprep.subr.bf16.mxu0 0
          %1144 = vmatpush1.bf16.msra.mxu0 0
          %1145 = vmatprep.subr.bf16.mxu0 0
          %1146 = vmatpush1.bf16.msra.mxu0 0
          %1147 = vmatprep.mubr.bf16.mxu0 0
          %1148 = vmatmul.mubr.bf16.gmra.mrb[0].mxu0 %v1113
          %v1149 = vpop.f32.mrb[0].mxu0
          %v1150 = vadd.f32 %v1097, %v1149
          %v1151 = vpop.f32.mrb[0].mxu0
          %v1152 = vpop.f32.mrb[0].mxu0
          %v1153 = vadd.f32 %v1097, %v1152
          %v1154 = vpop.f32.mrb[0].mxu0
          %1155 = vdwg.mxu0
          %1156 = vst [vmem:[#allocation2 + $0x9] sm:$0x7f] 0.0
          %1157 = vst [vmem:[#allocation2 + $0x19] sm:$0x7f] 0.0
          %1158 = vst [vmem:[#allocation2] sm:$0xff] %v1150
          %1159 = vst [vmem:[#allocation2 + $0x10] sm:$0xff] %v1153
          %v1160 = vld [vmem:[#allocation11] sm:$0x1]
          %1161 = vst [vmem:[#allocation2 + $0x8] sm:$0x1] %v1160
          %1162 = vst [vmem:[#allocation2 + $0x18] sm:$0x1] %v1160
        $region156: #{tpu_custom_call.1} parent=103 // pred_fallthru
          _
        %v1163 = vld [vmem:[#allocation2] sm:$0xff]
        %v1164 = vld [vmem:[#allocation2 + $0x8] sm:$0xff]
        %v1165 = vld [vmem:[#allocation2 + $0x10] sm:$0xff]
        %v1166 = vld [vmem:[#allocation2 + $0x18] sm:$0xff]
        %v1167 = vld [vmem:[#allocation6] sm:$0xff]
        %v1168 = vld [vmem:[#allocation6 + $0x8] sm:$0xff]
        %v1169 = vld [vmem:[#allocation6 + $0x10] sm:$0xff]
        %v1170 = vld [vmem:[#allocation6 + $0x18] sm:$0xff]
        %v1171 = vld [vmem:[%s1052] sm:$0x1]
        %v1172 = vld [vmem:[%s1055] sm:$0x1]
        %1173 = vadd.xlane.f32.xlu0 %v1163
        %v1174 = vpop.xlane.xlu0 %1173
        %1175 = vadd.xlane.f32.xlu0 %v1164
        %v1176 = vpop.xlane.xlu0 %1175
        %1177 = vadd.xlane.f32.xlu0 %v1165
        %v1178 = vpop.xlane.xlu0 %1177
        %1179 = vadd.xlane.f32.xlu0 %v1166
        %v1180 = vpop.xlane.xlu0 %1179
        %v1181 = vrcp.pop 128.0
        %v1182 = vmul.f32 %v1174, %v1181
        %v1183 = vmul.f32 %v1176, %v1181
        %v1184 = vmul.f32 %v1178, %v1181
        %v1185 = vmul.f32 %v1180, %v1181
        %v1186 = vsub.f32 %v1163, %v1182
        %v1187 = vsub.f32 %v1164, %v1183
        %v1188 = vsub.f32 %v1165, %v1184
        %v1189 = vsub.f32 %v1166, %v1185
        %v1190 = vmul.f32 %v1186, %v1186
        %v1191 = vmul.f32 %v1187, %v1187
        %v1192 = vmul.f32 %v1188, %v1188
        %v1193 = vmul.f32 %v1189, %v1189
        %1194 = vadd.xlane.f32.xlu0 %v1190
        %v1195 = vpop.xlane.xlu0 %1194
        %1196 = vadd.xlane.f32.xlu0 %v1191
        %v1197 = vpop.xlane.xlu0 %1196
        %1198 = vadd.xlane.f32.xlu0 %v1192
        %v1199 = vpop.xlane.xlu0 %1198
        %1200 = vadd.xlane.f32.xlu0 %v1193
        %v1201 = vpop.xlane.xlu0 %1200
        %v1202 = vmul.f32 %v1195, %v1181
        %v1203 = vmul.f32 %v1197, %v1181
        %v1204 = vmul.f32 %v1199, %v1181
        %v1205 = vmul.f32 %v1201, %v1181
        %v1206 = vadd.f32 %v1202, 1e-05
        %v1207 = vadd.f32 %v1203, 1e-05
        %v1208 = vadd.f32 %v1204, 1e-05
        %v1209 = vadd.f32 %v1205, 1e-05
        %v1210 = vrsqrt.pop %v1206
        %v1211 = vrsqrt.pop %v1207
        %v1212 = vrsqrt.pop %v1208
        %v1213 = vrsqrt.pop %v1209
        %v1214 = vmul.f32 %v1186, %v1210
        %v1215 = vmul.f32 %v1187, %v1211
        %v1216 = vmul.f32 %v1188, %v1212
        %v1217 = vmul.f32 %v1189, %v1213
        %v1219 = vlaneseq
        %v1220 = vshrl.u32 %v1219, 7
        %v1221 = vsub.s32 0, %v1220
        %v1222 = vrot.slane %v1171, %v1221
        %v1224 = vmul.f32 %v1214, %v1222
        %v1225 = vmul.f32 %v1215, %v1222
        %v1226 = vmul.f32 %v1216, %v1222
        %v1227 = vmul.f32 %v1217, %v1222
        %v1229 = vlaneseq
        %v1230 = vshrl.u32 %v1229, 7
        %v1231 = vsub.s32 0, %v1230
        %v1232 = vrot.slane %v1172, %v1231
        %v1234 = vadd.f32 %v1224, %v1232
        %v1235 = vadd.f32 %v1225, %v1232
        %v1236 = vadd.f32 %v1226, %v1232
        %v1237 = vadd.f32 %v1227, %v1232
        %v1238 = vadd.f32 %v1234, %v1167
        %v1239 = vadd.f32 %v1235, %v1168
        %v1240 = vadd.f32 %v1236, %v1169
        %v1241 = vadd.f32 %v1237, %v1170
        %v1242 = vpack.c.bf16 %v1239, %v1238
        %v1243 = vpack.c.bf16 %v1241, %v1240
        %v1244 = vld [vmem:[%s909] sm:$0xff]
        %v1245 = vld [vmem:[%s909 + $0x8] sm:$0xff]
        %v1246 = vld [vmem:[%s909 + $0x10] sm:$0xff]
        %v1247 = vld [vmem:[%s909 + $0x18] sm:$0xff]
        %v1248 = vld [vmem:[%s909 + $0x20] sm:$0xff]
        %v1249 = vld [vmem:[%s909 + $0x28] sm:$0xff]
        %v1250 = vld [vmem:[%s909 + $0x30] sm:$0xff]
        %v1251 = vld [vmem:[%s909 + $0x38] sm:$0xff]
        %v1252 = vld [vmem:[%s909 + $0x40] sm:$0xff]
        %v1253 = vld [vmem:[%s909 + $0x48] sm:$0xff]
        %v1254 = vld [vmem:[%s909 + $0x50] sm:$0xff]
        %v1255 = vld [vmem:[%s909 + $0x58] sm:$0xff]
        %v1256 = vld [vmem:[%s909 + $0x60] sm:$0xff]
        %v1257 = vld [vmem:[%s909 + $0x68] sm:$0xff]
        %v1258 = vld [vmem:[%s909 + $0x70] sm:$0xff]
        %v1259 = vld [vmem:[%s909 + $0x78] sm:$0xff]
        %v1260 = vld [vmem:[%s1059] sm:$0x3]
        %v1262 = vlaneseq
        %v1263 = vshrl.u32 %v1262, 7
        %v1264 = vsub.s32 0, %v1263
        %v1265 = vrot.slane %v1260, %v1264
        %v1266 = vlaneseq
        %v1267 = vshrl.u32 %v1266, 7
        %v1268 = vsub.s32 1, %v1267
        %v1269 = vrot.slane %v1260, %v1268
        %v1288 = vunpack.c.l.b16 %v1244
        %v1289 = vunpack.c.h.b16 %v1244
        %v1290 = vunpack.c.l.b16 %v1245
        %v1291 = vunpack.c.h.b16 %v1245
        %v1292 = vunpack.c.l.b16 %v1246
        %v1293 = vunpack.c.h.b16 %v1246
        %v1294 = vunpack.c.l.b16 %v1247
        %v1295 = vunpack.c.h.b16 %v1247
        %v1296 = vunpack.c.l.b16 %v1248
        %v1297 = vunpack.c.h.b16 %v1248
        %v1298 = vunpack.c.l.b16 %v1249
        %v1299 = vunpack.c.h.b16 %v1249
        %v1300 = vunpack.c.l.b16 %v1250
        %v1301 = vunpack.c.h.b16 %v1250
        %v1302 = vunpack.c.l.b16 %v1251
        %v1303 = vunpack.c.h.b16 %v1251
        %v1304 = vunpack.c.l.b16 %v1252
        %v1305 = vunpack.c.h.b16 %v1252
        %v1306 = vunpack.c.l.b16 %v1253
        %v1307 = vunpack.c.h.b16 %v1253
        %v1308 = vunpack.c.l.b16 %v1254
        %v1309 = vunpack.c.h.b16 %v1254
        %v1310 = vunpack.c.l.b16 %v1255
        %v1311 = vunpack.c.h.b16 %v1255
        %v1312 = vunpack.c.l.b16 %v1256
        %v1313 = vunpack.c.h.b16 %v1256
        %v1314 = vunpack.c.l.b16 %v1257
        %v1315 = vunpack.c.h.b16 %v1257
        %v1316 = vunpack.c.l.b16 %v1258
        %v1317 = vunpack.c.h.b16 %v1258
        %v1318 = vunpack.c.l.b16 %v1259
        %v1319 = vunpack.c.h.b16 %v1259
        %v1320 = vpack.c.b16 %v1290, %v1288
        %v1321 = vpack.c.b16 %v1291, %v1289
        %v1322 = vpack.c.b16 %v1294, %v1292
        %v1323 = vpack.c.b16 %v1295, %v1293
        %v1324 = vpack.c.b16 %v1298, %v1296
        %v1325 = vpack.c.b16 %v1299, %v1297
        %v1326 = vpack.c.b16 %v1302, %v1300
        %v1327 = vpack.c.b16 %v1303, %v1301
        %v1328 = vpack.c.b16 %v1306, %v1304
        %v1329 = vpack.c.b16 %v1307, %v1305
        %v1330 = vpack.c.b16 %v1310, %v1308
        %v1331 = vpack.c.b16 %v1311, %v1309
        %v1332 = vpack.c.b16 %v1314, %v1312
        %v1333 = vpack.c.b16 %v1315, %v1313
        %v1334 = vpack.c.b16 %v1318, %v1316
        %v1335 = vpack.c.b16 %v1319, %v1317
        %1352 = vmatprep.subr.bf16.mxu0 %v1321
        %1353 = vmatpush1.bf16.msra.mxu0 %v1320
        %1354 = vmatprep.subr.bf16.mxu0 %v1323
        %1355 = vmatpush1.bf16.msra.mxu0 %v1322
        %1356 = vmatprep.subr.bf16.mxu0 %v1325
        %1357 = vmatpush1.bf16.msra.mxu0 %v1324
        %1358 = vmatprep.subr.bf16.mxu0 %v1327
        %1359 = vmatpush1.bf16.msra.mxu0 %v1326
        %1360 = vmatprep.subr.bf16.mxu0 %v1329
        %1361 = vmatpush1.bf16.msra.mxu0 %v1328
        %1362 = vmatprep.subr.bf16.mxu0 %v1331
        %1363 = vmatpush1.bf16.msra.mxu0 %v1330
        %1364 = vmatprep.subr.bf16.mxu0 %v1333
        %1365 = vmatpush1.bf16.msra.mxu0 %v1332
        %1366 = vmatprep.subr.bf16.mxu0 %v1335
        %1367 = vmatpush1.bf16.msra.mxu0 %v1334
        %1368 = vmatprep.subr.bf16.mxu0 0
        %1369 = vmatpush1.bf16.msra.mxu0 0
        %1370 = vmatprep.subr.bf16.mxu0 0
        %1371 = vmatpush1.bf16.msra.mxu0 0
        %1372 = vmatprep.subr.bf16.mxu0 0
        %1373 = vmatpush1.bf16.msra.mxu0 0
        %1374 = vmatprep.subr.bf16.mxu0 0
        %1375 = vmatpush1.bf16.msra.mxu0 0
        %1376 = vmatprep.subr.bf16.mxu0 0
        %1377 = vmatpush1.bf16.msra.mxu0 0
        %1378 = vmatprep.subr.bf16.mxu0 0
        %1379 = vmatpush1.bf16.msra.mxu0 0
        %1380 = vmatprep.subr.bf16.mxu0 0
        %1381 = vmatpush1.bf16.msra.mxu0 0
        %1382 = vmatprep.subr.bf16.mxu0 0
        %1383 = vmatpush1.bf16.msra.mxu0 0
        %1384 = vmatprep.mubr.bf16.mxu0 0
        %1385 = vmatmul.mubr.bf16.gmra.mrb[0].mxu0 %v1242
        %v1386 = vpop.f32.mrb[0].mxu0
        %v1387 = vadd.f32 %v1265, %v1386
        %v1388 = vpop.f32.mrb[0].mxu0
        %v1389 = vadd.f32 %v1269, %v1388
        %v1390 = vpop.f32.mrb[0].mxu0
        %v1391 = vadd.f32 %v1265, %v1390
        %v1392 = vpop.f32.mrb[0].mxu0
        %v1393 = vadd.f32 %v1269, %v1392
        %1394 = vmatprep.mubr.bf16.mxu0 0
        %1395 = vmatmul.mubr.bf16.gmra.mrb[0].mxu0 %v1243
        %v1396 = vpop.f32.mrb[0].mxu0
        %v1397 = vadd.f32 %v1265, %v1396
        %v1398 = vpop.f32.mrb[0].mxu0
        %v1399 = vadd.f32 %v1269, %v1398
        %v1400 = vpop.f32.mrb[0].mxu0
        %v1401 = vadd.f32 %v1265, %v1400
        %v1402 = vpop.f32.mrb[0].mxu0
        %v1403 = vadd.f32 %v1269, %v1402
        %1404 = vdwg.mxu0
        %v1405 = vpack.c.bf16 %v1235, %v1234
        %v1406 = vpack.c.bf16 %v1237, %v1236
        %v1407 = vld [vmem:[%s918] sm:$0xf]
        %v1408 = vld [vmem:[%s918 + $0x4] sm:$0xf]
        %v1409 = vld [vmem:[%s918 + $0x8] sm:$0xf]
        %v1410 = vld [vmem:[%s918 + $0xc] sm:$0xf]
        %v1411 = vld [vmem:[%s918 + $0x10] sm:$0xf]
        %v1412 = vld [vmem:[%s918 + $0x14] sm:$0xf]
        %v1413 = vld [vmem:[%s918 + $0x18] sm:$0xf]
        %v1414 = vld [vmem:[%s918 + $0x1c] sm:$0xf]
        %v1415 = vld [vmem:[%s918 + $0x20] sm:$0xf]
        %v1416 = vld [vmem:[%s918 + $0x24] sm:$0xf]
        %v1417 = vld [vmem:[%s918 + $0x28] sm:$0xf]
        %v1418 = vld [vmem:[%s918 + $0x2c] sm:$0xf]
        %v1419 = vld [vmem:[%s918 + $0x30] sm:$0xf]
        %v1420 = vld [vmem:[%s918 + $0x34] sm:$0xf]
        %v1421 = vld [vmem:[%s918 + $0x38] sm:$0xf]
        %v1422 = vld [vmem:[%s918 + $0x3c] sm:$0xf]
        %v1423 = vld [vmem:[%s1062] sm:$0x1]
        %v1425 = vlaneseq
        %v1426 = vshrl.u32 %v1425, 7
        %v1427 = vsub.s32 0, %v1426
        %v1428 = vrot.slane %v1423, %v1427
        %v1446 = vunpack.c.l.b16 %v1407
        %v1447 = vunpack.c.l.b16 %v1408
        %v1448 = vunpack.c.l.b16 %v1409
        %v1449 = vunpack.c.l.b16 %v1410
        %v1450 = vunpack.c.l.b16 %v1411
        %v1451 = vunpack.c.l.b16 %v1412
        %v1452 = vunpack.c.l.b16 %v1413
        %v1453 = vunpack.c.l.b16 %v1414
        %v1454 = vunpack.c.l.b16 %v1415
        %v1455 = vunpack.c.l.b16 %v1416
        %v1456 = vunpack.c.l.b16 %v1417
        %v1457 = vunpack.c.l.b16 %v1418
        %v1458 = vunpack.c.l.b16 %v1419
        %v1459 = vunpack.c.l.b16 %v1420
        %v1460 = vunpack.c.l.b16 %v1421
        %v1461 = vunpack.c.l.b16 %v1422
        %v1462 = vpack.c.b16 %v1447, %v1446
        %v1463 = vpack.c.b16 %v1449, %v1448
        %v1464 = vpack.c.b16 %v1451, %v1450
        %v1465 = vpack.c.b16 %v1453, %v1452
        %v1466 = vpack.c.b16 %v1455, %v1454
        %v1467 = vpack.c.b16 %v1457, %v1456
        %v1468 = vpack.c.b16 %v1459, %v1458
        %v1469 = vpack.c.b16 %v1461, %v1460
        %1478 = vmatprep.subr.bf16.mxu0 0
        %1479 = vmatpush1.bf16.msra.mxu0 %v1462
        %1480 = vmatprep.subr.bf16.mxu0 0
        %1481 = vmatpush1.bf16.msra.mxu0 %v1463
        %1482 = vmatprep.subr.bf16.mxu0 0
        %1483 = vmatpush1.bf16.msra.mxu0 %v1464
        %1484 = vmatprep.subr.bf16.mxu0 0
        %1485 = vmatpush1.bf16.msra.mxu0 %v1465
        %1486 = vmatprep.subr.bf16.mxu0 0
        %1487 = vmatpush1.bf16.msra.mxu0 %v1466
        %1488 = vmatprep.subr.bf16.mxu0 0
        %1489 = vmatpush1.bf16.msra.mxu0 %v1467
        %1490 = vmatprep.subr.bf16.mxu0 0
        %1491 = vmatpush1.bf16.msra.mxu0 %v1468
        %1492 = vmatprep.subr.bf16.mxu0 0
        %1493 = vmatpush1.bf16.msra.mxu0 %v1469
        %1494 = vmatprep.subr.bf16.mxu0 0
        %1495 = vmatpush1.bf16.msra.mxu0 0
        %1496 = vmatprep.subr.bf16.mxu0 0
        %1497 = vmatpush1.bf16.msra.mxu0 0
        %1498 = vmatprep.subr.bf16.mxu0 0
        %1499 = vmatpush1.bf16.msra.mxu0 0
        %1500 = vmatprep.subr.bf16.mxu0 0
        %1501 = vmatpush1.bf16.msra.mxu0 0
        %1502 = vmatprep.subr.bf16.mxu0 0
        %1503 = vmatpush1.bf16.msra.mxu0 0
        %1504 = vmatprep.subr.bf16.mxu0 0
        %1505 = vmatpush1.bf16.msra.mxu0 0
        %1506 = vmatprep.subr.bf16.mxu0 0
        %1507 = vmatpush1.bf16.msra.mxu0 0
        %1508 = vmatprep.subr.bf16.mxu0 0
        %1509 = vmatpush1.bf16.msra.mxu0 0
        %1510 = vmatprep.mubr.bf16.mxu0 0
        %1511 = vmatmul.mubr.bf16.gmra.mrb[0].mxu0 %v1405
        %v1512 = vpop.f32.mrb[0].mxu0
        %v1513 = vadd.f32 %v1428, %v1512
        %v1514 = vpop.f32.mrb[0].mxu0
        %v1515 = vpop.f32.mrb[0].mxu0
        %v1516 = vadd.f32 %v1428, %v1515
        %v1517 = vpop.f32.mrb[0].mxu0
        %1518 = vmatprep.mubr.bf16.mxu0 0
        %1519 = vmatmul.mubr.bf16.gmra.mrb[0].mxu0 %v1406
        %v1520 = vpop.f32.mrb[0].mxu0
        %v1521 = vadd.f32 %v1428, %v1520
        %v1522 = vpop.f32.mrb[0].mxu0
        %v1523 = vpop.f32.mrb[0].mxu0
        %v1524 = vadd.f32 %v1428, %v1523
        %v1525 = vpop.f32.mrb[0].mxu0
        %1526 = vdwg.mxu0
        %v1527 = vmul.f32 %v1387, 0.17677669
        %v1528 = vmul.f32 %v1391, 0.17677669
        %v1529 = vmul.f32 %v1397, 0.17677669
        %v1530 = vmul.f32 %v1401, 0.17677669
        %1535 = vrot.lane.b32.xlu0 %v1527, 96
        %v1536 = vpop.permute.xlu0 %1535
        %1537 = vrot.lane.b32.xlu0 %v1528, 96
        %v1538 = vpop.permute.xlu0 %1537
        %1539 = vrot.lane.b32.xlu0 %v1529, 96
        %v1540 = vpop.permute.xlu0 %1539
        %1541 = vrot.lane.b32.xlu0 %v1530, 96
        %v1542 = vpop.permute.xlu0 %1541
        %1547 = vrot.lane.b32.xlu0 %v1527, 64
        %v1548 = vpop.permute.xlu0 %1547
        %1549 = vrot.lane.b32.xlu0 %v1528, 64
        %v1550 = vpop.permute.xlu0 %1549
        %1551 = vrot.lane.b32.xlu0 %v1529, 64
        %v1552 = vpop.permute.xlu0 %1551
        %1553 = vrot.lane.b32.xlu0 %v1530, 64
        %v1554 = vpop.permute.xlu0 %1553
        %1559 = vrot.lane.b32.xlu0 %v1527, 32
        %v1560 = vpop.permute.xlu0 %1559
        %1561 = vrot.lane.b32.xlu0 %v1528, 32
        %v1562 = vpop.permute.xlu0 %1561
        %1563 = vrot.lane.b32.xlu0 %v1529, 32
        %v1564 = vpop.permute.xlu0 %1563
        %1565 = vrot.lane.b32.xlu0 %v1530, 32
        %v1566 = vpop.permute.xlu0 %1565
        %v1571 = vcombine.low %v1527, %v1548
        %v1572 = vcombine.high %v1527, %v1548
        %v1574 = vunpack.c.l.s4 1983009808
        %v1575 = vunpack.c.0.s8 %v1574
        %v1576 = vlaneseq
        %v1577 = vshrl.u32 %v1576, 7
        %v1578 = vsub.s32 %v1575, %v1577
        %v1579 = vrot.slane %v1571, %v1578
        %v1581 = vunpack.c.l.s4 1983009808
        %v1582 = vunpack.c.0.s8 %v1581
        %v1583 = vlaneseq
        %v1584 = vshrl.u32 %v1583, 7
        %v1585 = vsub.s32 %v1582, %v1584
        %v1586 = vrot.slane %v1572, %v1585
        %v1587 = vcombine.low %v1536, %v1560
        %v1588 = vcombine.high %v1536, %v1560
        %v1590 = vunpack.c.l.s4 1983009808
        %v1591 = vunpack.c.0.s8 %v1590
        %v1592 = vlaneseq
        %v1593 = vshrl.u32 %v1592, 7
        %v1594 = vsub.s32 %v1591, %v1593
        %v1595 = vrot.slane %v1587, %v1594
        %v1597 = vunpack.c.l.s4 1983009808
        %v1598 = vunpack.c.0.s8 %v1597
        %v1599 = vlaneseq
        %v1600 = vshrl.u32 %v1599, 7
        %v1601 = vsub.s32 %v1598, %v1600
        %v1602 = vrot.slane %v1588, %v1601
        %v1603 = vcombine.low %v1579, %v1595
        %v1604 = vcombine.high %v1579, %v1595
        %v1606 = vunpack.c.l.s4 1934713408
        %v1607 = vunpack.c.0.s8 %v1606
        %v1608 = vlaneseq
        %v1609 = vshrl.u32 %v1608, 7
        %v1610 = vsub.s32 %v1607, %v1609
        %v1611 = vrot.slane %v1603, %v1610
        %v1613 = vunpack.c.l.s4 1934713408
        %v1614 = vunpack.c.0.s8 %v1613
        %v1615 = vlaneseq
        %v1616 = vshrl.u32 %v1615, 7
        %v1617 = vsub.s32 %v1614, %v1616
        %v1618 = vrot.slane %v1604, %v1617
        %v1619 = vcombine.low %v1586, %v1602
        %v1620 = vcombine.high %v1586, %v1602
        %v1622 = vunpack.c.l.s4 1934713408
        %v1623 = vunpack.c.0.s8 %v1622
        %v1624 = vlaneseq
        %v1625 = vshrl.u32 %v1624, 7
        %v1626 = vsub.s32 %v1623, %v1625
        %v1627 = vrot.slane %v1619, %v1626
        %v1629 = vunpack.c.l.s4 1934713408
        %v1630 = vunpack.c.0.s8 %v1629
        %v1631 = vlaneseq
        %v1632 = vshrl.u32 %v1631, 7
        %v1633 = vsub.s32 %v1630, %v1632
        %v1634 = vrot.slane %v1620, %v1633
        %v1635 = vcombine.high %v1611, 0.0
        %v1636 = vcombine.high %v1618, 0.0
        %v1637 = vcombine.high %v1627, 0.0
        %v1638 = vcombine.high %v1634, 0.0
        %v1639 = vcombine.low %v1528, %v1550
        %v1640 = vcombine.high %v1528, %v1550
        %v1642 = vunpack.c.l.s4 1983009808
        %v1643 = vunpack.c.0.s8 %v1642
        %v1644 = vlaneseq
        %v1645 = vshrl.u32 %v1644, 7
        %v1646 = vsub.s32 %v1643, %v1645
        %v1647 = vrot.slane %v1639, %v1646
        %v1649 = vunpack.c.l.s4 1983009808
        %v1650 = vunpack.c.0.s8 %v1649
        %v1651 = vlaneseq
        %v1652 = vshrl.u32 %v1651, 7
        %v1653 = vsub.s32 %v1650, %v1652
        %v1654 = vrot.slane %v1640, %v1653
        %v1655 = vcombine.low %v1538, %v1562
        %v1656 = vcombine.high %v1538, %v1562
        %v1658 = vunpack.c.l.s4 1983009808
        %v1659 = vunpack.c.0.s8 %v1658
        %v1660 = vlaneseq
        %v1661 = vshrl.u32 %v1660, 7
        %v1662 = vsub.s32 %v1659, %v1661
        %v1663 = vrot.slane %v1655, %v1662
        %v1665 = vunpack.c.l.s4 1983009808
        %v1666 = vunpack.c.0.s8 %v1665
        %v1667 = vlaneseq
        %v1668 = vshrl.u32 %v1667, 7
        %v1669 = vsub.s32 %v1666, %v1668
        %v1670 = vrot.slane %v1656, %v1669
        %v1671 = vcombine.low %v1647, %v1663
        %v1672 = vcombine.high %v1647, %v1663
        %v1674 = vunpack.c.l.s4 1934713408
        %v1675 = vunpack.c.0.s8 %v1674
        %v1676 = vlaneseq
        %v1677 = vshrl.u32 %v1676, 7
        %v1678 = vsub.s32 %v1675, %v1677
        %v1679 = vrot.slane %v1671, %v1678
        %v1681 = vunpack.c.l.s4 1934713408
        %v1682 = vunpack.c.0.s8 %v1681
        %v1683 = vlaneseq
        %v1684 = vshrl.u32 %v1683, 7
        %v1685 = vsub.s32 %v1682, %v1684
        %v1686 = vrot.slane %v1672, %v1685
        %v1687 = vcombine.low %v1654, %v1670
        %v1688 = vcombine.high %v1654, %v1670
        %v1690 = vunpack.c.l.s4 1934713408
        %v1691 = vunpack.c.0.s8 %v1690
        %v1692 = vlaneseq
        %v1693 = vshrl.u32 %v1692, 7
        %v1694 = vsub.s32 %v1691, %v1693
        %v1695 = vrot.slane %v1687, %v1694
        %v1697 = vunpack.c.l.s4 1934713408
        %v1698 = vunpack.c.0.s8 %v1697
        %v1699 = vlaneseq
        %v1700 = vshrl.u32 %v1699, 7
        %v1701 = vsub.s32 %v1698, %v1700
        %v1702 = vrot.slane %v1688, %v1701
        %v1703 = vcombine.high %v1679, 0.0
        %v1704 = vcombine.high %v1686, 0.0
        %v1705 = vcombine.high %v1695, 0.0
        %v1706 = vcombine.high %v1702, 0.0
        %v1707 = vcombine.low %v1529, %v1552
        %v1708 = vcombine.high %v1529, %v1552
        %v1710 = vunpack.c.l.s4 1983009808
        %v1711 = vunpack.c.0.s8 %v1710
        %v1712 = vlaneseq
        %v1713 = vshrl.u32 %v1712, 7
        %v1714 = vsub.s32 %v1711, %v1713
        %v1715 = vrot.slane %v1707, %v1714
        %v1717 = vunpack.c.l.s4 1983009808
        %v1718 = vunpack.c.0.s8 %v1717
        %v1719 = vlaneseq
        %v1720 = vshrl.u32 %v1719, 7
        %v1721 = vsub.s32 %v1718, %v1720
        %v1722 = vrot.slane %v1708, %v1721
        %v1723 = vcombine.low %v1540, %v1564
        %v1724 = vcombine.high %v1540, %v1564
        %v1726 = vunpack.c.l.s4 1983009808
        %v1727 = vunpack.c.0.s8 %v1726
        %v1728 = vlaneseq
        %v1729 = vshrl.u32 %v1728, 7
        %v1730 = vsub.s32 %v1727, %v1729
        %v1731 = vrot.slane %v1723, %v1730
        %v1733 = vunpack.c.l.s4 1983009808
        %v1734 = vunpack.c.0.s8 %v1733
        %v1735 = vlaneseq
        %v1736 = vshrl.u32 %v1735, 7
        %v1737 = vsub.s32 %v1734, %v1736
        %v1738 = vrot.slane %v1724, %v1737
        %v1739 = vcombine.low %v1715, %v1731
        %v1740 = vcombine.high %v1715, %v1731
        %v1742 = vunpack.c.l.s4 1934713408
        %v1743 = vunpack.c.0.s8 %v1742
        %v1744 = vlaneseq
        %v1745 = vshrl.u32 %v1744, 7
        %v1746 = vsub.s32 %v1743, %v1745
        %v1747 = vrot.slane %v1739, %v1746
        %v1749 = vunpack.c.l.s4 1934713408
        %v1750 = vunpack.c.0.s8 %v1749
        %v1751 = vlaneseq
        %v1752 = vshrl.u32 %v1751, 7
        %v1753 = vsub.s32 %v1750, %v1752
        %v1754 = vrot.slane %v1740, %v1753
        %v1755 = vcombine.low %v1722, %v1738
        %v1756 = vcombine.high %v1722, %v1738
        %v1758 = vunpack.c.l.s4 1934713408
        %v1759 = vunpack.c.0.s8 %v1758
        %v1760 = vlaneseq
        %v1761 = vshrl.u32 %v1760, 7
        %v1762 = vsub.s32 %v1759, %v1761
        %v1763 = vrot.slane %v1755, %v1762
        %v1765 = vunpack.c.l.s4 1934713408
        %v1766 = vunpack.c.0.s8 %v1765
        %v1767 = vlaneseq
        %v1768 = vshrl.u32 %v1767, 7
        %v1769 = vsub.s32 %v1766, %v1768
        %v1770 = vrot.slane %v1756, %v1769
        %v1771 = vcombine.high %v1747, 0.0
        %v1772 = vcombine.high %v1754, 0.0
        %v1773 = vcombine.high %v1763, 0.0
        %v1774 = vcombine.high %v1770, 0.0
        %v1775 = vcombine.low %v1530, %v1554
        %v1776 = vcombine.high %v1530, %v1554
        %v1778 = vunpack.c.l.s4 1983009808
        %v1779 = vunpack.c.0.s8 %v1778
        %v1780 = vlaneseq
        %v1781 = vshrl.u32 %v1780, 7
        %v1782 = vsub.s32 %v1779, %v1781
        %v1783 = vrot.slane %v1775, %v1782
        %v1785 = vunpack.c.l.s4 1983009808
        %v1786 = vunpack.c.0.s8 %v1785
        %v1787 = vlaneseq
        %v1788 = vshrl.u32 %v1787, 7
        %v1789 = vsub.s32 %v1786, %v1788
        %v1790 = vrot.slane %v1776, %v1789
        %v1791 = vcombine.low %v1542, %v1566
        %v1792 = vcombine.high %v1542, %v1566
        %v1794 = vunpack.c.l.s4 1983009808
        %v1795 = vunpack.c.0.s8 %v1794
        %v1796 = vlaneseq
        %v1797 = vshrl.u32 %v1796, 7
        %v1798 = vsub.s32 %v1795, %v1797
        %v1799 = vrot.slane %v1791, %v1798
        %v1801 = vunpack.c.l.s4 1983009808
        %v1802 = vunpack.c.0.s8 %v1801
        %v1803 = vlaneseq
        %v1804 = vshrl.u32 %v1803, 7
        %v1805 = vsub.s32 %v1802, %v1804
        %v1806 = vrot.slane %v1792, %v1805
        %v1807 = vcombine.low %v1783, %v1799
        %v1808 = vcombine.high %v1783, %v1799
        %v1810 = vunpack.c.l.s4 1934713408
        %v1811 = vunpack.c.0.s8 %v1810
        %v1812 = vlaneseq
        %v1813 = vshrl.u32 %v1812, 7
        %v1814 = vsub.s32 %v1811, %v1813
        %v1815 = vrot.slane %v1807, %v1814
        %v1817 = vunpack.c.l.s4 1934713408
        %v1818 = vunpack.c.0.s8 %v1817
        %v1819 = vlaneseq
        %v1820 = vshrl.u32 %v1819, 7
        %v1821 = vsub.s32 %v1818, %v1820
        %v1822 = vrot.slane %v1808, %v1821
        %v1823 = vcombine.low %v1790, %v1806
        %v1824 = vcombine.high %v1790, %v1806
        %v1826 = vunpack.c.l.s4 1934713408
        %v1827 = vunpack.c.0.s8 %v1826
        %v1828 = vlaneseq
        %v1829 = vshrl.u32 %v1828, 7
        %v1830 = vsub.s32 %v1827, %v1829
        %v1831 = vrot.slane %v1823, %v1830
        %v1833 = vunpack.c.l.s4 1934713408
        %v1834 = vunpack.c.0.s8 %v1833
        %v1835 = vlaneseq
        %v1836 = vshrl.u32 %v1835, 7
        %v1837 = vsub.s32 %v1834, %v1836
        %v1838 = vrot.slane %v1824, %v1837
        %v1839 = vcombine.high %v1815, 0.0
        %v1840 = vcombine.high %v1822, 0.0
        %v1841 = vcombine.high %v1831, 0.0
        %v1842 = vcombine.high %v1838, 0.0
        %v1843 = vcombine.low %v1611, %v1618
        %v1845 = vunpack.c.l.s4 1983009808
        %v1846 = vunpack.c.0.s8 %v1845
        %v1847 = vlaneseq
        %v1848 = vshrl.u32 %v1847, 7
        %v1849 = vsub.s32 %v1846, %v1848
        %v1850 = vrot.slane %v1843, %v1849
        %v1851 = vcombine.low %v1635, %v1636
        %v1853 = vunpack.c.l.s4 1983009808
        %v1854 = vunpack.c.0.s8 %v1853
        %v1855 = vlaneseq
        %v1856 = vshrl.u32 %v1855, 7
        %v1857 = vsub.s32 %v1854, %v1856
        %v1858 = vrot.slane %v1851, %v1857
        %v1859 = vcombine.low %v1627, %v1634
        %v1861 = vunpack.c.l.s4 1983009808
        %v1862 = vunpack.c.0.s8 %v1861
        %v1863 = vlaneseq
        %v1864 = vshrl.u32 %v1863, 7
        %v1865 = vsub.s32 %v1862, %v1864
        %v1866 = vrot.slane %v1859, %v1865
        %v1867 = vcombine.low %v1637, %v1638
        %v1869 = vunpack.c.l.s4 1983009808
        %v1870 = vunpack.c.0.s8 %v1869
        %v1871 = vlaneseq
        %v1872 = vshrl.u32 %v1871, 7
        %v1873 = vsub.s32 %v1870, %v1872
        %v1874 = vrot.slane %v1867, %v1873
        %v1875 = vcombine.low %v1850, %v1858
        %v1876 = vcombine.high %v1850, %v1858
        %v1878 = vunpack.c.l.s4 1934713408
        %v1879 = vunpack.c.0.s8 %v1878
        %v1880 = vlaneseq
        %v1881 = vshrl.u32 %v1880, 7
        %v1882 = vsub.s32 %v1879, %v1881
        %v1883 = vrot.slane %v1875, %v1882
        %v1885 = vunpack.c.l.s4 1934713408
        %v1886 = vunpack.c.0.s8 %v1885
        %v1887 = vlaneseq
        %v1888 = vshrl.u32 %v1887, 7
        %v1889 = vsub.s32 %v1886, %v1888
        %v1890 = vrot.slane %v1876, %v1889
        %v1891 = vcombine.low %v1866, %v1874
        %v1892 = vcombine.high %v1866, %v1874
        %v1894 = vunpack.c.l.s4 1934713408
        %v1895 = vunpack.c.0.s8 %v1894
        %v1896 = vlaneseq
        %v1897 = vshrl.u32 %v1896, 7
        %v1898 = vsub.s32 %v1895, %v1897
        %v1899 = vrot.slane %v1891, %v1898
        %v1901 = vunpack.c.l.s4 1934713408
        %v1902 = vunpack.c.0.s8 %v1901
        %v1903 = vlaneseq
        %v1904 = vshrl.u32 %v1903, 7
        %v1905 = vsub.s32 %v1902, %v1904
        %v1906 = vrot.slane %v1892, %v1905
        %v1907 = vcombine.low %v1883, %v1899
        %v1908 = vcombine.high %v1883, %v1899
        %v1909 = vcombine.low %v1890, %v1906
        %v1910 = vcombine.high %v1890, %v1906
        %v1911 = vcombine.low %v1679, %v1686
        %v1913 = vunpack.c.l.s4 1983009808
        %v1914 = vunpack.c.0.s8 %v1913
        %v1915 = vlaneseq
        %v1916 = vshrl.u32 %v1915, 7
        %v1917 = vsub.s32 %v1914, %v1916
        %v1918 = vrot.slane %v1911, %v1917
        %v1919 = vcombine.low %v1703, %v1704
        %v1921 = vunpack.c.l.s4 1983009808
        %v1922 = vunpack.c.0.s8 %v1921
        %v1923 = vlaneseq
        %v1924 = vshrl.u32 %v1923, 7
        %v1925 = vsub.s32 %v1922, %v1924
        %v1926 = vrot.slane %v1919, %v1925
        %v1927 = vcombine.low %v1695, %v1702
        %v1929 = vunpack.c.l.s4 1983009808
        %v1930 = vunpack.c.0.s8 %v1929
        %v1931 = vlaneseq
        %v1932 = vshrl.u32 %v1931, 7
        %v1933 = vsub.s32 %v1930, %v1932
        %v1934 = vrot.slane %v1927, %v1933
        %v1935 = vcombine.low %v1705, %v1706
        %v1937 = vunpack.c.l.s4 1983009808
        %v1938 = vunpack.c.0.s8 %v1937
        %v1939 = vlaneseq
        %v1940 = vshrl.u32 %v1939, 7
        %v1941 = vsub.s32 %v1938, %v1940
        %v1942 = vrot.slane %v1935, %v1941
        %v1943 = vcombine.low %v1918, %v1926
        %v1944 = vcombine.high %v1918, %v1926
        %v1946 = vunpack.c.l.s4 1934713408
        %v1947 = vunpack.c.0.s8 %v1946
        %v1948 = vlaneseq
        %v1949 = vshrl.u32 %v1948, 7
        %v1950 = vsub.s32 %v1947, %v1949
        %v1951 = vrot.slane %v1943, %v1950
        %v1953 = vunpack.c.l.s4 1934713408
        %v1954 = vunpack.c.0.s8 %v1953
        %v1955 = vlaneseq
        %v1956 = vshrl.u32 %v1955, 7
        %v1957 = vsub.s32 %v1954, %v1956
        %v1958 = vrot.slane %v1944, %v1957
        %v1959 = vcombine.low %v1934, %v1942
        %v1960 = vcombine.high %v1934, %v1942
        %v1962 = vunpack.c.l.s4 1934713408
        %v1963 = vunpack.c.0.s8 %v1962
        %v1964 = vlaneseq
        %v1965 = vshrl.u32 %v1964, 7
        %v1966 = vsub.s32 %v1963, %v1965
        %v1967 = vrot.slane %v1959, %v1966
        %v1969 = vunpack.c.l.s4 1934713408
        %v1970 = vunpack.c.0.s8 %v1969
        %v1971 = vlaneseq
        %v1972 = vshrl.u32 %v1971, 7
        %v1973 = vsub.s32 %v1970, %v1972
        %v1974 = vrot.slane %v1960, %v1973
        %v1975 = vcombine.low %v1951, %v1967
        %v1976 = vcombine.high %v1951, %v1967
        %v1977 = vcombine.low %v1958, %v1974
        %v1978 = vcombine.high %v1958, %v1974
        %v1979 = vcombine.low %v1747, %v1754
        %v1981 = vunpack.c.l.s4 1983009808
        %v1982 = vunpack.c.0.s8 %v1981
        %v1983 = vlaneseq
        %v1984 = vshrl.u32 %v1983, 7
        %v1985 = vsub.s32 %v1982, %v1984
        %v1986 = vrot.slane %v1979, %v1985
        %v1987 = vcombine.low %v1771, %v1772
        %v1989 = vunpack.c.l.s4 1983009808
        %v1990 = vunpack.c.0.s8 %v1989
        %v1991 = vlaneseq
        %v1992 = vshrl.u32 %v1991, 7
        %v1993 = vsub.s32 %v1990, %v1992
        %v1994 = vrot.slane %v1987, %v1993
        %v1995 = vcombine.low %v1763, %v1770
        %v1997 = vunpack.c.l.s4 1983009808
        %v1998 = vunpack.c.0.s8 %v1997
        %v1999 = vlaneseq
        %v2000 = vshrl.u32 %v1999, 7
        %v2001 = vsub.s32 %v1998, %v2000
        %v2002 = vrot.slane %v1995, %v2001
        %v2003 = vcombine.low %v1773, %v1774
        %v2005 = vunpack.c.l.s4 1983009808
        %v2006 = vunpack.c.0.s8 %v2005
        %v2007 = vlaneseq
        %v2008 = vshrl.u32 %v2007, 7
        %v2009 = vsub.s32 %v2006, %v2008
        %v2010 = vrot.slane %v2003, %v2009
        %v2011 = vcombine.low %v1986, %v1994
        %v2012 = vcombine.high %v1986, %v1994
        %v2014 = vunpack.c.l.s4 1934713408
        %v2015 = vunpack.c.0.s8 %v2014
        %v2016 = vlaneseq
        %v2017 = vshrl.u32 %v2016, 7
        %v2018 = vsub.s32 %v2015, %v2017
        %v2019 = vrot.slane %v2011, %v2018
        %v2021 = vunpack.c.l.s4 1934713408
        %v2022 = vunpack.c.0.s8 %v2021
        %v2023 = vlaneseq
        %v2024 = vshrl.u32 %v2023, 7
        %v2025 = vsub.s32 %v2022, %v2024
        %v2026 = vrot.slane %v2012, %v2025
        %v2027 = vcombine.low %v2002, %v2010
        %v2028 = vcombine.high %v2002, %v2010
        %v2030 = vunpack.c.l.s4 1934713408
        %v2031 = vunpack.c.0.s8 %v2030
        %v2032 = vlaneseq
        %v2033 = vshrl.u32 %v2032, 7
        %v2034 = vsub.s32 %v2031, %v2033
        %v2035 = vrot.slane %v2027, %v2034
        %v2037 = vunpack.c.l.s4 1934713408
        %v2038 = vunpack.c.0.s8 %v2037
        %v2039 = vlaneseq
        %v2040 = vshrl.u32 %v2039, 7
        %v2041 = vsub.s32 %v2038, %v2040
        %v2042 = vrot.slane %v2028, %v2041
        %v2043 = vcombine.low %v2019, %v2035
        %v2044 = vcombine.high %v2019, %v2035
        %v2045 = vcombine.low %v2026, %v2042
        %v2046 = vcombine.high %v2026, %v2042
        %v2047 = vcombine.low %v1815, %v1822
        %v2049 = vunpack.c.l.s4 1983009808
        %v2050 = vunpack.c.0.s8 %v2049
        %v2051 = vlaneseq
        %v2052 = vshrl.u32 %v2051, 7
        %v2053 = vsub.s32 %v2050, %v2052
        %v2054 = vrot.slane %v2047, %v2053
        %v2055 = vcombine.low %v1839, %v1840
        %v2057 = vunpack.c.l.s4 1983009808
        %v2058 = vunpack.c.0.s8 %v2057
        %v2059 = vlaneseq
        %v2060 = vshrl.u32 %v2059, 7
        %v2061 = vsub.s32 %v2058, %v2060
        %v2062 = vrot.slane %v2055, %v2061
        %v2063 = vcombine.low %v1831, %v1838
        %v2065 = vunpack.c.l.s4 1983009808
        %v2066 = vunpack.c.0.s8 %v2065
        %v2067 = vlaneseq
        %v2068 = vshrl.u32 %v2067, 7
        %v2069 = vsub.s32 %v2066, %v2068
        %v2070 = vrot.slane %v2063, %v2069
        %v2071 = vcombine.low %v1841, %v1842
        %v2073 = vunpack.c.l.s4 1983009808
        %v2074 = vunpack.c.0.s8 %v2073
        %v2075 = vlaneseq
        %v2076 = vshrl.u32 %v2075, 7
        %v2077 = vsub.s32 %v2074, %v2076
        %v2078 = vrot.slane %v2071, %v2077
        %v2079 = vcombine.low %v2054, %v2062
        %v2080 = vcombine.high %v2054, %v2062
        %v2082 = vunpack.c.l.s4 1934713408
        %v2083 = vunpack.c.0.s8 %v2082
        %v2084 = vlaneseq
        %v2085 = vshrl.u32 %v2084, 7
        %v2086 = vsub.s32 %v2083, %v2085
        %v2087 = vrot.slane %v2079, %v2086
        %v2089 = vunpack.c.l.s4 1934713408
        %v2090 = vunpack.c.0.s8 %v2089
        %v2091 = vlaneseq
        %v2092 = vshrl.u32 %v2091, 7
        %v2093 = vsub.s32 %v2090, %v2092
        %v2094 = vrot.slane %v2080, %v2093
        %v2095 = vcombine.low %v2070, %v2078
        %v2096 = vcombine.high %v2070, %v2078
        %v2098 = vunpack.c.l.s4 1934713408
        %v2099 = vunpack.c.0.s8 %v2098
        %v2100 = vlaneseq
        %v2101 = vshrl.u32 %v2100, 7
        %v2102 = vsub.s32 %v2099, %v2101
        %v2103 = vrot.slane %v2095, %v2102
        %v2105 = vunpack.c.l.s4 1934713408
        %v2106 = vunpack.c.0.s8 %v2105
        %v2107 = vlaneseq
        %v2108 = vshrl.u32 %v2107, 7
        %v2109 = vsub.s32 %v2106, %v2108
        %v2110 = vrot.slane %v2096, %v2109
        %v2111 = vcombine.low %v2087, %v2103
        %v2112 = vcombine.high %v2087, %v2103
        %v2113 = vcombine.low %v2094, %v2110
        %v2114 = vcombine.high %v2094, %v2110
        %v2115 = vpack.c.bf16 %v1975, %v1907
        %v2116 = vpack.c.bf16 %v2111, %v2043
        %v2117 = vpack.c.bf16 %v1976, %v1908
        %v2118 = vpack.c.bf16 %v2112, %v2044
        %v2119 = vpack.c.bf16 %v1977, %v1909
        %v2120 = vpack.c.bf16 %v2113, %v2045
        %v2121 = vpack.c.bf16 %v1978, %v1910
        %v2122 = vpack.c.bf16 %v2114, %v2046
        %2127 = vrot.lane.b32.xlu0 %v1389, 96
        %v2128 = vpop.permute.xlu0 %2127
        %2129 = vrot.lane.b32.xlu0 %v1393, 96
        %v2130 = vpop.permute.xlu0 %2129
        %2131 = vrot.lane.b32.xlu0 %v1399, 96
        %v2132 = vpop.permute.xlu0 %2131
        %2133 = vrot.lane.b32.xlu0 %v1403, 96
        %v2134 = vpop.permute.xlu0 %2133
        %2139 = vrot.lane.b32.xlu0 %v1389, 64
        %v2140 = vpop.permute.xlu0 %2139
        %2141 = vrot.lane.b32.xlu0 %v1393, 64
        %v2142 = vpop.permute.xlu0 %2141
        %2143 = vrot.lane.b32.xlu0 %v1399, 64
        %v2144 = vpop.permute.xlu0 %2143
        %2145 = vrot.lane.b32.xlu0 %v1403, 64
        %v2146 = vpop.permute.xlu0 %2145
        %2151 = vrot.lane.b32.xlu0 %v1389, 32
        %v2152 = vpop.permute.xlu0 %2151
        %2153 = vrot.lane.b32.xlu0 %v1393, 32
        %v2154 = vpop.permute.xlu0 %2153
        %2155 = vrot.lane.b32.xlu0 %v1399, 32
        %v2156 = vpop.permute.xlu0 %2155
        %2157 = vrot.lane.b32.xlu0 %v1403, 32
        %v2158 = vpop.permute.xlu0 %2157
        %v2163 = vcombine.low %v1389, %v2140
        %v2164 = vcombine.high %v1389, %v2140
        %v2166 = vunpack.c.l.s4 1983009808
        %v2167 = vunpack.c.0.s8 %v2166
        %v2168 = vlaneseq
        %v2169 = vshrl.u32 %v2168, 7
        %v2170 = vsub.s32 %v2167, %v2169
        %v2171 = vrot.slane %v2163, %v2170
        %v2173 = vunpack.c.l.s4 1983009808
        %v2174 = vunpack.c.0.s8 %v2173
        %v2175 = vlaneseq
        %v2176 = vshrl.u32 %v2175, 7
        %v2177 = vsub.s32 %v2174, %v2176
        %v2178 = vrot.slane %v2164, %v2177
        %v2179 = vcombine.low %v2128, %v2152
        %v2180 = vcombine.high %v2128, %v2152
        %v2182 = vunpack.c.l.s4 1983009808
        %v2183 = vunpack.c.0.s8 %v2182
        %v2184 = vlaneseq
        %v2185 = vshrl.u32 %v2184, 7
        %v2186 = vsub.s32 %v2183, %v2185
        %v2187 = vrot.slane %v2179, %v2186
        %v2189 = vunpack.c.l.s4 1983009808
        %v2190 = vunpack.c.0.s8 %v2189
        %v2191 = vlaneseq
        %v2192 = vshrl.u32 %v2191, 7
        %v2193 = vsub.s32 %v2190, %v2192
        %v2194 = vrot.slane %v2180, %v2193
        %v2195 = vcombine.low %v2171, %v2187
        %v2196 = vcombine.high %v2171, %v2187
        %v2198 = vunpack.c.l.s4 1934713408
        %v2199 = vunpack.c.0.s8 %v2198
        %v2200 = vlaneseq
        %v2201 = vshrl.u32 %v2200, 7
        %v2202 = vsub.s32 %v2199, %v2201
        %v2203 = vrot.slane %v2195, %v2202
        %v2205 = vunpack.c.l.s4 1934713408
        %v2206 = vunpack.c.0.s8 %v2205
        %v2207 = vlaneseq
        %v2208 = vshrl.u32 %v2207, 7
        %v2209 = vsub.s32 %v2206, %v2208
        %v2210 = vrot.slane %v2196, %v2209
        %v2211 = vcombine.low %v2178, %v2194
        %v2212 = vcombine.high %v2178, %v2194
        %v2214 = vunpack.c.l.s4 1934713408
        %v2215 = vunpack.c.0.s8 %v2214
        %v2216 = vlaneseq
        %v2217 = vshrl.u32 %v2216, 7
        %v2218 = vsub.s32 %v2215, %v2217
        %v2219 = vrot.slane %v2211, %v2218
        %v2221 = vunpack.c.l.s4 1934713408
        %v2222 = vunpack.c.0.s8 %v2221
        %v2223 = vlaneseq
        %v2224 = vshrl.u32 %v2223, 7
        %v2225 = vsub.s32 %v2222, %v2224
        %v2226 = vrot.slane %v2212, %v2225
        %v2227 = vcombine.high %v2203, 0.0
        %v2228 = vcombine.high %v2210, 0.0
        %v2229 = vcombine.high %v2219, 0.0
        %v2230 = vcombine.high %v2226, 0.0
        %v2231 = vcombine.low %v1393, %v2142
        %v2232 = vcombine.high %v1393, %v2142
        %v2234 = vunpack.c.l.s4 1983009808
        %v2235 = vunpack.c.0.s8 %v2234
        %v2236 = vlaneseq
        %v2237 = vshrl.u32 %v2236, 7
        %v2238 = vsub.s32 %v2235, %v2237
        %v2239 = vrot.slane %v2231, %v2238
        %v2241 = vunpack.c.l.s4 1983009808
        %v2242 = vunpack.c.0.s8 %v2241
        %v2243 = vlaneseq
        %v2244 = vshrl.u32 %v2243, 7
        %v2245 = vsub.s32 %v2242, %v2244
        %v2246 = vrot.slane %v2232, %v2245
        %v2247 = vcombine.low %v2130, %v2154
        %v2248 = vcombine.high %v2130, %v2154
        %v2250 = vunpack.c.l.s4 1983009808
        %v2251 = vunpack.c.0.s8 %v2250
        %v2252 = vlaneseq
        %v2253 = vshrl.u32 %v2252, 7
        %v2254 = vsub.s32 %v2251, %v2253
        %v2255 = vrot.slane %v2247, %v2254
        %v2257 = vunpack.c.l.s4 1983009808
        %v2258 = vunpack.c.0.s8 %v2257
        %v2259 = vlaneseq
        %v2260 = vshrl.u32 %v2259, 7
        %v2261 = vsub.s32 %v2258, %v2260
        %v2262 = vrot.slane %v2248, %v2261
        %v2263 = vcombine.low %v2239, %v2255
        %v2264 = vcombine.high %v2239, %v2255
        %v2266 = vunpack.c.l.s4 1934713408
        %v2267 = vunpack.c.0.s8 %v2266
        %v2268 = vlaneseq
        %v2269 = vshrl.u32 %v2268, 7
        %v2270 = vsub.s32 %v2267, %v2269
        %v2271 = vrot.slane %v2263, %v2270
        %v2273 = vunpack.c.l.s4 1934713408
        %v2274 = vunpack.c.0.s8 %v2273
        %v2275 = vlaneseq
        %v2276 = vshrl.u32 %v2275, 7
        %v2277 = vsub.s32 %v2274, %v2276
        %v2278 = vrot.slane %v2264, %v2277
        %v2279 = vcombine.low %v2246, %v2262
        %v2280 = vcombine.high %v2246, %v2262
        %v2282 = vunpack.c.l.s4 1934713408
        %v2283 = vunpack.c.0.s8 %v2282
        %v2284 = vlaneseq
        %v2285 = vshrl.u32 %v2284, 7
        %v2286 = vsub.s32 %v2283, %v2285
        %v2287 = vrot.slane %v2279, %v2286
        %v2289 = vunpack.c.l.s4 1934713408
        %v2290 = vunpack.c.0.s8 %v2289
        %v2291 = vlaneseq
        %v2292 = vshrl.u32 %v2291, 7
        %v2293 = vsub.s32 %v2290, %v2292
        %v2294 = vrot.slane %v2280, %v2293
        %v2295 = vcombine.high %v2271, 0.0
        %v2296 = vcombine.high %v2278, 0.0
        %v2297 = vcombine.high %v2287, 0.0
        %v2298 = vcombine.high %v2294, 0.0
        %v2299 = vcombine.low %v1399, %v2144
        %v2300 = vcombine.high %v1399, %v2144
        %v2302 = vunpack.c.l.s4 1983009808
        %v2303 = vunpack.c.0.s8 %v2302
        %v2304 = vlaneseq
        %v2305 = vshrl.u32 %v2304, 7
        %v2306 = vsub.s32 %v2303, %v2305
        %v2307 = vrot.slane %v2299, %v2306
        %v2309 = vunpack.c.l.s4 1983009808
        %v2310 = vunpack.c.0.s8 %v2309
        %v2311 = vlaneseq
        %v2312 = vshrl.u32 %v2311, 7
        %v2313 = vsub.s32 %v2310, %v2312
        %v2314 = vrot.slane %v2300, %v2313
        %v2315 = vcombine.low %v2132, %v2156
        %v2316 = vcombine.high %v2132, %v2156
        %v2318 = vunpack.c.l.s4 1983009808
        %v2319 = vunpack.c.0.s8 %v2318
        %v2320 = vlaneseq
        %v2321 = vshrl.u32 %v2320, 7
        %v2322 = vsub.s32 %v2319, %v2321
        %v2323 = vrot.slane %v2315, %v2322
        %v2325 = vunpack.c.l.s4 1983009808
        %v2326 = vunpack.c.0.s8 %v2325
        %v2327 = vlaneseq
        %v2328 = vshrl.u32 %v2327, 7
        %v2329 = vsub.s32 %v2326, %v2328
        %v2330 = vrot.slane %v2316, %v2329
        %v2331 = vcombine.low %v2307, %v2323
        %v2332 = vcombine.high %v2307, %v2323
        %v2334 = vunpack.c.l.s4 1934713408
        %v2335 = vunpack.c.0.s8 %v2334
        %v2336 = vlaneseq
        %v2337 = vshrl.u32 %v2336, 7
        %v2338 = vsub.s32 %v2335, %v2337
        %v2339 = vrot.slane %v2331, %v2338
        %v2341 = vunpack.c.l.s4 1934713408
        %v2342 = vunpack.c.0.s8 %v2341
        %v2343 = vlaneseq
        %v2344 = vshrl.u32 %v2343, 7
        %v2345 = vsub.s32 %v2342, %v2344
        %v2346 = vrot.slane %v2332, %v2345
        %v2347 = vcombine.low %v2314, %v2330
        %v2348 = vcombine.high %v2314, %v2330
        %v2350 = vunpack.c.l.s4 1934713408
        %v2351 = vunpack.c.0.s8 %v2350
        %v2352 = vlaneseq
        %v2353 = vshrl.u32 %v2352, 7
        %v2354 = vsub.s32 %v2351, %v2353
        %v2355 = vrot.slane %v2347, %v2354
        %v2357 = vunpack.c.l.s4 1934713408
        %v2358 = vunpack.c.0.s8 %v2357
        %v2359 = vlaneseq
        %v2360 = vshrl.u32 %v2359, 7
        %v2361 = vsub.s32 %v2358, %v2360
        %v2362 = vrot.slane %v2348, %v2361
        %v2363 = vcombine.high %v2339, 0.0
        %v2364 = vcombine.high %v2346, 0.0
        %v2365 = vcombine.high %v2355, 0.0
        %v2366 = vcombine.high %v2362, 0.0
        %v2367 = vcombine.low %v1403, %v2146
        %v2368 = vcombine.high %v1403, %v2146
        %v2370 = vunpack.c.l.s4 1983009808
        %v2371 = vunpack.c.0.s8 %v2370
        %v2372 = vlaneseq
        %v2373 = vshrl.u32 %v2372, 7
        %v2374 = vsub.s32 %v2371, %v2373
        %v2375 = vrot.slane %v2367, %v2374
        %v2377 = vunpack.c.l.s4 1983009808
        %v2378 = vunpack.c.0.s8 %v2377
        %v2379 = vlaneseq
        %v2380 = vshrl.u32 %v2379, 7
        %v2381 = vsub.s32 %v2378, %v2380
        %v2382 = vrot.slane %v2368, %v2381
        %v2383 = vcombine.low %v2134, %v2158
        %v2384 = vcombine.high %v2134, %v2158
        %v2386 = vunpack.c.l.s4 1983009808
        %v2387 = vunpack.c.0.s8 %v2386
        %v2388 = vlaneseq
        %v2389 = vshrl.u32 %v2388, 7
        %v2390 = vsub.s32 %v2387, %v2389
        %v2391 = vrot.slane %v2383, %v2390
        %v2393 = vunpack.c.l.s4 1983009808
        %v2394 = vunpack.c.0.s8 %v2393
        %v2395 = vlaneseq
        %v2396 = vshrl.u32 %v2395, 7
        %v2397 = vsub.s32 %v2394, %v2396
        %v2398 = vrot.slane %v2384, %v2397
        %v2399 = vcombine.low %v2375, %v2391
        %v2400 = vcombine.high %v2375, %v2391
        %v2402 = vunpack.c.l.s4 1934713408
        %v2403 = vunpack.c.0.s8 %v2402
        %v2404 = vlaneseq
        %v2405 = vshrl.u32 %v2404, 7
        %v2406 = vsub.s32 %v2403, %v2405
        %v2407 = vrot.slane %v2399, %v2406
        %v2409 = vunpack.c.l.s4 1934713408
        %v2410 = vunpack.c.0.s8 %v2409
        %v2411 = vlaneseq
        %v2412 = vshrl.u32 %v2411, 7
        %v2413 = vsub.s32 %v2410, %v2412
        %v2414 = vrot.slane %v2400, %v2413
        %v2415 = vcombine.low %v2382, %v2398
        %v2416 = vcombine.high %v2382, %v2398
        %v2418 = vunpack.c.l.s4 1934713408
        %v2419 = vunpack.c.0.s8 %v2418
        %v2420 = vlaneseq
        %v2421 = vshrl.u32 %v2420, 7
        %v2422 = vsub.s32 %v2419, %v2421
        %v2423 = vrot.slane %v2415, %v2422
        %v2425 = vunpack.c.l.s4 1934713408
        %v2426 = vunpack.c.0.s8 %v2425
        %v2427 = vlaneseq
        %v2428 = vshrl.u32 %v2427, 7
        %v2429 = vsub.s32 %v2426, %v2428
        %v2430 = vrot.slane %v2416, %v2429
        %v2431 = vcombine.high %v2407, 0.0
        %v2432 = vcombine.high %v2414, 0.0
        %v2433 = vcombine.high %v2423, 0.0
        %v2434 = vcombine.high %v2430, 0.0
        %v2435 = vcombine.low %v2203, %v2210
        %v2437 = vunpack.c.l.s4 1983009808
        %v2438 = vunpack.c.0.s8 %v2437
        %v2439 = vlaneseq
        %v2440 = vshrl.u32 %v2439, 7
        %v2441 = vsub.s32 %v2438, %v2440
        %v2442 = vrot.slane %v2435, %v2441
        %v2443 = vcombine.low %v2227, %v2228
        %v2445 = vunpack.c.l.s4 1983009808
        %v2446 = vunpack.c.0.s8 %v2445
        %v2447 = vlaneseq
        %v2448 = vshrl.u32 %v2447, 7
        %v2449 = vsub.s32 %v2446, %v2448
        %v2450 = vrot.slane %v2443, %v2449
        %v2451 = vcombine.low %v2219, %v2226
        %v2453 = vunpack.c.l.s4 1983009808
        %v2454 = vunpack.c.0.s8 %v2453
        %v2455 = vlaneseq
        %v2456 = vshrl.u32 %v2455, 7
        %v2457 = vsub.s32 %v2454, %v2456
        %v2458 = vrot.slane %v2451, %v2457
        %v2459 = vcombine.low %v2229, %v2230
        %v2461 = vunpack.c.l.s4 1983009808
        %v2462 = vunpack.c.0.s8 %v2461
        %v2463 = vlaneseq
        %v2464 = vshrl.u32 %v2463, 7
        %v2465 = vsub.s32 %v2462, %v2464
        %v2466 = vrot.slane %v2459, %v2465
        %v2467 = vcombine.low %v2442, %v2450
        %v2468 = vcombine.high %v2442, %v2450
        %v2470 = vunpack.c.l.s4 1934713408
        %v2471 = vunpack.c.0.s8 %v2470
        %v2472 = vlaneseq
        %v2473 = vshrl.u32 %v2472, 7
        %v2474 = vsub.s32 %v2471, %v2473
        %v2475 = vrot.slane %v2467, %v2474
        %v2477 = vunpack.c.l.s4 1934713408
        %v2478 = vunpack.c.0.s8 %v2477
        %v2479 = vlaneseq
        %v2480 = vshrl.u32 %v2479, 7
        %v2481 = vsub.s32 %v2478, %v2480
        %v2482 = vrot.slane %v2468, %v2481
        %v2483 = vcombine.low %v2458, %v2466
        %v2484 = vcombine.high %v2458, %v2466
        %v2486 = vunpack.c.l.s4 1934713408
        %v2487 = vunpack.c.0.s8 %v2486
        %v2488 = vlaneseq
        %v2489 = vshrl.u32 %v2488, 7
        %v2490 = vsub.s32 %v2487, %v2489
        %v2491 = vrot.slane %v2483, %v2490
        %v2493 = vunpack.c.l.s4 1934713408
        %v2494 = vunpack.c.0.s8 %v2493
        %v2495 = vlaneseq
        %v2496 = vshrl.u32 %v2495, 7
        %v2497 = vsub.s32 %v2494, %v2496
        %v2498 = vrot.slane %v2484, %v2497
        %v2499 = vcombine.low %v2475, %v2491
        %v2500 = vcombine.high %v2475, %v2491
        %v2501 = vcombine.low %v2482, %v2498
        %v2502 = vcombine.high %v2482, %v2498
        %v2503 = vcombine.low %v2271, %v2278
        %v2505 = vunpack.c.l.s4 1983009808
        %v2506 = vunpack.c.0.s8 %v2505
        %v2507 = vlaneseq
        %v2508 = vshrl.u32 %v2507, 7
        %v2509 = vsub.s32 %v2506, %v2508
        %v2510 = vrot.slane %v2503, %v2509
        %v2511 = vcombine.low %v2295, %v2296
        %v2513 = vunpack.c.l.s4 1983009808
        %v2514 = vunpack.c.0.s8 %v2513
        %v2515 = vlaneseq
        %v2516 = vshrl.u32 %v2515, 7
        %v2517 = vsub.s32 %v2514, %v2516
        %v2518 = vrot.slane %v2511, %v2517
        %v2519 = vcombine.low %v2287, %v2294
        %v2521 = vunpack.c.l.s4 1983009808
        %v2522 = vunpack.c.0.s8 %v2521
        %v2523 = vlaneseq
        %v2524 = vshrl.u32 %v2523, 7
        %v2525 = vsub.s32 %v2522, %v2524
        %v2526 = vrot.slane %v2519, %v2525
        %v2527 = vcombine.low %v2297, %v2298
        %v2529 = vunpack.c.l.s4 1983009808
        %v2530 = vunpack.c.0.s8 %v2529
        %v2531 = vlaneseq
        %v2532 = vshrl.u32 %v2531, 7
        %v2533 = vsub.s32 %v2530, %v2532
        %v2534 = vrot.slane %v2527, %v2533
        %v2535 = vcombine.low %v2510, %v2518
        %v2536 = vcombine.high %v2510, %v2518
        %v2538 = vunpack.c.l.s4 1934713408
        %v2539 = vunpack.c.0.s8 %v2538
        %v2540 = vlaneseq
        %v2541 = vshrl.u32 %v2540, 7
        %v2542 = vsub.s32 %v2539, %v2541
        %v2543 = vrot.slane %v2535, %v2542
        %v2545 = vunpack.c.l.s4 1934713408
        %v2546 = vunpack.c.0.s8 %v2545
        %v2547 = vlaneseq
        %v2548 = vshrl.u32 %v2547, 7
        %v2549 = vsub.s32 %v2546, %v2548
        %v2550 = vrot.slane %v2536, %v2549
        %v2551 = vcombine.low %v2526, %v2534
        %v2552 = vcombine.high %v2526, %v2534
        %v2554 = vunpack.c.l.s4 1934713408
        %v2555 = vunpack.c.0.s8 %v2554
        %v2556 = vlaneseq
        %v2557 = vshrl.u32 %v2556, 7
        %v2558 = vsub.s32 %v2555, %v2557
        %v2559 = vrot.slane %v2551, %v2558
        %v2561 = vunpack.c.l.s4 1934713408
        %v2562 = vunpack.c.0.s8 %v2561
        %v2563 = vlaneseq
        %v2564 = vshrl.u32 %v2563, 7
        %v2565 = vsub.s32 %v2562, %v2564
        %v2566 = vrot.slane %v2552, %v2565
        %v2567 = vcombine.low %v2543, %v2559
        %v2568 = vcombine.high %v2543, %v2559
        %v2569 = vcombine.low %v2550, %v2566
        %v2570 = vcombine.high %v2550, %v2566
        %v2571 = vcombine.low %v2339, %v2346
        %v2573 = vunpack.c.l.s4 1983009808
        %v2574 = vunpack.c.0.s8 %v2573
        %v2575 = vlaneseq
        %v2576 = vshrl.u32 %v2575, 7
        %v2577 = vsub.s32 %v2574, %v2576
        %v2578 = vrot.slane %v2571, %v2577
        %v2579 = vcombine.low %v2363, %v2364
        %v2581 = vunpack.c.l.s4 1983009808
        %v2582 = vunpack.c.0.s8 %v2581
        %v2583 = vlaneseq
        %v2584 = vshrl.u32 %v2583, 7
        %v2585 = vsub.s32 %v2582, %v2584
        %v2586 = vrot.slane %v2579, %v2585
        %v2587 = vcombine.low %v2355, %v2362
        %v2589 = vunpack.c.l.s4 1983009808
        %v2590 = vunpack.c.0.s8 %v2589
        %v2591 = vlaneseq
        %v2592 = vshrl.u32 %v2591, 7
        %v2593 = vsub.s32 %v2590, %v2592
        %v2594 = vrot.slane %v2587, %v2593
        %v2595 = vcombine.low %v2365, %v2366
        %v2597 = vunpack.c.l.s4 1983009808
        %v2598 = vunpack.c.0.s8 %v2597
        %v2599 = vlaneseq
        %v2600 = vshrl.u32 %v2599, 7
        %v2601 = vsub.s32 %v2598, %v2600
        %v2602 = vrot.slane %v2595, %v2601
        %v2603 = vcombine.low %v2578, %v2586
        %v2604 = vcombine.high %v2578, %v2586
        %v2606 = vunpack.c.l.s4 1934713408
        %v2607 = vunpack.c.0.s8 %v2606
        %v2608 = vlaneseq
        %v2609 = vshrl.u32 %v2608, 7
        %v2610 = vsub.s32 %v2607, %v2609
        %v2611 = vrot.slane %v2603, %v2610
        %v2613 = vunpack.c.l.s4 1934713408
        %v2614 = vunpack.c.0.s8 %v2613
        %v2615 = vlaneseq
        %v2616 = vshrl.u32 %v2615, 7
        %v2617 = vsub.s32 %v2614, %v2616
        %v2618 = vrot.slane %v2604, %v2617
        %v2619 = vcombine.low %v2594, %v2602
        %v2620 = vcombine.high %v2594, %v2602
        %v2622 = vunpack.c.l.s4 1934713408
        %v2623 = vunpack.c.0.s8 %v2622
        %v2624 = vlaneseq
        %v2625 = vshrl.u32 %v2624, 7
        %v2626 = vsub.s32 %v2623, %v2625
        %v2627 = vrot.slane %v2619, %v2626
        %v2629 = vunpack.c.l.s4 1934713408
        %v2630 = vunpack.c.0.s8 %v2629
        %v2631 = vlaneseq
        %v2632 = vshrl.u32 %v2631, 7
        %v2633 = vsub.s32 %v2630, %v2632
        %v2634 = vrot.slane %v2620, %v2633
        %v2635 = vcombine.low %v2611, %v2627
        %v2636 = vcombine.high %v2611, %v2627
        %v2637 = vcombine.low %v2618, %v2634
        %v2638 = vcombine.high %v2618, %v2634
        %v2639 = vcombine.low %v2407, %v2414
        %v2641 = vunpack.c.l.s4 1983009808
        %v2642 = vunpack.c.0.s8 %v2641
        %v2643 = vlaneseq
        %v2644 = vshrl.u32 %v2643, 7
        %v2645 = vsub.s32 %v2642, %v2644
        %v2646 = vrot.slane %v2639, %v2645
        %v2647 = vcombine.low %v2431, %v2432
        %v2649 = vunpack.c.l.s4 1983009808
        %v2650 = vunpack.c.0.s8 %v2649
        %v2651 = vlaneseq
        %v2652 = vshrl.u32 %v2651, 7
        %v2653 = vsub.s32 %v2650, %v2652
        %v2654 = vrot.slane %v2647, %v2653
        %v2655 = vcombine.low %v2423, %v2430
        %v2657 = vunpack.c.l.s4 1983009808
        %v2658 = vunpack.c.0.s8 %v2657
        %v2659 = vlaneseq
        %v2660 = vshrl.u32 %v2659, 7
        %v2661 = vsub.s32 %v2658, %v2660
        %v2662 = vrot.slane %v2655, %v2661
        %v2663 = vcombine.low %v2433, %v2434
        %v2665 = vunpack.c.l.s4 1983009808
        %v2666 = vunpack.c.0.s8 %v2665
        %v2667 = vlaneseq
        %v2668 = vshrl.u32 %v2667, 7
        %v2669 = vsub.s32 %v2666, %v2668
        %v2670 = vrot.slane %v2663, %v2669
        %v2671 = vcombine.low %v2646, %v2654
        %v2672 = vcombine.high %v2646, %v2654
        %v2674 = vunpack.c.l.s4 1934713408
        %v2675 = vunpack.c.0.s8 %v2674
        %v2676 = vlaneseq
        %v2677 = vshrl.u32 %v2676, 7
        %v2678 = vsub.s32 %v2675, %v2677
        %v2679 = vrot.slane %v2671, %v2678
        %v2681 = vunpack.c.l.s4 1934713408
        %v2682 = vunpack.c.0.s8 %v2681
        %v2683 = vlaneseq
        %v2684 = vshrl.u32 %v2683, 7
        %v2685 = vsub.s32 %v2682, %v2684
        %v2686 = vrot.slane %v2672, %v2685
        %v2687 = vcombine.low %v2662, %v2670
        %v2688 = vcombine.high %v2662, %v2670
        %v2690 = vunpack.c.l.s4 1934713408
        %v2691 = vunpack.c.0.s8 %v2690
        %v2692 = vlaneseq
        %v2693 = vshrl.u32 %v2692, 7
        %v2694 = vsub.s32 %v2691, %v2693
        %v2695 = vrot.slane %v2687, %v2694
        %v2697 = vunpack.c.l.s4 1934713408
        %v2698 = vunpack.c.0.s8 %v2697
        %v2699 = vlaneseq
        %v2700 = vshrl.u32 %v2699, 7
        %v2701 = vsub.s32 %v2698, %v2700
        %v2702 = vrot.slane %v2688, %v2701
        %v2703 = vcombine.low %v2679, %v2695
        %v2704 = vcombine.high %v2679, %v2695
        %v2705 = vcombine.low %v2686, %v2702
        %v2706 = vcombine.high %v2686, %v2702
        %v2707 = vpack.c.bf16 %v2567, %v2499
        %v2708 = vpack.c.bf16 %v2703, %v2635
        %v2709 = vpack.c.bf16 %v2568, %v2500
        %v2710 = vpack.c.bf16 %v2704, %v2636
        %v2711 = vpack.c.bf16 %v2569, %v2501
        %v2712 = vpack.c.bf16 %v2705, %v2637
        %v2713 = vpack.c.bf16 %v2570, %v2502
        %v2714 = vpack.c.bf16 %v2706, %v2638
        %2719 = vrot.lane.b32.xlu0 %v1513, 96
        %v2720 = vpop.permute.xlu0 %2719
        %2721 = vrot.lane.b32.xlu0 %v1516, 96
        %v2722 = vpop.permute.xlu0 %2721
        %2723 = vrot.lane.b32.xlu0 %v1521, 96
        %v2724 = vpop.permute.xlu0 %2723
        %2725 = vrot.lane.b32.xlu0 %v1524, 96
        %v2726 = vpop.permute.xlu0 %2725
        %2731 = vrot.lane.b32.xlu0 %v1513, 64
        %v2732 = vpop.permute.xlu0 %2731
        %2733 = vrot.lane.b32.xlu0 %v1516, 64
        %v2734 = vpop.permute.xlu0 %2733
        %2735 = vrot.lane.b32.xlu0 %v1521, 64
        %v2736 = vpop.permute.xlu0 %2735
        %2737 = vrot.lane.b32.xlu0 %v1524, 64
        %v2738 = vpop.permute.xlu0 %2737
        %2743 = vrot.lane.b32.xlu0 %v1513, 32
        %v2744 = vpop.permute.xlu0 %2743
        %2745 = vrot.lane.b32.xlu0 %v1516, 32
        %v2746 = vpop.permute.xlu0 %2745
        %2747 = vrot.lane.b32.xlu0 %v1521, 32
        %v2748 = vpop.permute.xlu0 %2747
        %2749 = vrot.lane.b32.xlu0 %v1524, 32
        %v2750 = vpop.permute.xlu0 %2749
        %v2755 = vcombine.low %v1513, %v2732
        %v2756 = vcombine.high %v1513, %v2732
        %v2758 = vunpack.c.l.s4 1983009808
        %v2759 = vunpack.c.0.s8 %v2758
        %v2760 = vlaneseq
        %v2761 = vshrl.u32 %v2760, 7
        %v2762 = vsub.s32 %v2759, %v2761
        %v2763 = vrot.slane %v2755, %v2762
        %v2765 = vunpack.c.l.s4 1983009808
        %v2766 = vunpack.c.0.s8 %v2765
        %v2767 = vlaneseq
        %v2768 = vshrl.u32 %v2767, 7
        %v2769 = vsub.s32 %v2766, %v2768
        %v2770 = vrot.slane %v2756, %v2769
        %v2771 = vcombine.low %v2720, %v2744
        %v2772 = vcombine.high %v2720, %v2744
        %v2774 = vunpack.c.l.s4 1983009808
        %v2775 = vunpack.c.0.s8 %v2774
        %v2776 = vlaneseq
        %v2777 = vshrl.u32 %v2776, 7
        %v2778 = vsub.s32 %v2775, %v2777
        %v2779 = vrot.slane %v2771, %v2778
        %v2781 = vunpack.c.l.s4 1983009808
        %v2782 = vunpack.c.0.s8 %v2781
        %v2783 = vlaneseq
        %v2784 = vshrl.u32 %v2783, 7
        %v2785 = vsub.s32 %v2782, %v2784
        %v2786 = vrot.slane %v2772, %v2785
        %v2787 = vcombine.low %v2763, %v2779
        %v2788 = vcombine.high %v2763, %v2779
        %v2790 = vunpack.c.l.s4 1934713408
        %v2791 = vunpack.c.0.s8 %v2790
        %v2792 = vlaneseq
        %v2793 = vshrl.u32 %v2792, 7
        %v2794 = vsub.s32 %v2791, %v2793
        %v2795 = vrot.slane %v2787, %v2794
        %v2797 = vunpack.c.l.s4 1934713408
        %v2798 = vunpack.c.0.s8 %v2797
        %v2799 = vlaneseq
        %v2800 = vshrl.u32 %v2799, 7
        %v2801 = vsub.s32 %v2798, %v2800
        %v2802 = vrot.slane %v2788, %v2801
        %v2803 = vcombine.low %v2770, %v2786
        %v2804 = vcombine.high %v2770, %v2786
        %v2806 = vunpack.c.l.s4 1934713408
        %v2807 = vunpack.c.0.s8 %v2806
        %v2808 = vlaneseq
        %v2809 = vshrl.u32 %v2808, 7
        %v2810 = vsub.s32 %v2807, %v2809
        %v2811 = vrot.slane %v2803, %v2810
        %v2813 = vunpack.c.l.s4 1934713408
        %v2814 = vunpack.c.0.s8 %v2813
        %v2815 = vlaneseq
        %v2816 = vshrl.u32 %v2815, 7
        %v2817 = vsub.s32 %v2814, %v2816
        %v2818 = vrot.slane %v2804, %v2817
        %v2819 = vcombine.high %v2795, 0.0
        %v2820 = vcombine.high %v2802, 0.0
        %v2821 = vcombine.high %v2811, 0.0
        %v2822 = vcombine.high %v2818, 0.0
        %v2823 = vcombine.low %v1516, %v2734
        %v2824 = vcombine.high %v1516, %v2734
        %v2826 = vunpack.c.l.s4 1983009808
        %v2827 = vunpack.c.0.s8 %v2826
        %v2828 = vlaneseq
        %v2829 = vshrl.u32 %v2828, 7
        %v2830 = vsub.s32 %v2827, %v2829
        %v2831 = vrot.slane %v2823, %v2830
        %v2833 = vunpack.c.l.s4 1983009808
        %v2834 = vunpack.c.0.s8 %v2833
        %v2835 = vlaneseq
        %v2836 = vshrl.u32 %v2835, 7
        %v2837 = vsub.s32 %v2834, %v2836
        %v2838 = vrot.slane %v2824, %v2837
        %v2839 = vcombine.low %v2722, %v2746
        %v2840 = vcombine.high %v2722, %v2746
        %v2842 = vunpack.c.l.s4 1983009808
        %v2843 = vunpack.c.0.s8 %v2842
        %v2844 = vlaneseq
        %v2845 = vshrl.u32 %v2844, 7
        %v2846 = vsub.s32 %v2843, %v2845
        %v2847 = vrot.slane %v2839, %v2846
        %v2849 = vunpack.c.l.s4 1983009808
        %v2850 = vunpack.c.0.s8 %v2849
        %v2851 = vlaneseq
        %v2852 = vshrl.u32 %v2851, 7
        %v2853 = vsub.s32 %v2850, %v2852
        %v2854 = vrot.slane %v2840, %v2853
        %v2855 = vcombine.low %v2831, %v2847
        %v2856 = vcombine.high %v2831, %v2847
        %v2858 = vunpack.c.l.s4 1934713408
        %v2859 = vunpack.c.0.s8 %v2858
        %v2860 = vlaneseq
        %v2861 = vshrl.u32 %v2860, 7
        %v2862 = vsub.s32 %v2859, %v2861
        %v2863 = vrot.slane %v2855, %v2862
        %v2865 = vunpack.c.l.s4 1934713408
        %v2866 = vunpack.c.0.s8 %v2865
        %v2867 = vlaneseq
        %v2868 = vshrl.u32 %v2867, 7
        %v2869 = vsub.s32 %v2866, %v2868
        %v2870 = vrot.slane %v2856, %v2869
        %v2871 = vcombine.low %v2838, %v2854
        %v2872 = vcombine.high %v2838, %v2854
        %v2874 = vunpack.c.l.s4 1934713408
        %v2875 = vunpack.c.0.s8 %v2874
        %v2876 = vlaneseq
        %v2877 = vshrl.u32 %v2876, 7
        %v2878 = vsub.s32 %v2875, %v2877
        %v2879 = vrot.slane %v2871, %v2878
        %v2881 = vunpack.c.l.s4 1934713408
        %v2882 = vunpack.c.0.s8 %v2881
        %v2883 = vlaneseq
        %v2884 = vshrl.u32 %v2883, 7
        %v2885 = vsub.s32 %v2882, %v2884
        %v2886 = vrot.slane %v2872, %v2885
        %v2887 = vcombine.high %v2863, 0.0
        %v2888 = vcombine.high %v2870, 0.0
        %v2889 = vcombine.high %v2879, 0.0
        %v2890 = vcombine.high %v2886, 0.0
        %v2891 = vcombine.low %v1521, %v2736
        %v2892 = vcombine.high %v1521, %v2736
        %v2894 = vunpack.c.l.s4 1983009808
        %v2895 = vunpack.c.0.s8 %v2894
        %v2896 = vlaneseq
        %v2897 = vshrl.u32 %v2896, 7
        %v2898 = vsub.s32 %v2895, %v2897
        %v2899 = vrot.slane %v2891, %v2898
        %v2901 = vunpack.c.l.s4 1983009808
        %v2902 = vunpack.c.0.s8 %v2901
        %v2903 = vlaneseq
        %v2904 = vshrl.u32 %v2903, 7
        %v2905 = vsub.s32 %v2902, %v2904
        %v2906 = vrot.slane %v2892, %v2905
        %v2907 = vcombine.low %v2724, %v2748
        %v2908 = vcombine.high %v2724, %v2748
        %v2910 = vunpack.c.l.s4 1983009808
        %v2911 = vunpack.c.0.s8 %v2910
        %v2912 = vlaneseq
        %v2913 = vshrl.u32 %v2912, 7
        %v2914 = vsub.s32 %v2911, %v2913
        %v2915 = vrot.slane %v2907, %v2914
        %v2917 = vunpack.c.l.s4 1983009808
        %v2918 = vunpack.c.0.s8 %v2917
        %v2919 = vlaneseq
        %v2920 = vshrl.u32 %v2919, 7
        %v2921 = vsub.s32 %v2918, %v2920
        %v2922 = vrot.slane %v2908, %v2921
        %v2923 = vcombine.low %v2899, %v2915
        %v2924 = vcombine.high %v2899, %v2915
        %v2926 = vunpack.c.l.s4 1934713408
        %v2927 = vunpack.c.0.s8 %v2926
        %v2928 = vlaneseq
        %v2929 = vshrl.u32 %v2928, 7
        %v2930 = vsub.s32 %v2927, %v2929
        %v2931 = vrot.slane %v2923, %v2930
        %v2933 = vunpack.c.l.s4 1934713408
        %v2934 = vunpack.c.0.s8 %v2933
        %v2935 = vlaneseq
        %v2936 = vshrl.u32 %v2935, 7
        %v2937 = vsub.s32 %v2934, %v2936
        %v2938 = vrot.slane %v2924, %v2937
        %v2939 = vcombine.low %v2906, %v2922
        %v2940 = vcombine.high %v2906, %v2922
        %v2942 = vunpack.c.l.s4 1934713408
        %v2943 = vunpack.c.0.s8 %v2942
        %v2944 = vlaneseq
        %v2945 = vshrl.u32 %v2944, 7
        %v2946 = vsub.s32 %v2943, %v2945
        %v2947 = vrot.slane %v2939, %v2946
        %v2949 = vunpack.c.l.s4 1934713408
        %v2950 = vunpack.c.0.s8 %v2949
        %v2951 = vlaneseq
        %v2952 = vshrl.u32 %v2951, 7
        %v2953 = vsub.s32 %v2950, %v2952
        %v2954 = vrot.slane %v2940, %v2953
        %v2955 = vcombine.high %v2931, 0.0
        %v2956 = vcombine.high %v2938, 0.0
        %v2957 = vcombine.high %v2947, 0.0
        %v2958 = vcombine.high %v2954, 0.0
        %v2959 = vcombine.low %v1524, %v2738
        %v2960 = vcombine.high %v1524, %v2738
        %v2962 = vunpack.c.l.s4 1983009808
        %v2963 = vunpack.c.0.s8 %v2962
        %v2964 = vlaneseq
        %v2965 = vshrl.u32 %v2964, 7
        %v2966 = vsub.s32 %v2963, %v2965
        %v2967 = vrot.slane %v2959, %v2966
        %v2969 = vunpack.c.l.s4 1983009808
        %v2970 = vunpack.c.0.s8 %v2969
        %v2971 = vlaneseq
        %v2972 = vshrl.u32 %v2971, 7
        %v2973 = vsub.s32 %v2970, %v2972
        %v2974 = vrot.slane %v2960, %v2973
        %v2975 = vcombine.low %v2726, %v2750
        %v2976 = vcombine.high %v2726, %v2750
        %v2978 = vunpack.c.l.s4 1983009808
        %v2979 = vunpack.c.0.s8 %v2978
        %v2980 = vlaneseq
        %v2981 = vshrl.u32 %v2980, 7
        %v2982 = vsub.s32 %v2979, %v2981
        %v2983 = vrot.slane %v2975, %v2982
        %v2985 = vunpack.c.l.s4 1983009808
        %v2986 = vunpack.c.0.s8 %v2985
        %v2987 = vlaneseq
        %v2988 = vshrl.u32 %v2987, 7
        %v2989 = vsub.s32 %v2986, %v2988
        %v2990 = vrot.slane %v2976, %v2989
        %v2991 = vcombine.low %v2967, %v2983
        %v2992 = vcombine.high %v2967, %v2983
        %v2994 = vunpack.c.l.s4 1934713408
        %v2995 = vunpack.c.0.s8 %v2994
        %v2996 = vlaneseq
        %v2997 = vshrl.u32 %v2996, 7
        %v2998 = vsub.s32 %v2995, %v2997
        %v2999 = vrot.slane %v2991, %v2998
        %v3001 = vunpack.c.l.s4 1934713408
        %v3002 = vunpack.c.0.s8 %v3001
        %v3003 = vlaneseq
        %v3004 = vshrl.u32 %v3003, 7
        %v3005 = vsub.s32 %v3002, %v3004
        %v3006 = vrot.slane %v2992, %v3005
        %v3007 = vcombine.low %v2974, %v2990
        %v3008 = vcombine.high %v2974, %v2990
        %v3010 = vunpack.c.l.s4 1934713408
        %v3011 = vunpack.c.0.s8 %v3010
        %v3012 = vlaneseq
        %v3013 = vshrl.u32 %v3012, 7
        %v3014 = vsub.s32 %v3011, %v3013
        %v3015 = vrot.slane %v3007, %v3014
        %v3017 = vunpack.c.l.s4 1934713408
        %v3018 = vunpack.c.0.s8 %v3017
        %v3019 = vlaneseq
        %v3020 = vshrl.u32 %v3019, 7
        %v3021 = vsub.s32 %v3018, %v3020
        %v3022 = vrot.slane %v3008, %v3021
        %v3023 = vcombine.high %v2999, 0.0
        %v3024 = vcombine.high %v3006, 0.0
        %v3025 = vcombine.high %v3015, 0.0
        %v3026 = vcombine.high %v3022, 0.0
        %v3027 = vcombine.low %v2795, %v2802
        %v3029 = vunpack.c.l.s4 1983009808
        %v3030 = vunpack.c.0.s8 %v3029
        %v3031 = vlaneseq
        %v3032 = vshrl.u32 %v3031, 7
        %v3033 = vsub.s32 %v3030, %v3032
        %v3034 = vrot.slane %v3027, %v3033
        %v3035 = vcombine.low %v2819, %v2820
        %v3037 = vunpack.c.l.s4 1983009808
        %v3038 = vunpack.c.0.s8 %v3037
        %v3039 = vlaneseq
        %v3040 = vshrl.u32 %v3039, 7
        %v3041 = vsub.s32 %v3038, %v3040
        %v3042 = vrot.slane %v3035, %v3041
        %v3043 = vcombine.low %v2811, %v2818
        %v3045 = vunpack.c.l.s4 1983009808
        %v3046 = vunpack.c.0.s8 %v3045
        %v3047 = vlaneseq
        %v3048 = vshrl.u32 %v3047, 7
        %v3049 = vsub.s32 %v3046, %v3048
        %v3050 = vrot.slane %v3043, %v3049
        %v3051 = vcombine.low %v2821, %v2822
        %v3053 = vunpack.c.l.s4 1983009808
        %v3054 = vunpack.c.0.s8 %v3053
        %v3055 = vlaneseq
        %v3056 = vshrl.u32 %v3055, 7
        %v3057 = vsub.s32 %v3054, %v3056
        %v3058 = vrot.slane %v3051, %v3057
        %v3059 = vcombine.low %v3034, %v3042
        %v3060 = vcombine.high %v3034, %v3042
        %v3062 = vunpack.c.l.s4 1934713408
        %v3063 = vunpack.c.0.s8 %v3062
        %v3064 = vlaneseq
        %v3065 = vshrl.u32 %v3064, 7
        %v3066 = vsub.s32 %v3063, %v3065
        %v3067 = vrot.slane %v3059, %v3066
        %v3069 = vunpack.c.l.s4 1934713408
        %v3070 = vunpack.c.0.s8 %v3069
        %v3071 = vlaneseq
        %v3072 = vshrl.u32 %v3071, 7
        %v3073 = vsub.s32 %v3070, %v3072
        %v3074 = vrot.slane %v3060, %v3073
        %v3075 = vcombine.low %v3050, %v3058
        %v3076 = vcombine.high %v3050, %v3058
        %v3078 = vunpack.c.l.s4 1934713408
        %v3079 = vunpack.c.0.s8 %v3078
        %v3080 = vlaneseq
        %v3081 = vshrl.u32 %v3080, 7
        %v3082 = vsub.s32 %v3079, %v3081
        %v3083 = vrot.slane %v3075, %v3082
        %v3085 = vunpack.c.l.s4 1934713408
        %v3086 = vunpack.c.0.s8 %v3085
        %v3087 = vlaneseq
        %v3088 = vshrl.u32 %v3087, 7
        %v3089 = vsub.s32 %v3086, %v3088
        %v3090 = vrot.slane %v3076, %v3089
        %v3091 = vcombine.low %v3067, %v3083
        %v3092 = vcombine.high %v3067, %v3083
        %v3093 = vcombine.low %v3074, %v3090
        %v3094 = vcombine.high %v3074, %v3090
        %v3095 = vcombine.low %v2863, %v2870
        %v3097 = vunpack.c.l.s4 1983009808
        %v3098 = vunpack.c.0.s8 %v3097
        %v3099 = vlaneseq
        %v3100 = vshrl.u32 %v3099, 7
        %v3101 = vsub.s32 %v3098, %v3100
        %v3102 = vrot.slane %v3095, %v3101
        %v3103 = vcombine.low %v2887, %v2888
        %v3105 = vunpack.c.l.s4 1983009808
        %v3106 = vunpack.c.0.s8 %v3105
        %v3107 = vlaneseq
        %v3108 = vshrl.u32 %v3107, 7
        %v3109 = vsub.s32 %v3106, %v3108
        %v3110 = vrot.slane %v3103, %v3109
        %v3111 = vcombine.low %v2879, %v2886
        %v3113 = vunpack.c.l.s4 1983009808
        %v3114 = vunpack.c.0.s8 %v3113
        %v3115 = vlaneseq
        %v3116 = vshrl.u32 %v3115, 7
        %v3117 = vsub.s32 %v3114, %v3116
        %v3118 = vrot.slane %v3111, %v3117
        %v3119 = vcombine.low %v2889, %v2890
        %v3121 = vunpack.c.l.s4 1983009808
        %v3122 = vunpack.c.0.s8 %v3121
        %v3123 = vlaneseq
        %v3124 = vshrl.u32 %v3123, 7
        %v3125 = vsub.s32 %v3122, %v3124
        %v3126 = vrot.slane %v3119, %v3125
        %v3127 = vcombine.low %v3102, %v3110
        %v3128 = vcombine.high %v3102, %v3110
        %v3130 = vunpack.c.l.s4 1934713408
        %v3131 = vunpack.c.0.s8 %v3130
        %v3132 = vlaneseq
        %v3133 = vshrl.u32 %v3132, 7
        %v3134 = vsub.s32 %v3131, %v3133
        %v3135 = vrot.slane %v3127, %v3134
        %v3137 = vunpack.c.l.s4 1934713408
        %v3138 = vunpack.c.0.s8 %v3137
        %v3139 = vlaneseq
        %v3140 = vshrl.u32 %v3139, 7
        %v3141 = vsub.s32 %v3138, %v3140
        %v3142 = vrot.slane %v3128, %v3141
        %v3143 = vcombine.low %v3118, %v3126
        %v3144 = vcombine.high %v3118, %v3126
        %v3146 = vunpack.c.l.s4 1934713408
        %v3147 = vunpack.c.0.s8 %v3146
        %v3148 = vlaneseq
        %v3149 = vshrl.u32 %v3148, 7
        %v3150 = vsub.s32 %v3147, %v3149
        %v3151 = vrot.slane %v3143, %v3150
        %v3153 = vunpack.c.l.s4 1934713408
        %v3154 = vunpack.c.0.s8 %v3153
        %v3155 = vlaneseq
        %v3156 = vshrl.u32 %v3155, 7
        %v3157 = vsub.s32 %v3154, %v3156
        %v3158 = vrot.slane %v3144, %v3157
        %v3159 = vcombine.low %v3135, %v3151
        %v3160 = vcombine.high %v3135, %v3151
        %v3161 = vcombine.low %v3142, %v3158
        %v3162 = vcombine.high %v3142, %v3158
        %v3163 = vcombine.low %v2931, %v2938
        %v3165 = vunpack.c.l.s4 1983009808
        %v3166 = vunpack.c.0.s8 %v3165
        %v3167 = vlaneseq
        %v3168 = vshrl.u32 %v3167, 7
        %v3169 = vsub.s32 %v3166, %v3168
        %v3170 = vrot.slane %v3163, %v3169
        %v3171 = vcombine.low %v2955, %v2956
        %v3173 = vunpack.c.l.s4 1983009808
        %v3174 = vunpack.c.0.s8 %v3173
        %v3175 = vlaneseq
        %v3176 = vshrl.u32 %v3175, 7
        %v3177 = vsub.s32 %v3174, %v3176
        %v3178 = vrot.slane %v3171, %v3177
        %v3179 = vcombine.low %v2947, %v2954
        %v3181 = vunpack.c.l.s4 1983009808
        %v3182 = vunpack.c.0.s8 %v3181
        %v3183 = vlaneseq
        %v3184 = vshrl.u32 %v3183, 7
        %v3185 = vsub.s32 %v3182, %v3184
        %v3186 = vrot.slane %v3179, %v3185
        %v3187 = vcombine.low %v2957, %v2958
        %v3189 = vunpack.c.l.s4 1983009808
        %v3190 = vunpack.c.0.s8 %v3189
        %v3191 = vlaneseq
        %v3192 = vshrl.u32 %v3191, 7
        %v3193 = vsub.s32 %v3190, %v3192
        %v3194 = vrot.slane %v3187, %v3193
        %v3195 = vcombine.low %v3170, %v3178
        %v3196 = vcombine.high %v3170, %v3178
        %v3198 = vunpack.c.l.s4 1934713408
        %v3199 = vunpack.c.0.s8 %v3198
        %v3200 = vlaneseq
        %v3201 = vshrl.u32 %v3200, 7
        %v3202 = vsub.s32 %v3199, %v3201
        %v3203 = vrot.slane %v3195, %v3202
        %v3205 = vunpack.c.l.s4 1934713408
        %v3206 = vunpack.c.0.s8 %v3205
        %v3207 = vlaneseq
        %v3208 = vshrl.u32 %v3207, 7
        %v3209 = vsub.s32 %v3206, %v3208
        %v3210 = vrot.slane %v3196, %v3209
        %v3211 = vcombine.low %v3186, %v3194
        %v3212 = vcombine.high %v3186, %v3194
        %v3214 = vunpack.c.l.s4 1934713408
        %v3215 = vunpack.c.0.s8 %v3214
        %v3216 = vlaneseq
        %v3217 = vshrl.u32 %v3216, 7
        %v3218 = vsub.s32 %v3215, %v3217
        %v3219 = vrot.slane %v3211, %v3218
        %v3221 = vunpack.c.l.s4 1934713408
        %v3222 = vunpack.c.0.s8 %v3221
        %v3223 = vlaneseq
        %v3224 = vshrl.u32 %v3223, 7
        %v3225 = vsub.s32 %v3222, %v3224
        %v3226 = vrot.slane %v3212, %v3225
        %v3227 = vcombine.low %v3203, %v3219
        %v3228 = vcombine.high %v3203, %v3219
        %v3229 = vcombine.low %v3210, %v3226
        %v3230 = vcombine.high %v3210, %v3226
        %v3231 = vcombine.low %v2999, %v3006
        %v3233 = vunpack.c.l.s4 1983009808
        %v3234 = vunpack.c.0.s8 %v3233
        %v3235 = vlaneseq
        %v3236 = vshrl.u32 %v3235, 7
        %v3237 = vsub.s32 %v3234, %v3236
        %v3238 = vrot.slane %v3231, %v3237
        %v3239 = vcombine.low %v3023, %v3024
        %v3241 = vunpack.c.l.s4 1983009808
        %v3242 = vunpack.c.0.s8 %v3241
        %v3243 = vlaneseq
        %v3244 = vshrl.u32 %v3243, 7
        %v3245 = vsub.s32 %v3242, %v3244
        %v3246 = vrot.slane %v3239, %v3245
        %v3247 = vcombine.low %v3015, %v3022
        %v3249 = vunpack.c.l.s4 1983009808
        %v3250 = vunpack.c.0.s8 %v3249
        %v3251 = vlaneseq
        %v3252 = vshrl.u32 %v3251, 7
        %v3253 = vsub.s32 %v3250, %v3252
        %v3254 = vrot.slane %v3247, %v3253
        %v3255 = vcombine.low %v3025, %v3026
        %v3257 = vunpack.c.l.s4 1983009808
        %v3258 = vunpack.c.0.s8 %v3257
        %v3259 = vlaneseq
        %v3260 = vshrl.u32 %v3259, 7
        %v3261 = vsub.s32 %v3258, %v3260
        %v3262 = vrot.slane %v3255, %v3261
        %v3263 = vcombine.low %v3238, %v3246
        %v3264 = vcombine.high %v3238, %v3246
        %v3266 = vunpack.c.l.s4 1934713408
        %v3267 = vunpack.c.0.s8 %v3266
        %v3268 = vlaneseq
        %v3269 = vshrl.u32 %v3268, 7
        %v3270 = vsub.s32 %v3267, %v3269
        %v3271 = vrot.slane %v3263, %v3270
        %v3273 = vunpack.c.l.s4 1934713408
        %v3274 = vunpack.c.0.s8 %v3273
        %v3275 = vlaneseq
        %v3276 = vshrl.u32 %v3275, 7
        %v3277 = vsub.s32 %v3274, %v3276
        %v3278 = vrot.slane %v3264, %v3277
        %v3279 = vcombine.low %v3254, %v3262
        %v3280 = vcombine.high %v3254, %v3262
        %v3282 = vunpack.c.l.s4 1934713408
        %v3283 = vunpack.c.0.s8 %v3282
        %v3284 = vlaneseq
        %v3285 = vshrl.u32 %v3284, 7
        %v3286 = vsub.s32 %v3283, %v3285
        %v3287 = vrot.slane %v3279, %v3286
        %v3289 = vunpack.c.l.s4 1934713408
        %v3290 = vunpack.c.0.s8 %v3289
        %v3291 = vlaneseq
        %v3292 = vshrl.u32 %v3291, 7
        %v3293 = vsub.s32 %v3290, %v3292
        %v3294 = vrot.slane %v3280, %v3293
        %v3295 = vcombine.low %v3271, %v3287
        %v3296 = vcombine.high %v3271, %v3287
        %v3297 = vcombine.low %v3278, %v3294
        %v3298 = vcombine.high %v3278, %v3294
        %v3299 = vpack.c.bf16 %v3159, %v3091
        %v3300 = vpack.c.bf16 %v3295, %v3227
        %v3301 = vpack.c.bf16 %v3160, %v3092
        %v3302 = vpack.c.bf16 %v3296, %v3228
        %v3303 = vpack.c.bf16 %v3161, %v3093
        %v3304 = vpack.c.bf16 %v3297, %v3229
        %v3305 = vpack.c.bf16 %v3162, %v3094
        %v3306 = vpack.c.bf16 %v3298, %v3230
        %vm3307 = vcmask 261120
        %v3309 = vsel %vm3307, %v2115, 0
        %v3312 = vsel %vm3307, %v2707, 0
        %3314 = vmatprep.subr.bf16.mxu0 0
        %3315 = vmatpush1.bf16.xpose.msra.mxu0 %v3312
        %3316 = vmatprep.subr.bf16.mxu0 0
        %3317 = vmatpush1.bf16.xpose.msra.mxu0 0
        %3318 = vmatprep.subr.bf16.mxu0 0
        %3319 = vmatpush1.bf16.xpose.msra.mxu0 0
        %3320 = vmatprep.subr.bf16.mxu0 0
        %3321 = vmatpush1.bf16.xpose.msra.mxu0 0
        %3322 = vmatprep.subr.bf16.mxu0 0
        %3323 = vmatpush1.bf16.xpose.msra.mxu0 0
        %3324 = vmatprep.subr.bf16.mxu0 0
        %3325 = vmatpush1.bf16.xpose.msra.mxu0 0
        %3326 = vmatprep.subr.bf16.mxu0 0
        %3327 = vmatpush1.bf16.xpose.msra.mxu0 0
        %3328 = vmatprep.subr.bf16.mxu0 0
        %3329 = vmatpush1.bf16.xpose.msra.mxu0 0
        %3330 = vmatprep.subr.bf16.mxu0 0
        %3331 = vmatpush1.bf16.xpose.msra.mxu0 0
        %3332 = vmatprep.subr.bf16.mxu0 0
        %3333 = vmatpush1.bf16.xpose.msra.mxu0 0
        %3334 = vmatprep.subr.bf16.mxu0 0
        %3335 = vmatpush1.bf16.xpose.msra.mxu0 0
        %3336 = vmatprep.subr.bf16.mxu0 0
        %3337 = vmatpush1.bf16.xpose.msra.mxu0 0
        %3338 = vmatprep.subr.bf16.mxu0 0
        %3339 = vmatpush1.bf16.xpose.msra.mxu0 0
        %3340 = vmatprep.subr.bf16.mxu0 0
        %3341 = vmatpush1.bf16.xpose.msra.mxu0 0
        %3342 = vmatprep.subr.bf16.mxu0 0
        %3343 = vmatpush1.bf16.xpose.msra.mxu0 0
        %3344 = vmatprep.subr.bf16.mxu0 0
        %3345 = vmatpush1.bf16.xpose.msra.mxu0 0
        %3346 = vmatprep.mubr.bf16.mxu0 0
        %3347 = vmatmul.mubr.bf16.gmra.mrb[0].mxu0 %v3309
        %v3348 = vpop.f32.mrb[0].mxu0
        %v3349 = vadd.f32 0.0, %v3348
        %v3350 = vpop.f32.mrb[0].mxu0
        %v3351 = vpop.f32.mrb[0].mxu0
        %v3352 = vadd.f32 0.0, %v3351
        %v3353 = vpop.f32.mrb[0].mxu0
        %3354 = vdwg.mxu0
        %v3356 = vsel %vm3307, %v2116, 0
        %v3359 = vsel %vm3307, %v2708, 0
        %3361 = vmatprep.subr.bf16.mxu0 0
        %3362 = vmatpush1.bf16.xpose.msra.mxu0 %v3359
        %3363 = vmatprep.subr.bf16.mxu0 0
        %3364 = vmatpush1.bf16.xpose.msra.mxu0 0
        %3365 = vmatprep.subr.bf16.mxu0 0
        %3366 = vmatpush1.bf16.xpose.msra.mxu0 0
        %3367 = vmatprep.subr.bf16.mxu0 0
        %3368 = vmatpush1.bf16.xpose.msra.mxu0 0
        %3369 = vmatprep.subr.bf16.mxu0 0
        %3370 = vmatpush1.bf16.xpose.msra.mxu0 0
        %3371 = vmatprep.subr.bf16.mxu0 0
        %3372 = vmatpush1.bf16.xpose.msra.mxu0 0
        %3373 = vmatprep.subr.bf16.mxu0 0
        %3374 = vmatpush1.bf16.xpose.msra.mxu0 0
        %3375 = vmatprep.subr.bf16.mxu0 0
        %3376 = vmatpush1.bf16.xpose.msra.mxu0 0
        %3377 = vmatprep.subr.bf16.mxu0 0
        %3378 = vmatpush1.bf16.xpose.msra.mxu0 0
        %3379 = vmatprep.subr.bf16.mxu0 0
        %3380 = vmatpush1.bf16.xpose.msra.mxu0 0
        %3381 = vmatprep.subr.bf16.mxu0 0
        %3382 = vmatpush1.bf16.xpose.msra.mxu0 0
        %3383 = vmatprep.subr.bf16.mxu0 0
        %3384 = vmatpush1.bf16.xpose.msra.mxu0 0
        %3385 = vmatprep.subr.bf16.mxu0 0
        %3386 = vmatpush1.bf16.xpose.msra.mxu0 0
        %3387 = vmatprep.subr.bf16.mxu0 0
        %3388 = vmatpush1.bf16.xpose.msra.mxu0 0
        %3389 = vmatprep.subr.bf16.mxu0 0
        %3390 = vmatpush1.bf16.xpose.msra.mxu0 0
        %3391 = vmatprep.subr.bf16.mxu0 0
        %3392 = vmatpush1.bf16.xpose.msra.mxu0 0
        %3393 = vmatprep.mubr.bf16.mxu0 0
        %3394 = vmatmul.mubr.bf16.gmra.mrb[0].mxu0 %v3356
        %v3395 = vpop.f32.mrb[0].mxu0
        %v3396 = vadd.f32 0.0, %v3395
        %v3397 = vpop.f32.mrb[0].mxu0
        %v3398 = vpop.f32.mrb[0].mxu0
        %v3399 = vadd.f32 0.0, %v3398
        %v3400 = vpop.f32.mrb[0].mxu0
        %3401 = vdwg.mxu0
        %v3403 = vsel %vm3307, %v2117, 0
        %v3406 = vsel %vm3307, %v2709, 0
        %3408 = vmatprep.subr.bf16.mxu0 0
        %3409 = vmatpush1.bf16.xpose.msra.mxu0 %v3406
        %3410 = vmatprep.subr.bf16.mxu0 0
        %3411 = vmatpush1.bf16.xpose.msra.mxu0 0
        %3412 = vmatprep.subr.bf16.mxu0 0
        %3413 = vmatpush1.bf16.xpose.msra.mxu0 0
        %3414 = vmatprep.subr.bf16.mxu0 0
        %3415 = vmatpush1.bf16.xpose.msra.mxu0 0
        %3416 = vmatprep.subr.bf16.mxu0 0
        %3417 = vmatpush1.bf16.xpose.msra.mxu0 0
        %3418 = vmatprep.subr.bf16.mxu0 0
        %3419 = vmatpush1.bf16.xpose.msra.mxu0 0
        %3420 = vmatprep.subr.bf16.mxu0 0
        %3421 = vmatpush1.bf16.xpose.msra.mxu0 0
        %3422 = vmatprep.subr.bf16.mxu0 0
        %3423 = vmatpush1.bf16.xpose.msra.mxu0 0
        %3424 = vmatprep.subr.bf16.mxu0 0
        %3425 = vmatpush1.bf16.xpose.msra.mxu0 0
        %3426 = vmatprep.subr.bf16.mxu0 0
        %3427 = vmatpush1.bf16.xpose.msra.mxu0 0
        %3428 = vmatprep.subr.bf16.mxu0 0
        %3429 = vmatpush1.bf16.xpose.msra.mxu0 0
        %3430 = vmatprep.subr.bf16.mxu0 0
        %3431 = vmatpush1.bf16.xpose.msra.mxu0 0
        %3432 = vmatprep.subr.bf16.mxu0 0
        %3433 = vmatpush1.bf16.xpose.msra.mxu0 0
        %3434 = vmatprep.subr.bf16.mxu0 0
        %3435 = vmatpush1.bf16.xpose.msra.mxu0 0
        %3436 = vmatprep.subr.bf16.mxu0 0
        %3437 = vmatpush1.bf16.xpose.msra.mxu0 0
        %3438 = vmatprep.subr.bf16.mxu0 0
        %3439 = vmatpush1.bf16.xpose.msra.mxu0 0
        %3440 = vmatprep.mubr.bf16.mxu0 0
        %3441 = vmatmul.mubr.bf16.gmra.mrb[0].mxu0 %v3403
        %v3442 = vpop.f32.mrb[0].mxu0
        %v3443 = vadd.f32 0.0, %v3442
        %v3444 = vpop.f32.mrb[0].mxu0
        %v3445 = vpop.f32.mrb[0].mxu0
        %v3446 = vadd.f32 0.0, %v3445
        %v3447 = vpop.f32.mrb[0].mxu0
        %3448 = vdwg.mxu0
        %v3450 = vsel %vm3307, %v2118, 0
        %v3453 = vsel %vm3307, %v2710, 0
        %3455 = vmatprep.subr.bf16.mxu0 0
        %3456 = vmatpush1.bf16.xpose.msra.mxu0 %v3453
        %3457 = vmatprep.subr.bf16.mxu0 0
        %3458 = vmatpush1.bf16.xpose.msra.mxu0 0
        %3459 = vmatprep.subr.bf16.mxu0 0
        %3460 = vmatpush1.bf16.xpose.msra.mxu0 0
        %3461 = vmatprep.subr.bf16.mxu0 0
        %3462 = vmatpush1.bf16.xpose.msra.mxu0 0
        %3463 = vmatprep.subr.bf16.mxu0 0
        %3464 = vmatpush1.bf16.xpose.msra.mxu0 0
        %3465 = vmatprep.subr.bf16.mxu0 0
        %3466 = vmatpush1.bf16.xpose.msra.mxu0 0
        %3467 = vmatprep.subr.bf16.mxu0 0
        %3468 = vmatpush1.bf16.xpose.msra.mxu0 0
        %3469 = vmatprep.subr.bf16.mxu0 0
        %3470 = vmatpush1.bf16.xpose.msra.mxu0 0
        %3471 = vmatprep.subr.bf16.mxu0 0
        %3472 = vmatpush1.bf16.xpose.msra.mxu0 0
        %3473 = vmatprep.subr.bf16.mxu0 0
        %3474 = vmatpush1.bf16.xpose.msra.mxu0 0
        %3475 = vmatprep.subr.bf16.mxu0 0
        %3476 = vmatpush1.bf16.xpose.msra.mxu0 0
        %3477 = vmatprep.subr.bf16.mxu0 0
        %3478 = vmatpush1.bf16.xpose.msra.mxu0 0
        %3479 = vmatprep.subr.bf16.mxu0 0
        %3480 = vmatpush1.bf16.xpose.msra.mxu0 0
        %3481 = vmatprep.subr.bf16.mxu0 0
        %3482 = vmatpush1.bf16.xpose.msra.mxu0 0
        %3483 = vmatprep.subr.bf16.mxu0 0
        %3484 = vmatpush1.bf16.xpose.msra.mxu0 0
        %3485 = vmatprep.subr.bf16.mxu0 0
        %3486 = vmatpush1.bf16.xpose.msra.mxu0 0
        %3487 = vmatprep.mubr.bf16.mxu0 0
        %3488 = vmatmul.mubr.bf16.gmra.mrb[0].mxu0 %v3450
        %v3489 = vpop.f32.mrb[0].mxu0
        %v3490 = vadd.f32 0.0, %v3489
        %v3491 = vpop.f32.mrb[0].mxu0
        %v3492 = vpop.f32.mrb[0].mxu0
        %v3493 = vadd.f32 0.0, %v3492
        %v3494 = vpop.f32.mrb[0].mxu0
        %3495 = vdwg.mxu0
        %v3497 = vsel %vm3307, %v2119, 0
        %v3500 = vsel %vm3307, %v2711, 0
        %3502 = vmatprep.subr.bf16.mxu0 0
        %3503 = vmatpush1.bf16.xpose.msra.mxu0 %v3500
        %3504 = vmatprep.subr.bf16.mxu0 0
        %3505 = vmatpush1.bf16.xpose.msra.mxu0 0
        %3506 = vmatprep.subr.bf16.mxu0 0
        %3507 = vmatpush1.bf16.xpose.msra.mxu0 0
        %3508 = vmatprep.subr.bf16.mxu0 0
        %3509 = vmatpush1.bf16.xpose.msra.mxu0 0
        %3510 = vmatprep.subr.bf16.mxu0 0
        %3511 = vmatpush1.bf16.xpose.msra.mxu0 0
        %3512 = vmatprep.subr.bf16.mxu0 0
        %3513 = vmatpush1.bf16.xpose.msra.mxu0 0
        %3514 = vmatprep.subr.bf16.mxu0 0
        %3515 = vmatpush1.bf16.xpose.msra.mxu0 0
        %3516 = vmatprep.subr.bf16.mxu0 0
        %3517 = vmatpush1.bf16.xpose.msra.mxu0 0
        %3518 = vmatprep.subr.bf16.mxu0 0
        %3519 = vmatpush1.bf16.xpose.msra.mxu0 0
        %3520 = vmatprep.subr.bf16.mxu0 0
        %3521 = vmatpush1.bf16.xpose.msra.mxu0 0
        %3522 = vmatprep.subr.bf16.mxu0 0
        %3523 = vmatpush1.bf16.xpose.msra.mxu0 0
        %3524 = vmatprep.subr.bf16.mxu0 0
        %3525 = vmatpush1.bf16.xpose.msra.mxu0 0
        %3526 = vmatprep.subr.bf16.mxu0 0
        %3527 = vmatpush1.bf16.xpose.msra.mxu0 0
        %3528 = vmatprep.subr.bf16.mxu0 0
        %3529 = vmatpush1.bf16.xpose.msra.mxu0 0
        %3530 = vmatprep.subr.bf16.mxu0 0
        %3531 = vmatpush1.bf16.xpose.msra.mxu0 0
        %3532 = vmatprep.subr.bf16.mxu0 0
        %3533 = vmatpush1.bf16.xpose.msra.mxu0 0
        %3534 = vmatprep.mubr.bf16.mxu0 0
        %3535 = vmatmul.mubr.bf16.gmra.mrb[0].mxu0 %v3497
        %v3536 = vpop.f32.mrb[0].mxu0
        %v3537 = vadd.f32 0.0, %v3536
        %v3538 = vpop.f32.mrb[0].mxu0
        %v3539 = vpop.f32.mrb[0].mxu0
        %v3540 = vadd.f32 0.0, %v3539
        %v3541 = vpop.f32.mrb[0].mxu0
        %3542 = vdwg.mxu0
        %v3544 = vsel %vm3307, %v2120, 0
        %v3547 = vsel %vm3307, %v2712, 0
        %3549 = vmatprep.subr.bf16.mxu0 0
        %3550 = vmatpush1.bf16.xpose.msra.mxu0 %v3547
        %3551 = vmatprep.subr.bf16.mxu0 0
        %3552 = vmatpush1.bf16.xpose.msra.mxu0 0
        %3553 = vmatprep.subr.bf16.mxu0 0
        %3554 = vmatpush1.bf16.xpose.msra.mxu0 0
        %3555 = vmatprep.subr.bf16.mxu0 0
        %3556 = vmatpush1.bf16.xpose.msra.mxu0 0
        %3557 = vmatprep.subr.bf16.mxu0 0
        %3558 = vmatpush1.bf16.xpose.msra.mxu0 0
        %3559 = vmatprep.subr.bf16.mxu0 0
        %3560 = vmatpush1.bf16.xpose.msra.mxu0 0
        %3561 = vmatprep.subr.bf16.mxu0 0
        %3562 = vmatpush1.bf16.xpose.msra.mxu0 0
        %3563 = vmatprep.subr.bf16.mxu0 0
        %3564 = vmatpush1.bf16.xpose.msra.mxu0 0
        %3565 = vmatprep.subr.bf16.mxu0 0
        %3566 = vmatpush1.bf16.xpose.msra.mxu0 0
        %3567 = vmatprep.subr.bf16.mxu0 0
        %3568 = vmatpush1.bf16.xpose.msra.mxu0 0
        %3569 = vmatprep.subr.bf16.mxu0 0
        %3570 = vmatpush1.bf16.xpose.msra.mxu0 0
        %3571 = vmatprep.subr.bf16.mxu0 0
        %3572 = vmatpush1.bf16.xpose.msra.mxu0 0
        %3573 = vmatprep.subr.bf16.mxu0 0
        %3574 = vmatpush1.bf16.xpose.msra.mxu0 0
        %3575 = vmatprep.subr.bf16.mxu0 0
        %3576 = vmatpush1.bf16.xpose.msra.mxu0 0
        %3577 = vmatprep.subr.bf16.mxu0 0
        %3578 = vmatpush1.bf16.xpose.msra.mxu0 0
        %3579 = vmatprep.subr.bf16.mxu0 0
        %3580 = vmatpush1.bf16.xpose.msra.mxu0 0
        %3581 = vmatprep.mubr.bf16.mxu0 0
        %3582 = vmatmul.mubr.bf16.gmra.mrb[0].mxu0 %v3544
        %v3583 = vpop.f32.mrb[0].mxu0
        %v3584 = vadd.f32 0.0, %v3583
        %v3585 = vpop.f32.mrb[0].mxu0
        %v3586 = vpop.f32.mrb[0].mxu0
        %v3587 = vadd.f32 0.0, %v3586
        %v3588 = vpop.f32.mrb[0].mxu0
        %3589 = vdwg.mxu0
        %v3591 = vsel %vm3307, %v2121, 0
        %v3594 = vsel %vm3307, %v2713, 0
        %3596 = vmatprep.subr.bf16.mxu0 0
        %3597 = vmatpush1.bf16.xpose.msra.mxu0 %v3594
        %3598 = vmatprep.subr.bf16.mxu0 0
        %3599 = vmatpush1.bf16.xpose.msra.mxu0 0
        %3600 = vmatprep.subr.bf16.mxu0 0
        %3601 = vmatpush1.bf16.xpose.msra.mxu0 0
        %3602 = vmatprep.subr.bf16.mxu0 0
        %3603 = vmatpush1.bf16.xpose.msra.mxu0 0
        %3604 = vmatprep.subr.bf16.mxu0 0
        %3605 = vmatpush1.bf16.xpose.msra.mxu0 0
        %3606 = vmatprep.subr.bf16.mxu0 0
        %3607 = vmatpush1.bf16.xpose.msra.mxu0 0
        %3608 = vmatprep.subr.bf16.mxu0 0
        %3609 = vmatpush1.bf16.xpose.msra.mxu0 0
        %3610 = vmatprep.subr.bf16.mxu0 0
        %3611 = vmatpush1.bf16.xpose.msra.mxu0 0
        %3612 = vmatprep.subr.bf16.mxu0 0
        %3613 = vmatpush1.bf16.xpose.msra.mxu0 0
        %3614 = vmatprep.subr.bf16.mxu0 0
        %3615 = vmatpush1.bf16.xpose.msra.mxu0 0
        %3616 = vmatprep.subr.bf16.mxu0 0
        %3617 = vmatpush1.bf16.xpose.msra.mxu0 0
        %3618 = vmatprep.subr.bf16.mxu0 0
        %3619 = vmatpush1.bf16.xpose.msra.mxu0 0
        %3620 = vmatprep.subr.bf16.mxu0 0
        %3621 = vmatpush1.bf16.xpose.msra.mxu0 0
        %3622 = vmatprep.subr.bf16.mxu0 0
        %3623 = vmatpush1.bf16.xpose.msra.mxu0 0
        %3624 = vmatprep.subr.bf16.mxu0 0
        %3625 = vmatpush1.bf16.xpose.msra.mxu0 0
        %3626 = vmatprep.subr.bf16.mxu0 0
        %3627 = vmatpush1.bf16.xpose.msra.mxu0 0
        %3628 = vmatprep.mubr.bf16.mxu0 0
        %3629 = vmatmul.mubr.bf16.gmra.mrb[0].mxu0 %v3591
        %v3630 = vpop.f32.mrb[0].mxu0
        %v3631 = vadd.f32 0.0, %v3630
        %v3632 = vpop.f32.mrb[0].mxu0
        %v3633 = vpop.f32.mrb[0].mxu0
        %v3634 = vadd.f32 0.0, %v3633
        %v3635 = vpop.f32.mrb[0].mxu0
        %3636 = vdwg.mxu0
        %v3638 = vsel %vm3307, %v2122, 0
        %v3641 = vsel %vm3307, %v2714, 0
        %3643 = vmatprep.subr.bf16.mxu0 0
        %3644 = vmatpush1.bf16.xpose.msra.mxu0 %v3641
        %3645 = vmatprep.subr.bf16.mxu0 0
        %3646 = vmatpush1.bf16.xpose.msra.mxu0 0
        %3647 = vmatprep.subr.bf16.mxu0 0
        %3648 = vmatpush1.bf16.xpose.msra.mxu0 0
        %3649 = vmatprep.subr.bf16.mxu0 0
        %3650 = vmatpush1.bf16.xpose.msra.mxu0 0
        %3651 = vmatprep.subr.bf16.mxu0 0
        %3652 = vmatpush1.bf16.xpose.msra.mxu0 0
        %3653 = vmatprep.subr.bf16.mxu0 0
        %3654 = vmatpush1.bf16.xpose.msra.mxu0 0
        %3655 = vmatprep.subr.bf16.mxu0 0
        %3656 = vmatpush1.bf16.xpose.msra.mxu0 0
        %3657 = vmatprep.subr.bf16.mxu0 0
        %3658 = vmatpush1.bf16.xpose.msra.mxu0 0
        %3659 = vmatprep.subr.bf16.mxu0 0
        %3660 = vmatpush1.bf16.xpose.msra.mxu0 0
        %3661 = vmatprep.subr.bf16.mxu0 0
        %3662 = vmatpush1.bf16.xpose.msra.mxu0 0
        %3663 = vmatprep.subr.bf16.mxu0 0
        %3664 = vmatpush1.bf16.xpose.msra.mxu0 0
        %3665 = vmatprep.subr.bf16.mxu0 0
        %3666 = vmatpush1.bf16.xpose.msra.mxu0 0
        %3667 = vmatprep.subr.bf16.mxu0 0
        %3668 = vmatpush1.bf16.xpose.msra.mxu0 0
        %3669 = vmatprep.subr.bf16.mxu0 0
        %3670 = vmatpush1.bf16.xpose.msra.mxu0 0
        %3671 = vmatprep.subr.bf16.mxu0 0
        %3672 = vmatpush1.bf16.xpose.msra.mxu0 0
        %3673 = vmatprep.subr.bf16.mxu0 0
        %3674 = vmatpush1.bf16.xpose.msra.mxu0 0
        %3675 = vmatprep.mubr.bf16.mxu0 0
        %3676 = vmatmul.mubr.bf16.gmra.mrb[0].mxu0 %v3638
        %v3677 = vpop.f32.mrb[0].mxu0
        %v3678 = vadd.f32 0.0, %v3677
        %v3679 = vpop.f32.mrb[0].mxu0
        %v3680 = vpop.f32.mrb[0].mxu0
        %v3681 = vadd.f32 0.0, %v3680
        %v3682 = vpop.f32.mrb[0].mxu0
        %3683 = vdwg.mxu0
        %v3684 = vlaneseq
        %v3685 = vand.u32 %v3684, 127
        %vm3686 = vcmp.lt.s32.totalorder %v3685, 9
        %v3687 = vsel %vm3686, %v3349, -1e+30
        %v3688 = vsel %vm3686, %v3352, -1e+30
        %v3689 = vsel %vm3686, %v3396, -1e+30
        %v3690 = vsel %vm3686, %v3399, -1e+30
        %v3691 = vsel %vm3686, %v3443, -1e+30
        %v3692 = vsel %vm3686, %v3446, -1e+30
        %v3693 = vsel %vm3686, %v3490, -1e+30
        %v3694 = vsel %vm3686, %v3493, -1e+30
        %v3695 = vsel %vm3686, %v3537, -1e+30
        %v3696 = vsel %vm3686, %v3540, -1e+30
        %v3697 = vsel %vm3686, %v3584, -1e+30
        %v3698 = vsel %vm3686, %v3587, -1e+30
        %v3699 = vsel %vm3686, %v3631, -1e+30
        %v3700 = vsel %vm3686, %v3634, -1e+30
        %v3701 = vsel %vm3686, %v3678, -1e+30
        %v3702 = vsel %vm3686, %v3681, -1e+30
        %vm3703 = vcmask 130048
        %v3704 = vsel %vm3703, %v3687, -inf
        %3705 = vmax.xlane.f32.xlu0 %v3704
        %v3706 = vpop.xlane.xlu0 %3705
        %v3707 = vsel %vm3703, %v3688, -inf
        %3708 = vmax.xlane.f32.xlu0 %v3707
        %v3709 = vpop.xlane.xlu0 %3708
        %v3710 = vsel %vm3703, %v3689, -inf
        %3711 = vmax.xlane.f32.xlu0 %v3710
        %v3712 = vpop.xlane.xlu0 %3711
        %v3713 = vsel %vm3703, %v3690, -inf
        %3714 = vmax.xlane.f32.xlu0 %v3713
        %v3715 = vpop.xlane.xlu0 %3714
        %v3716 = vsel %vm3703, %v3691, -inf
        %3717 = vmax.xlane.f32.xlu0 %v3716
        %v3718 = vpop.xlane.xlu0 %3717
        %v3719 = vsel %vm3703, %v3692, -inf
        %3720 = vmax.xlane.f32.xlu0 %v3719
        %v3721 = vpop.xlane.xlu0 %3720
        %v3722 = vsel %vm3703, %v3693, -inf
        %3723 = vmax.xlane.f32.xlu0 %v3722
        %v3724 = vpop.xlane.xlu0 %3723
        %v3725 = vsel %vm3703, %v3694, -inf
        %3726 = vmax.xlane.f32.xlu0 %v3725
        %v3727 = vpop.xlane.xlu0 %3726
        %v3728 = vsel %vm3703, %v3695, -inf
        %3729 = vmax.xlane.f32.xlu0 %v3728
        %v3730 = vpop.xlane.xlu0 %3729
        %v3731 = vsel %vm3703, %v3696, -inf
        %3732 = vmax.xlane.f32.xlu0 %v3731
        %v3733 = vpop.xlane.xlu0 %3732
        %v3734 = vsel %vm3703, %v3697, -inf
        %3735 = vmax.xlane.f32.xlu0 %v3734
        %v3736 = vpop.xlane.xlu0 %3735
        %v3737 = vsel %vm3703, %v3698, -inf
        %3738 = vmax.xlane.f32.xlu0 %v3737
        %v3739 = vpop.xlane.xlu0 %3738
        %v3740 = vsel %vm3703, %v3699, -inf
        %3741 = vmax.xlane.f32.xlu0 %v3740
        %v3742 = vpop.xlane.xlu0 %3741
        %v3743 = vsel %vm3703, %v3700, -inf
        %3744 = vmax.xlane.f32.xlu0 %v3743
        %v3745 = vpop.xlane.xlu0 %3744
        %v3746 = vsel %vm3703, %v3701, -inf
        %3747 = vmax.xlane.f32.xlu0 %v3746
        %v3748 = vpop.xlane.xlu0 %3747
        %v3749 = vsel %vm3703, %v3702, -inf
        %3750 = vmax.xlane.f32.xlu0 %v3749
        %v3751 = vpop.xlane.xlu0 %3750
        %v3752 = vsub.f32 %v3687, %v3706
        %v3753 = vsub.f32 %v3688, %v3709
        %v3754 = vsub.f32 %v3689, %v3712
        %v3755 = vsub.f32 %v3690, %v3715
        %v3756 = vsub.f32 %v3691, %v3718
        %v3757 = vsub.f32 %v3692, %v3721
        %v3758 = vsub.f32 %v3693, %v3724
        %v3759 = vsub.f32 %v3694, %v3727
        %v3760 = vsub.f32 %v3695, %v3730
        %v3761 = vsub.f32 %v3696, %v3733
        %v3762 = vsub.f32 %v3697, %v3736
        %v3763 = vsub.f32 %v3698, %v3739
        %v3764 = vsub.f32 %v3699, %v3742
        %v3765 = vsub.f32 %v3700, %v3745
        %v3766 = vsub.f32 %v3701, %v3748
        %v3767 = vsub.f32 %v3702, %v3751
        %v3768 = vmul.f32 %v3752, 1.442695
        %v3769 = vpow.pop %v3768
        %v3770 = vmul.f32 %v3753, 1.442695
        %v3771 = vpow.pop %v3770
        %v3772 = vmul.f32 %v3754, 1.442695
        %v3773 = vpow.pop %v3772
        %v3774 = vmul.f32 %v3755, 1.442695
        %v3775 = vpow.pop %v3774
        %v3776 = vmul.f32 %v3756, 1.442695
        %v3777 = vpow.pop %v3776
        %v3778 = vmul.f32 %v3757, 1.442695
        %v3779 = vpow.pop %v3778
        %v3780 = vmul.f32 %v3758, 1.442695
        %v3781 = vpow.pop %v3780
        %v3782 = vmul.f32 %v3759, 1.442695
        %v3783 = vpow.pop %v3782
        %v3784 = vmul.f32 %v3760, 1.442695
        %v3785 = vpow.pop %v3784
        %v3786 = vmul.f32 %v3761, 1.442695
        %v3787 = vpow.pop %v3786
        %v3788 = vmul.f32 %v3762, 1.442695
        %v3789 = vpow.pop %v3788
        %v3790 = vmul.f32 %v3763, 1.442695
        %v3791 = vpow.pop %v3790
        %v3792 = vmul.f32 %v3764, 1.442695
        %v3793 = vpow.pop %v3792
        %v3794 = vmul.f32 %v3765, 1.442695
        %v3795 = vpow.pop %v3794
        %v3796 = vmul.f32 %v3766, 1.442695
        %v3797 = vpow.pop %v3796
        %v3798 = vmul.f32 %v3767, 1.442695
        %v3799 = vpow.pop %v3798
        %v3800 = vsel %vm3703, %v3769, 0.0
        %3801 = vadd.xlane.f32.xlu0 %v3800
        %v3802 = vpop.xlane.xlu0 %3801
        %v3803 = vsel %vm3703, %v3771, 0.0
        %3804 = vadd.xlane.f32.xlu0 %v3803
        %v3805 = vpop.xlane.xlu0 %3804
        %v3806 = vsel %vm3703, %v3773, 0.0
        %3807 = vadd.xlane.f32.xlu0 %v3806
        %v3808 = vpop.xlane.xlu0 %3807
        %v3809 = vsel %vm3703, %v3775, 0.0
        %3810 = vadd.xlane.f32.xlu0 %v3809
        %v3811 = vpop.xlane.xlu0 %3810
        %v3812 = vsel %vm3703, %v3777, 0.0
        %3813 = vadd.xlane.f32.xlu0 %v3812
        %v3814 = vpop.xlane.xlu0 %3813
        %v3815 = vsel %vm3703, %v3779, 0.0
        %3816 = vadd.xlane.f32.xlu0 %v3815
        %v3817 = vpop.xlane.xlu0 %3816
        %v3818 = vsel %vm3703, %v3781, 0.0
        %3819 = vadd.xlane.f32.xlu0 %v3818
        %v3820 = vpop.xlane.xlu0 %3819
        %v3821 = vsel %vm3703, %v3783, 0.0
        %3822 = vadd.xlane.f32.xlu0 %v3821
        %v3823 = vpop.xlane.xlu0 %3822
        %v3824 = vsel %vm3703, %v3785, 0.0
        %3825 = vadd.xlane.f32.xlu0 %v3824
        %v3826 = vpop.xlane.xlu0 %3825
        %v3827 = vsel %vm3703, %v3787, 0.0
        %3828 = vadd.xlane.f32.xlu0 %v3827
        %v3829 = vpop.xlane.xlu0 %3828
        %v3830 = vsel %vm3703, %v3789, 0.0
        %3831 = vadd.xlane.f32.xlu0 %v3830
        %v3832 = vpop.xlane.xlu0 %3831
        %v3833 = vsel %vm3703, %v3791, 0.0
        %3834 = vadd.xlane.f32.xlu0 %v3833
        %v3835 = vpop.xlane.xlu0 %3834
        %v3836 = vsel %vm3703, %v3793, 0.0
        %3837 = vadd.xlane.f32.xlu0 %v3836
        %v3838 = vpop.xlane.xlu0 %3837
        %v3839 = vsel %vm3703, %v3795, 0.0
        %3840 = vadd.xlane.f32.xlu0 %v3839
        %v3841 = vpop.xlane.xlu0 %3840
        %v3842 = vsel %vm3703, %v3797, 0.0
        %3843 = vadd.xlane.f32.xlu0 %v3842
        %v3844 = vpop.xlane.xlu0 %3843
        %v3845 = vsel %vm3703, %v3799, 0.0
        %3846 = vadd.xlane.f32.xlu0 %v3845
        %v3847 = vpop.xlane.xlu0 %3846
        %v3848 = vrcp.pop %v3802
        %v3849 = vmul.f32 %v3769, %v3848
        %v3850 = vrcp.pop %v3805
        %v3851 = vmul.f32 %v3771, %v3850
        %v3852 = vrcp.pop %v3808
        %v3853 = vmul.f32 %v3773, %v3852
        %v3854 = vrcp.pop %v3811
        %v3855 = vmul.f32 %v3775, %v3854
        %v3856 = vrcp.pop %v3814
        %v3857 = vmul.f32 %v3777, %v3856
        %v3858 = vrcp.pop %v3817
        %v3859 = vmul.f32 %v3779, %v3858
        %v3860 = vrcp.pop %v3820
        %v3861 = vmul.f32 %v3781, %v3860
        %v3862 = vrcp.pop %v3823
        %v3863 = vmul.f32 %v3783, %v3862
        %v3864 = vrcp.pop %v3826
        %v3865 = vmul.f32 %v3785, %v3864
        %v3866 = vrcp.pop %v3829
        %v3867 = vmul.f32 %v3787, %v3866
        %v3868 = vrcp.pop %v3832
        %v3869 = vmul.f32 %v3789, %v3868
        %v3870 = vrcp.pop %v3835
        %v3871 = vmul.f32 %v3791, %v3870
        %v3872 = vrcp.pop %v3838
        %v3873 = vmul.f32 %v3793, %v3872
        %v3874 = vrcp.pop %v3841
        %v3875 = vmul.f32 %v3795, %v3874
        %v3876 = vrcp.pop %v3844
        %v3877 = vmul.f32 %v3797, %v3876
        %v3878 = vrcp.pop %v3847
        %v3879 = vmul.f32 %v3799, %v3878
        %v3880 = vpack.c.bf16 %v3851, %v3849
        %v3881 = vpack.c.bf16 %v3855, %v3853
        %v3882 = vpack.c.bf16 %v3859, %v3857
        %v3883 = vpack.c.bf16 %v3863, %v3861
        %v3884 = vpack.c.bf16 %v3867, %v3865
        %v3885 = vpack.c.bf16 %v3871, %v3869
        %v3886 = vpack.c.bf16 %v3875, %v3873
        %v3887 = vpack.c.bf16 %v3879, %v3877
        %v3889 = vsel %vm3703, %v3880, 0
        %3891 = vmatprep.subr.bf16.mxu0 0
        %3892 = vmatpush1.bf16.msra.mxu0 %v3299
        %3893 = vmatprep.subr.bf16.mxu0 0
        %3894 = vmatpush1.bf16.msra.mxu0 0
        %3895 = vmatprep.subr.bf16.mxu0 0
        %3896 = vmatpush1.bf16.msra.mxu0 0
        %3897 = vmatprep.subr.bf16.mxu0 0
        %3898 = vmatpush1.bf16.msra.mxu0 0
        %3899 = vmatprep.subr.bf16.mxu0 0
        %3900 = vmatpush1.bf16.msra.mxu0 0
        %3901 = vmatprep.subr.bf16.mxu0 0
        %3902 = vmatpush1.bf16.msra.mxu0 0
        %3903 = vmatprep.subr.bf16.mxu0 0
        %3904 = vmatpush1.bf16.msra.mxu0 0
        %3905 = vmatprep.subr.bf16.mxu0 0
        %3906 = vmatpush1.bf16.msra.mxu0 0
        %3907 = vmatprep.subr.bf16.mxu0 0
        %3908 = vmatpush1.bf16.msra.mxu0 0
        %3909 = vmatprep.subr.bf16.mxu0 0
        %3910 = vmatpush1.bf16.msra.mxu0 0
        %3911 = vmatprep.subr.bf16.mxu0 0
        %3912 = vmatpush1.bf16.msra.mxu0 0
        %3913 = vmatprep.subr.bf16.mxu0 0
        %3914 = vmatpush1.bf16.msra.mxu0 0
        %3915 = vmatprep.subr.bf16.mxu0 0
        %3916 = vmatpush1.bf16.msra.mxu0 0
        %3917 = vmatprep.subr.bf16.mxu0 0
        %3918 = vmatpush1.bf16.msra.mxu0 0
        %3919 = vmatprep.subr.bf16.mxu0 0
        %3920 = vmatpush1.bf16.msra.mxu0 0
        %3921 = vmatprep.subr.bf16.mxu0 0
        %3922 = vmatpush1.bf16.msra.mxu0 0
        %3923 = vmatprep.mubr.bf16.mxu0 0
        %3924 = vmatmul.mubr.bf16.gmra.mrb[0].mxu0 %v3889
        %v3925 = vpop.f32.mrb[0].mxu0
        %v3926 = vadd.f32 0.0, %v3925
        %v3927 = vpop.f32.mrb[0].mxu0
        %v3928 = vpop.f32.mrb[0].mxu0
        %v3929 = vadd.f32 0.0, %v3928
        %v3930 = vpop.f32.mrb[0].mxu0
        %3931 = vdwg.mxu0
        %v3933 = vsel %vm3703, %v3881, 0
        %3935 = vmatprep.subr.bf16.mxu0 0
        %3936 = vmatpush1.bf16.msra.mxu0 %v3300
        %3937 = vmatprep.subr.bf16.mxu0 0
        %3938 = vmatpush1.bf16.msra.mxu0 0
        %3939 = vmatprep.subr.bf16.mxu0 0
        %3940 = vmatpush1.bf16.msra.mxu0 0
        %3941 = vmatprep.subr.bf16.mxu0 0
        %3942 = vmatpush1.bf16.msra.mxu0 0
        %3943 = vmatprep.subr.bf16.mxu0 0
        %3944 = vmatpush1.bf16.msra.mxu0 0
        %3945 = vmatprep.subr.bf16.mxu0 0
        %3946 = vmatpush1.bf16.msra.mxu0 0
        %3947 = vmatprep.subr.bf16.mxu0 0
        %3948 = vmatpush1.bf16.msra.mxu0 0
        %3949 = vmatprep.subr.bf16.mxu0 0
        %3950 = vmatpush1.bf16.msra.mxu0 0
        %3951 = vmatprep.subr.bf16.mxu0 0
        %3952 = vmatpush1.bf16.msra.mxu0 0
        %3953 = vmatprep.subr.bf16.mxu0 0
        %3954 = vmatpush1.bf16.msra.mxu0 0
        %3955 = vmatprep.subr.bf16.mxu0 0
        %3956 = vmatpush1.bf16.msra.mxu0 0
        %3957 = vmatprep.subr.bf16.mxu0 0
        %3958 = vmatpush1.bf16.msra.mxu0 0
        %3959 = vmatprep.subr.bf16.mxu0 0
        %3960 = vmatpush1.bf16.msra.mxu0 0
        %3961 = vmatprep.subr.bf16.mxu0 0
        %3962 = vmatpush1.bf16.msra.mxu0 0
        %3963 = vmatprep.subr.bf16.mxu0 0
        %3964 = vmatpush1.bf16.msra.mxu0 0
        %3965 = vmatprep.subr.bf16.mxu0 0
        %3966 = vmatpush1.bf16.msra.mxu0 0
        %3967 = vmatprep.mubr.bf16.mxu0 0
        %3968 = vmatmul.mubr.bf16.gmra.mrb[0].mxu0 %v3933
        %v3969 = vpop.f32.mrb[0].mxu0
        %v3970 = vadd.f32 0.0, %v3969
        %v3971 = vpop.f32.mrb[0].mxu0
        %v3972 = vpop.f32.mrb[0].mxu0
        %v3973 = vadd.f32 0.0, %v3972
        %v3974 = vpop.f32.mrb[0].mxu0
        %3975 = vdwg.mxu0
        %v3977 = vsel %vm3703, %v3882, 0
        %3979 = vmatprep.subr.bf16.mxu0 0
        %3980 = vmatpush1.bf16.msra.mxu0 %v3301
        %3981 = vmatprep.subr.bf16.mxu0 0
        %3982 = vmatpush1.bf16.msra.mxu0 0
        %3983 = vmatprep.subr.bf16.mxu0 0
        %3984 = vmatpush1.bf16.msra.mxu0 0
        %3985 = vmatprep.subr.bf16.mxu0 0
        %3986 = vmatpush1.bf16.msra.mxu0 0
        %3987 = vmatprep.subr.bf16.mxu0 0
        %3988 = vmatpush1.bf16.msra.mxu0 0
        %3989 = vmatprep.subr.bf16.mxu0 0
        %3990 = vmatpush1.bf16.msra.mxu0 0
        %3991 = vmatprep.subr.bf16.mxu0 0
        %3992 = vmatpush1.bf16.msra.mxu0 0
        %3993 = vmatprep.subr.bf16.mxu0 0
        %3994 = vmatpush1.bf16.msra.mxu0 0
        %3995 = vmatprep.subr.bf16.mxu0 0
        %3996 = vmatpush1.bf16.msra.mxu0 0
        %3997 = vmatprep.subr.bf16.mxu0 0
        %3998 = vmatpush1.bf16.msra.mxu0 0
        %3999 = vmatprep.subr.bf16.mxu0 0
        %4000 = vmatpush1.bf16.msra.mxu0 0
        %4001 = vmatprep.subr.bf16.mxu0 0
        %4002 = vmatpush1.bf16.msra.mxu0 0
        %4003 = vmatprep.subr.bf16.mxu0 0
        %4004 = vmatpush1.bf16.msra.mxu0 0
        %4005 = vmatprep.subr.bf16.mxu0 0
        %4006 = vmatpush1.bf16.msra.mxu0 0
        %4007 = vmatprep.subr.bf16.mxu0 0
        %4008 = vmatpush1.bf16.msra.mxu0 0
        %4009 = vmatprep.subr.bf16.mxu0 0
        %4010 = vmatpush1.bf16.msra.mxu0 0
        %4011 = vmatprep.mubr.bf16.mxu0 0
        %4012 = vmatmul.mubr.bf16.gmra.mrb[0].mxu0 %v3977
        %v4013 = vpop.f32.mrb[0].mxu0
        %v4014 = vadd.f32 0.0, %v4013
        %v4015 = vpop.f32.mrb[0].mxu0
        %v4016 = vpop.f32.mrb[0].mxu0
        %v4017 = vadd.f32 0.0, %v4016
        %v4018 = vpop.f32.mrb[0].mxu0
        %4019 = vdwg.mxu0
        %v4021 = vsel %vm3703, %v3883, 0
        %4023 = vmatprep.subr.bf16.mxu0 0
        %4024 = vmatpush1.bf16.msra.mxu0 %v3302
        %4025 = vmatprep.subr.bf16.mxu0 0
        %4026 = vmatpush1.bf16.msra.mxu0 0
        %4027 = vmatprep.subr.bf16.mxu0 0
        %4028 = vmatpush1.bf16.msra.mxu0 0
        %4029 = vmatprep.subr.bf16.mxu0 0
        %4030 = vmatpush1.bf16.msra.mxu0 0
        %4031 = vmatprep.subr.bf16.mxu0 0
        %4032 = vmatpush1.bf16.msra.mxu0 0
        %4033 = vmatprep.subr.bf16.mxu0 0
        %4034 = vmatpush1.bf16.msra.mxu0 0
        %4035 = vmatprep.subr.bf16.mxu0 0
        %4036 = vmatpush1.bf16.msra.mxu0 0
        %4037 = vmatprep.subr.bf16.mxu0 0
        %4038 = vmatpush1.bf16.msra.mxu0 0
        %4039 = vmatprep.subr.bf16.mxu0 0
        %4040 = vmatpush1.bf16.msra.mxu0 0
        %4041 = vmatprep.subr.bf16.mxu0 0
        %4042 = vmatpush1.bf16.msra.mxu0 0
        %4043 = vmatprep.subr.bf16.mxu0 0
        %4044 = vmatpush1.bf16.msra.mxu0 0
        %4045 = vmatprep.subr.bf16.mxu0 0
        %4046 = vmatpush1.bf16.msra.mxu0 0
        %4047 = vmatprep.subr.bf16.mxu0 0
        %4048 = vmatpush1.bf16.msra.mxu0 0
        %4049 = vmatprep.subr.bf16.mxu0 0
        %4050 = vmatpush1.bf16.msra.mxu0 0
        %4051 = vmatprep.subr.bf16.mxu0 0
        %4052 = vmatpush1.bf16.msra.mxu0 0
        %4053 = vmatprep.subr.bf16.mxu0 0
        %4054 = vmatpush1.bf16.msra.mxu0 0
        %4055 = vmatprep.mubr.bf16.mxu0 0
        %4056 = vmatmul.mubr.bf16.gmra.mrb[0].mxu0 %v4021
        %v4057 = vpop.f32.mrb[0].mxu0
        %v4058 = vadd.f32 0.0, %v4057
        %v4059 = vpop.f32.mrb[0].mxu0
        %v4060 = vpop.f32.mrb[0].mxu0
        %v4061 = vadd.f32 0.0, %v4060
        %v4062 = vpop.f32.mrb[0].mxu0
        %4063 = vdwg.mxu0
        %v4065 = vsel %vm3703, %v3884, 0
        %4067 = vmatprep.subr.bf16.mxu0 0
        %4068 = vmatpush1.bf16.msra.mxu0 %v3303
        %4069 = vmatprep.subr.bf16.mxu0 0
        %4070 = vmatpush1.bf16.msra.mxu0 0
        %4071 = vmatprep.subr.bf16.mxu0 0
        %4072 = vmatpush1.bf16.msra.mxu0 0
        %4073 = vmatprep.subr.bf16.mxu0 0
        %4074 = vmatpush1.bf16.msra.mxu0 0
        %4075 = vmatprep.subr.bf16.mxu0 0
        %4076 = vmatpush1.bf16.msra.mxu0 0
        %4077 = vmatprep.subr.bf16.mxu0 0
        %4078 = vmatpush1.bf16.msra.mxu0 0
        %4079 = vmatprep.subr.bf16.mxu0 0
        %4080 = vmatpush1.bf16.msra.mxu0 0
        %4081 = vmatprep.subr.bf16.mxu0 0
        %4082 = vmatpush1.bf16.msra.mxu0 0
        %4083 = vmatprep.subr.bf16.mxu0 0
        %4084 = vmatpush1.bf16.msra.mxu0 0
        %4085 = vmatprep.subr.bf16.mxu0 0
        %4086 = vmatpush1.bf16.msra.mxu0 0
        %4087 = vmatprep.subr.bf16.mxu0 0
        %4088 = vmatpush1.bf16.msra.mxu0 0
        %4089 = vmatprep.subr.bf16.mxu0 0
        %4090 = vmatpush1.bf16.msra.mxu0 0
        %4091 = vmatprep.subr.bf16.mxu0 0
        %4092 = vmatpush1.bf16.msra.mxu0 0
        %4093 = vmatprep.subr.bf16.mxu0 0
        %4094 = vmatpush1.bf16.msra.mxu0 0
        %4095 = vmatprep.subr.bf16.mxu0 0
        %4096 = vmatpush1.bf16.msra.mxu0 0
        %4097 = vmatprep.subr.bf16.mxu0 0
        %4098 = vmatpush1.bf16.msra.mxu0 0
        %4099 = vmatprep.mubr.bf16.mxu0 0
        %4100 = vmatmul.mubr.bf16.gmra.mrb[0].mxu0 %v4065
        %v4101 = vpop.f32.mrb[0].mxu0
        %v4102 = vadd.f32 0.0, %v4101
        %v4103 = vpop.f32.mrb[0].mxu0
        %v4104 = vpop.f32.mrb[0].mxu0
        %v4105 = vadd.f32 0.0, %v4104
        %v4106 = vpop.f32.mrb[0].mxu0
        %4107 = vdwg.mxu0
        %v4109 = vsel %vm3703, %v3885, 0
        %4111 = vmatprep.subr.bf16.mxu0 0
        %4112 = vmatpush1.bf16.msra.mxu0 %v3304
        %4113 = vmatprep.subr.bf16.mxu0 0
        %4114 = vmatpush1.bf16.msra.mxu0 0
        %4115 = vmatprep.subr.bf16.mxu0 0
        %4116 = vmatpush1.bf16.msra.mxu0 0
        %4117 = vmatprep.subr.bf16.mxu0 0
        %4118 = vmatpush1.bf16.msra.mxu0 0
        %4119 = vmatprep.subr.bf16.mxu0 0
        %4120 = vmatpush1.bf16.msra.mxu0 0
        %4121 = vmatprep.subr.bf16.mxu0 0
        %4122 = vmatpush1.bf16.msra.mxu0 0
        %4123 = vmatprep.subr.bf16.mxu0 0
        %4124 = vmatpush1.bf16.msra.mxu0 0
        %4125 = vmatprep.subr.bf16.mxu0 0
        %4126 = vmatpush1.bf16.msra.mxu0 0
        %4127 = vmatprep.subr.bf16.mxu0 0
        %4128 = vmatpush1.bf16.msra.mxu0 0
        %4129 = vmatprep.subr.bf16.mxu0 0
        %4130 = vmatpush1.bf16.msra.mxu0 0
        %4131 = vmatprep.subr.bf16.mxu0 0
        %4132 = vmatpush1.bf16.msra.mxu0 0
        %4133 = vmatprep.subr.bf16.mxu0 0
        %4134 = vmatpush1.bf16.msra.mxu0 0
        %4135 = vmatprep.subr.bf16.mxu0 0
        %4136 = vmatpush1.bf16.msra.mxu0 0
        %4137 = vmatprep.subr.bf16.mxu0 0
        %4138 = vmatpush1.bf16.msra.mxu0 0
        %4139 = vmatprep.subr.bf16.mxu0 0
        %4140 = vmatpush1.bf16.msra.mxu0 0
        %4141 = vmatprep.subr.bf16.mxu0 0
        %4142 = vmatpush1.bf16.msra.mxu0 0
        %4143 = vmatprep.mubr.bf16.mxu0 0
        %4144 = vmatmul.mubr.bf16.gmra.mrb[0].mxu0 %v4109
        %v4145 = vpop.f32.mrb[0].mxu0
        %v4146 = vadd.f32 0.0, %v4145
        %v4147 = vpop.f32.mrb[0].mxu0
        %v4148 = vpop.f32.mrb[0].mxu0
        %v4149 = vadd.f32 0.0, %v4148
        %v4150 = vpop.f32.mrb[0].mxu0
        %4151 = vdwg.mxu0
        %v4153 = vsel %vm3703, %v3886, 0
        %4155 = vmatprep.subr.bf16.mxu0 0
        %4156 = vmatpush1.bf16.msra.mxu0 %v3305
        %4157 = vmatprep.subr.bf16.mxu0 0
        %4158 = vmatpush1.bf16.msra.mxu0 0
        %4159 = vmatprep.subr.bf16.mxu0 0
        %4160 = vmatpush1.bf16.msra.mxu0 0
        %4161 = vmatprep.subr.bf16.mxu0 0
        %4162 = vmatpush1.bf16.msra.mxu0 0
        %4163 = vmatprep.subr.bf16.mxu0 0
        %4164 = vmatpush1.bf16.msra.mxu0 0
        %4165 = vmatprep.subr.bf16.mxu0 0
        %4166 = vmatpush1.bf16.msra.mxu0 0
        %4167 = vmatprep.subr.bf16.mxu0 0
        %4168 = vmatpush1.bf16.msra.mxu0 0
        %4169 = vmatprep.subr.bf16.mxu0 0
        %4170 = vmatpush1.bf16.msra.mxu0 0
        %4171 = vmatprep.subr.bf16.mxu0 0
        %4172 = vmatpush1.bf16.msra.mxu0 0
        %4173 = vmatprep.subr.bf16.mxu0 0
        %4174 = vmatpush1.bf16.msra.mxu0 0
        %4175 = vmatprep.subr.bf16.mxu0 0
        %4176 = vmatpush1.bf16.msra.mxu0 0
        %4177 = vmatprep.subr.bf16.mxu0 0
        %4178 = vmatpush1.bf16.msra.mxu0 0
        %4179 = vmatprep.subr.bf16.mxu0 0
        %4180 = vmatpush1.bf16.msra.mxu0 0
        %4181 = vmatprep.subr.bf16.mxu0 0
        %4182 = vmatpush1.bf16.msra.mxu0 0
        %4183 = vmatprep.subr.bf16.mxu0 0
        %4184 = vmatpush1.bf16.msra.mxu0 0
        %4185 = vmatprep.subr.bf16.mxu0 0
        %4186 = vmatpush1.bf16.msra.mxu0 0
        %4187 = vmatprep.mubr.bf16.mxu0 0
        %4188 = vmatmul.mubr.bf16.gmra.mrb[0].mxu0 %v4153
        %v4189 = vpop.f32.mrb[0].mxu0
        %v4190 = vadd.f32 0.0, %v4189
        %v4191 = vpop.f32.mrb[0].mxu0
        %v4192 = vpop.f32.mrb[0].mxu0
        %v4193 = vadd.f32 0.0, %v4192
        %v4194 = vpop.f32.mrb[0].mxu0
        %4195 = vdwg.mxu0
        %v4197 = vsel %vm3703, %v3887, 0
        %4199 = vmatprep.subr.bf16.mxu0 0
        %4200 = vmatpush1.bf16.msra.mxu0 %v3306
        %4201 = vmatprep.subr.bf16.mxu0 0
        %4202 = vmatpush1.bf16.msra.mxu0 0
        %4203 = vmatprep.subr.bf16.mxu0 0
        %4204 = vmatpush1.bf16.msra.mxu0 0
        %4205 = vmatprep.subr.bf16.mxu0 0
        %4206 = vmatpush1.bf16.msra.mxu0 0
        %4207 = vmatprep.subr.bf16.mxu0 0
        %4208 = vmatpush1.bf16.msra.mxu0 0
        %4209 = vmatprep.subr.bf16.mxu0 0
        %4210 = vmatpush1.bf16.msra.mxu0 0
        %4211 = vmatprep.subr.bf16.mxu0 0
        %4212 = vmatpush1.bf16.msra.mxu0 0
        %4213 = vmatprep.subr.bf16.mxu0 0
        %4214 = vmatpush1.bf16.msra.mxu0 0
        %4215 = vmatprep.subr.bf16.mxu0 0
        %4216 = vmatpush1.bf16.msra.mxu0 0
        %4217 = vmatprep.subr.bf16.mxu0 0
        %4218 = vmatpush1.bf16.msra.mxu0 0
        %4219 = vmatprep.subr.bf16.mxu0 0
        %4220 = vmatpush1.bf16.msra.mxu0 0
        %4221 = vmatprep.subr.bf16.mxu0 0
        %4222 = vmatpush1.bf16.msra.mxu0 0
        %4223 = vmatprep.subr.bf16.mxu0 0
        %4224 = vmatpush1.bf16.msra.mxu0 0
        %4225 = vmatprep.subr.bf16.mxu0 0
        %4226 = vmatpush1.bf16.msra.mxu0 0
        %4227 = vmatprep.subr.bf16.mxu0 0
        %4228 = vmatpush1.bf16.msra.mxu0 0
        %4229 = vmatprep.subr.bf16.mxu0 0
        %4230 = vmatpush1.bf16.msra.mxu0 0
        %4231 = vmatprep.mubr.bf16.mxu0 0
        %4232 = vmatmul.mubr.bf16.gmra.mrb[0].mxu0 %v4197
        %v4233 = vpop.f32.mrb[0].mxu0
        %v4234 = vadd.f32 0.0, %v4233
        %v4235 = vpop.f32.mrb[0].mxu0
        %v4236 = vpop.f32.mrb[0].mxu0
        %v4237 = vadd.f32 0.0, %v4236
        %v4238 = vpop.f32.mrb[0].mxu0
        %4239 = vdwg.mxu0
        %v4240 = vcombine.low %v3926, %v4102
        %v4241 = vcombine.high %v3926, %v4102
        %v4243 = vunpack.c.l.s4 1983009808
        %v4244 = vunpack.c.0.s8 %v4243
        %v4245 = vlaneseq
        %v4246 = vshrl.u32 %v4245, 7
        %v4247 = vsub.s32 %v4244, %v4246
        %v4248 = vrot.slane %v4240, %v4247
        %v4250 = vunpack.c.l.s4 1983009808
        %v4251 = vunpack.c.0.s8 %v4250
        %v4252 = vlaneseq
        %v4253 = vshrl.u32 %v4252, 7
        %v4254 = vsub.s32 %v4251, %v4253
        %v4255 = vrot.slane %v4241, %v4254
        %v4256 = vcombine.low %v4014, %v4190
        %v4257 = vcombine.high %v4014, %v4190
        %v4259 = vunpack.c.l.s4 1983009808
        %v4260 = vunpack.c.0.s8 %v4259
        %v4261 = vlaneseq
        %v4262 = vshrl.u32 %v4261, 7
        %v4263 = vsub.s32 %v4260, %v4262
        %v4264 = vrot.slane %v4256, %v4263
        %v4266 = vunpack.c.l.s4 1983009808
        %v4267 = vunpack.c.0.s8 %v4266
        %v4268 = vlaneseq
        %v4269 = vshrl.u32 %v4268, 7
        %v4270 = vsub.s32 %v4267, %v4269
        %v4271 = vrot.slane %v4257, %v4270
        %v4272 = vcombine.low %v4248, %v4264
        %v4273 = vcombine.high %v4248, %v4264
        %v4275 = vunpack.c.l.s4 1934713408
        %v4276 = vunpack.c.0.s8 %v4275
        %v4277 = vlaneseq
        %v4278 = vshrl.u32 %v4277, 7
        %v4279 = vsub.s32 %v4276, %v4278
        %v4280 = vrot.slane %v4272, %v4279
        %v4282 = vunpack.c.l.s4 1934713408
        %v4283 = vunpack.c.0.s8 %v4282
        %v4284 = vlaneseq
        %v4285 = vshrl.u32 %v4284, 7
        %v4286 = vsub.s32 %v4283, %v4285
        %v4287 = vrot.slane %v4273, %v4286
        %v4288 = vcombine.low %v4255, %v4271
        %v4289 = vcombine.high %v4255, %v4271
        %v4291 = vunpack.c.l.s4 1934713408
        %v4292 = vunpack.c.0.s8 %v4291
        %v4293 = vlaneseq
        %v4294 = vshrl.u32 %v4293, 7
        %v4295 = vsub.s32 %v4292, %v4294
        %v4296 = vrot.slane %v4288, %v4295
        %v4298 = vunpack.c.l.s4 1934713408
        %v4299 = vunpack.c.0.s8 %v4298
        %v4300 = vlaneseq
        %v4301 = vshrl.u32 %v4300, 7
        %v4302 = vsub.s32 %v4299, %v4301
        %v4303 = vrot.slane %v4289, %v4302
        %v4304 = vcombine.high %v4280, 0.0
        %v4305 = vcombine.high %v4287, 0.0
        %v4306 = vcombine.high %v4296, 0.0
        %v4307 = vcombine.high %v4303, 0.0
        %v4308 = vcombine.low %v3929, %v4105
        %v4309 = vcombine.high %v3929, %v4105
        %v4311 = vunpack.c.l.s4 1983009808
        %v4312 = vunpack.c.0.s8 %v4311
        %v4313 = vlaneseq
        %v4314 = vshrl.u32 %v4313, 7
        %v4315 = vsub.s32 %v4312, %v4314
        %v4316 = vrot.slane %v4308, %v4315
        %v4318 = vunpack.c.l.s4 1983009808
        %v4319 = vunpack.c.0.s8 %v4318
        %v4320 = vlaneseq
        %v4321 = vshrl.u32 %v4320, 7
        %v4322 = vsub.s32 %v4319, %v4321
        %v4323 = vrot.slane %v4309, %v4322
        %v4324 = vcombine.low %v4017, %v4193
        %v4325 = vcombine.high %v4017, %v4193
        %v4327 = vunpack.c.l.s4 1983009808
        %v4328 = vunpack.c.0.s8 %v4327
        %v4329 = vlaneseq
        %v4330 = vshrl.u32 %v4329, 7
        %v4331 = vsub.s32 %v4328, %v4330
        %v4332 = vrot.slane %v4324, %v4331
        %v4334 = vunpack.c.l.s4 1983009808
        %v4335 = vunpack.c.0.s8 %v4334
        %v4336 = vlaneseq
        %v4337 = vshrl.u32 %v4336, 7
        %v4338 = vsub.s32 %v4335, %v4337
        %v4339 = vrot.slane %v4325, %v4338
        %v4340 = vcombine.low %v4316, %v4332
        %v4341 = vcombine.high %v4316, %v4332
        %v4343 = vunpack.c.l.s4 1934713408
        %v4344 = vunpack.c.0.s8 %v4343
        %v4345 = vlaneseq
        %v4346 = vshrl.u32 %v4345, 7
        %v4347 = vsub.s32 %v4344, %v4346
        %v4348 = vrot.slane %v4340, %v4347
        %v4350 = vunpack.c.l.s4 1934713408
        %v4351 = vunpack.c.0.s8 %v4350
        %v4352 = vlaneseq
        %v4353 = vshrl.u32 %v4352, 7
        %v4354 = vsub.s32 %v4351, %v4353
        %v4355 = vrot.slane %v4341, %v4354
        %v4356 = vcombine.low %v4323, %v4339
        %v4357 = vcombine.high %v4323, %v4339
        %v4359 = vunpack.c.l.s4 1934713408
        %v4360 = vunpack.c.0.s8 %v4359
        %v4361 = vlaneseq
        %v4362 = vshrl.u32 %v4361, 7
        %v4363 = vsub.s32 %v4360, %v4362
        %v4364 = vrot.slane %v4356, %v4363
        %v4366 = vunpack.c.l.s4 1934713408
        %v4367 = vunpack.c.0.s8 %v4366
        %v4368 = vlaneseq
        %v4369 = vshrl.u32 %v4368, 7
        %v4370 = vsub.s32 %v4367, %v4369
        %v4371 = vrot.slane %v4357, %v4370
        %v4372 = vcombine.high %v4348, 0.0
        %v4373 = vcombine.high %v4355, 0.0
        %v4374 = vcombine.high %v4364, 0.0
        %v4375 = vcombine.high %v4371, 0.0
        %v4376 = vcombine.low %v3970, %v4146
        %v4377 = vcombine.high %v3970, %v4146
        %v4379 = vunpack.c.l.s4 1983009808
        %v4380 = vunpack.c.0.s8 %v4379
        %v4381 = vlaneseq
        %v4382 = vshrl.u32 %v4381, 7
        %v4383 = vsub.s32 %v4380, %v4382
        %v4384 = vrot.slane %v4376, %v4383
        %v4386 = vunpack.c.l.s4 1983009808
        %v4387 = vunpack.c.0.s8 %v4386
        %v4388 = vlaneseq
        %v4389 = vshrl.u32 %v4388, 7
        %v4390 = vsub.s32 %v4387, %v4389
        %v4391 = vrot.slane %v4377, %v4390
        %v4392 = vcombine.low %v4058, %v4234
        %v4393 = vcombine.high %v4058, %v4234
        %v4395 = vunpack.c.l.s4 1983009808
        %v4396 = vunpack.c.0.s8 %v4395
        %v4397 = vlaneseq
        %v4398 = vshrl.u32 %v4397, 7
        %v4399 = vsub.s32 %v4396, %v4398
        %v4400 = vrot.slane %v4392, %v4399
        %v4402 = vunpack.c.l.s4 1983009808
        %v4403 = vunpack.c.0.s8 %v4402
        %v4404 = vlaneseq
        %v4405 = vshrl.u32 %v4404, 7
        %v4406 = vsub.s32 %v4403, %v4405
        %v4407 = vrot.slane %v4393, %v4406
        %v4408 = vcombine.low %v4384, %v4400
        %v4409 = vcombine.high %v4384, %v4400
        %v4411 = vunpack.c.l.s4 1934713408
        %v4412 = vunpack.c.0.s8 %v4411
        %v4413 = vlaneseq
        %v4414 = vshrl.u32 %v4413, 7
        %v4415 = vsub.s32 %v4412, %v4414
        %v4416 = vrot.slane %v4408, %v4415
        %v4418 = vunpack.c.l.s4 1934713408
        %v4419 = vunpack.c.0.s8 %v4418
        %v4420 = vlaneseq
        %v4421 = vshrl.u32 %v4420, 7
        %v4422 = vsub.s32 %v4419, %v4421
        %v4423 = vrot.slane %v4409, %v4422
        %v4424 = vcombine.low %v4391, %v4407
        %v4425 = vcombine.high %v4391, %v4407
        %v4427 = vunpack.c.l.s4 1934713408
        %v4428 = vunpack.c.0.s8 %v4427
        %v4429 = vlaneseq
        %v4430 = vshrl.u32 %v4429, 7
        %v4431 = vsub.s32 %v4428, %v4430
        %v4432 = vrot.slane %v4424, %v4431
        %v4434 = vunpack.c.l.s4 1934713408
        %v4435 = vunpack.c.0.s8 %v4434
        %v4436 = vlaneseq
        %v4437 = vshrl.u32 %v4436, 7
        %v4438 = vsub.s32 %v4435, %v4437
        %v4439 = vrot.slane %v4425, %v4438
        %v4440 = vcombine.high %v4416, 0.0
        %v4441 = vcombine.high %v4423, 0.0
        %v4442 = vcombine.high %v4432, 0.0
        %v4443 = vcombine.high %v4439, 0.0
        %v4444 = vcombine.low %v3973, %v4149
        %v4445 = vcombine.high %v3973, %v4149
        %v4447 = vunpack.c.l.s4 1983009808
        %v4448 = vunpack.c.0.s8 %v4447
        %v4449 = vlaneseq
        %v4450 = vshrl.u32 %v4449, 7
        %v4451 = vsub.s32 %v4448, %v4450
        %v4452 = vrot.slane %v4444, %v4451
        %v4454 = vunpack.c.l.s4 1983009808
        %v4455 = vunpack.c.0.s8 %v4454
        %v4456 = vlaneseq
        %v4457 = vshrl.u32 %v4456, 7
        %v4458 = vsub.s32 %v4455, %v4457
        %v4459 = vrot.slane %v4445, %v4458
        %v4460 = vcombine.low %v4061, %v4237
        %v4461 = vcombine.high %v4061, %v4237
        %v4463 = vunpack.c.l.s4 1983009808
        %v4464 = vunpack.c.0.s8 %v4463
        %v4465 = vlaneseq
        %v4466 = vshrl.u32 %v4465, 7
        %v4467 = vsub.s32 %v4464, %v4466
        %v4468 = vrot.slane %v4460, %v4467
        %v4470 = vunpack.c.l.s4 1983009808
        %v4471 = vunpack.c.0.s8 %v4470
        %v4472 = vlaneseq
        %v4473 = vshrl.u32 %v4472, 7
        %v4474 = vsub.s32 %v4471, %v4473
        %v4475 = vrot.slane %v4461, %v4474
        %v4476 = vcombine.low %v4452, %v4468
        %v4477 = vcombine.high %v4452, %v4468
        %v4479 = vunpack.c.l.s4 1934713408
        %v4480 = vunpack.c.0.s8 %v4479
        %v4481 = vlaneseq
        %v4482 = vshrl.u32 %v4481, 7
        %v4483 = vsub.s32 %v4480, %v4482
        %v4484 = vrot.slane %v4476, %v4483
        %v4486 = vunpack.c.l.s4 1934713408
        %v4487 = vunpack.c.0.s8 %v4486
        %v4488 = vlaneseq
        %v4489 = vshrl.u32 %v4488, 7
        %v4490 = vsub.s32 %v4487, %v4489
        %v4491 = vrot.slane %v4477, %v4490
        %v4492 = vcombine.low %v4459, %v4475
        %v4493 = vcombine.high %v4459, %v4475
        %v4495 = vunpack.c.l.s4 1934713408
        %v4496 = vunpack.c.0.s8 %v4495
        %v4497 = vlaneseq
        %v4498 = vshrl.u32 %v4497, 7
        %v4499 = vsub.s32 %v4496, %v4498
        %v4500 = vrot.slane %v4492, %v4499
        %v4502 = vunpack.c.l.s4 1934713408
        %v4503 = vunpack.c.0.s8 %v4502
        %v4504 = vlaneseq
        %v4505 = vshrl.u32 %v4504, 7
        %v4506 = vsub.s32 %v4503, %v4505
        %v4507 = vrot.slane %v4493, %v4506
        %v4508 = vcombine.high %v4484, 0.0
        %v4509 = vcombine.high %v4491, 0.0
        %v4510 = vcombine.high %v4500, 0.0
        %v4511 = vcombine.high %v4507, 0.0
        %v4512 = vcombine.low %v4280, %v4287
        %v4514 = vunpack.c.l.s4 1983009808
        %v4515 = vunpack.c.0.s8 %v4514
        %v4516 = vlaneseq
        %v4517 = vshrl.u32 %v4516, 7
        %v4518 = vsub.s32 %v4515, %v4517
        %v4519 = vrot.slane %v4512, %v4518
        %v4520 = vcombine.low %v4304, %v4305
        %v4522 = vunpack.c.l.s4 1983009808
        %v4523 = vunpack.c.0.s8 %v4522
        %v4524 = vlaneseq
        %v4525 = vshrl.u32 %v4524, 7
        %v4526 = vsub.s32 %v4523, %v4525
        %v4527 = vrot.slane %v4520, %v4526
        %v4528 = vcombine.low %v4296, %v4303
        %v4530 = vunpack.c.l.s4 1983009808
        %v4531 = vunpack.c.0.s8 %v4530
        %v4532 = vlaneseq
        %v4533 = vshrl.u32 %v4532, 7
        %v4534 = vsub.s32 %v4531, %v4533
        %v4535 = vrot.slane %v4528, %v4534
        %v4536 = vcombine.low %v4306, %v4307
        %v4538 = vunpack.c.l.s4 1983009808
        %v4539 = vunpack.c.0.s8 %v4538
        %v4540 = vlaneseq
        %v4541 = vshrl.u32 %v4540, 7
        %v4542 = vsub.s32 %v4539, %v4541
        %v4543 = vrot.slane %v4536, %v4542
        %v4544 = vcombine.low %v4519, %v4527
        %v4545 = vcombine.high %v4519, %v4527
        %v4547 = vunpack.c.l.s4 1934713408
        %v4548 = vunpack.c.0.s8 %v4547
        %v4549 = vlaneseq
        %v4550 = vshrl.u32 %v4549, 7
        %v4551 = vsub.s32 %v4548, %v4550
        %v4552 = vrot.slane %v4544, %v4551
        %v4554 = vunpack.c.l.s4 1934713408
        %v4555 = vunpack.c.0.s8 %v4554
        %v4556 = vlaneseq
        %v4557 = vshrl.u32 %v4556, 7
        %v4558 = vsub.s32 %v4555, %v4557
        %v4559 = vrot.slane %v4545, %v4558
        %v4560 = vcombine.low %v4535, %v4543
        %v4561 = vcombine.high %v4535, %v4543
        %v4563 = vunpack.c.l.s4 1934713408
        %v4564 = vunpack.c.0.s8 %v4563
        %v4565 = vlaneseq
        %v4566 = vshrl.u32 %v4565, 7
        %v4567 = vsub.s32 %v4564, %v4566
        %v4568 = vrot.slane %v4560, %v4567
        %v4570 = vunpack.c.l.s4 1934713408
        %v4571 = vunpack.c.0.s8 %v4570
        %v4572 = vlaneseq
        %v4573 = vshrl.u32 %v4572, 7
        %v4574 = vsub.s32 %v4571, %v4573
        %v4575 = vrot.slane %v4561, %v4574
        %v4576 = vcombine.low %v4552, %v4568
        %v4577 = vcombine.high %v4552, %v4568
        %v4578 = vcombine.low %v4559, %v4575
        %v4579 = vcombine.high %v4559, %v4575
        %v4580 = vcombine.low %v4348, %v4355
        %v4582 = vunpack.c.l.s4 1983009808
        %v4583 = vunpack.c.0.s8 %v4582
        %v4584 = vlaneseq
        %v4585 = vshrl.u32 %v4584, 7
        %v4586 = vsub.s32 %v4583, %v4585
        %v4587 = vrot.slane %v4580, %v4586
        %v4588 = vcombine.low %v4372, %v4373
        %v4590 = vunpack.c.l.s4 1983009808
        %v4591 = vunpack.c.0.s8 %v4590
        %v4592 = vlaneseq
        %v4593 = vshrl.u32 %v4592, 7
        %v4594 = vsub.s32 %v4591, %v4593
        %v4595 = vrot.slane %v4588, %v4594
        %v4596 = vcombine.low %v4364, %v4371
        %v4598 = vunpack.c.l.s4 1983009808
        %v4599 = vunpack.c.0.s8 %v4598
        %v4600 = vlaneseq
        %v4601 = vshrl.u32 %v4600, 7
        %v4602 = vsub.s32 %v4599, %v4601
        %v4603 = vrot.slane %v4596, %v4602
        %v4604 = vcombine.low %v4374, %v4375
        %v4606 = vunpack.c.l.s4 1983009808
        %v4607 = vunpack.c.0.s8 %v4606
        %v4608 = vlaneseq
        %v4609 = vshrl.u32 %v4608, 7
        %v4610 = vsub.s32 %v4607, %v4609
        %v4611 = vrot.slane %v4604, %v4610
        %v4612 = vcombine.low %v4587, %v4595
        %v4613 = vcombine.high %v4587, %v4595
        %v4615 = vunpack.c.l.s4 1934713408
        %v4616 = vunpack.c.0.s8 %v4615
        %v4617 = vlaneseq
        %v4618 = vshrl.u32 %v4617, 7
        %v4619 = vsub.s32 %v4616, %v4618
        %v4620 = vrot.slane %v4612, %v4619
        %v4622 = vunpack.c.l.s4 1934713408
        %v4623 = vunpack.c.0.s8 %v4622
        %v4624 = vlaneseq
        %v4625 = vshrl.u32 %v4624, 7
        %v4626 = vsub.s32 %v4623, %v4625
        %v4627 = vrot.slane %v4613, %v4626
        %v4628 = vcombine.low %v4603, %v4611
        %v4629 = vcombine.high %v4603, %v4611
        %v4631 = vunpack.c.l.s4 1934713408
        %v4632 = vunpack.c.0.s8 %v4631
        %v4633 = vlaneseq
        %v4634 = vshrl.u32 %v4633, 7
        %v4635 = vsub.s32 %v4632, %v4634
        %v4636 = vrot.slane %v4628, %v4635
        %v4638 = vunpack.c.l.s4 1934713408
        %v4639 = vunpack.c.0.s8 %v4638
        %v4640 = vlaneseq
        %v4641 = vshrl.u32 %v4640, 7
        %v4642 = vsub.s32 %v4639, %v4641
        %v4643 = vrot.slane %v4629, %v4642
        %v4644 = vcombine.low %v4620, %v4636
        %v4645 = vcombine.high %v4620, %v4636
        %v4646 = vcombine.low %v4627, %v4643
        %v4647 = vcombine.high %v4627, %v4643
        %v4648 = vcombine.low %v4416, %v4423
        %v4650 = vunpack.c.l.s4 1983009808
        %v4651 = vunpack.c.0.s8 %v4650
        %v4652 = vlaneseq
        %v4653 = vshrl.u32 %v4652, 7
        %v4654 = vsub.s32 %v4651, %v4653
        %v4655 = vrot.slane %v4648, %v4654
        %v4656 = vcombine.low %v4440, %v4441
        %v4658 = vunpack.c.l.s4 1983009808
        %v4659 = vunpack.c.0.s8 %v4658
        %v4660 = vlaneseq
        %v4661 = vshrl.u32 %v4660, 7
        %v4662 = vsub.s32 %v4659, %v4661
        %v4663 = vrot.slane %v4656, %v4662
        %v4664 = vcombine.low %v4432, %v4439
        %v4666 = vunpack.c.l.s4 1983009808
        %v4667 = vunpack.c.0.s8 %v4666
        %v4668 = vlaneseq
        %v4669 = vshrl.u32 %v4668, 7
        %v4670 = vsub.s32 %v4667, %v4669
        %v4671 = vrot.slane %v4664, %v4670
        %v4672 = vcombine.low %v4442, %v4443
        %v4674 = vunpack.c.l.s4 1983009808
        %v4675 = vunpack.c.0.s8 %v4674
        %v4676 = vlaneseq
        %v4677 = vshrl.u32 %v4676, 7
        %v4678 = vsub.s32 %v4675, %v4677
        %v4679 = vrot.slane %v4672, %v4678
        %v4680 = vcombine.low %v4655, %v4663
        %v4681 = vcombine.high %v4655, %v4663
        %v4683 = vunpack.c.l.s4 1934713408
        %v4684 = vunpack.c.0.s8 %v4683
        %v4685 = vlaneseq
        %v4686 = vshrl.u32 %v4685, 7
        %v4687 = vsub.s32 %v4684, %v4686
        %v4688 = vrot.slane %v4680, %v4687
        %v4690 = vunpack.c.l.s4 1934713408
        %v4691 = vunpack.c.0.s8 %v4690
        %v4692 = vlaneseq
        %v4693 = vshrl.u32 %v4692, 7
        %v4694 = vsub.s32 %v4691, %v4693
        %v4695 = vrot.slane %v4681, %v4694
        %v4696 = vcombine.low %v4671, %v4679
        %v4697 = vcombine.high %v4671, %v4679
        %v4699 = vunpack.c.l.s4 1934713408
        %v4700 = vunpack.c.0.s8 %v4699
        %v4701 = vlaneseq
        %v4702 = vshrl.u32 %v4701, 7
        %v4703 = vsub.s32 %v4700, %v4702
        %v4704 = vrot.slane %v4696, %v4703
        %v4706 = vunpack.c.l.s4 1934713408
        %v4707 = vunpack.c.0.s8 %v4706
        %v4708 = vlaneseq
        %v4709 = vshrl.u32 %v4708, 7
        %v4710 = vsub.s32 %v4707, %v4709
        %v4711 = vrot.slane %v4697, %v4710
        %v4712 = vcombine.low %v4688, %v4704
        %v4713 = vcombine.high %v4688, %v4704
        %v4714 = vcombine.low %v4695, %v4711
        %v4715 = vcombine.high %v4695, %v4711
        %v4716 = vcombine.low %v4484, %v4491
        %v4718 = vunpack.c.l.s4 1983009808
        %v4719 = vunpack.c.0.s8 %v4718
        %v4720 = vlaneseq
        %v4721 = vshrl.u32 %v4720, 7
        %v4722 = vsub.s32 %v4719, %v4721
        %v4723 = vrot.slane %v4716, %v4722
        %v4724 = vcombine.low %v4508, %v4509
        %v4726 = vunpack.c.l.s4 1983009808
        %v4727 = vunpack.c.0.s8 %v4726
        %v4728 = vlaneseq
        %v4729 = vshrl.u32 %v4728, 7
        %v4730 = vsub.s32 %v4727, %v4729
        %v4731 = vrot.slane %v4724, %v4730
        %v4732 = vcombine.low %v4500, %v4507
        %v4734 = vunpack.c.l.s4 1983009808
        %v4735 = vunpack.c.0.s8 %v4734
        %v4736 = vlaneseq
        %v4737 = vshrl.u32 %v4736, 7
        %v4738 = vsub.s32 %v4735, %v4737
        %v4739 = vrot.slane %v4732, %v4738
        %v4740 = vcombine.low %v4510, %v4511
        %v4742 = vunpack.c.l.s4 1983009808
        %v4743 = vunpack.c.0.s8 %v4742
        %v4744 = vlaneseq
        %v4745 = vshrl.u32 %v4744, 7
        %v4746 = vsub.s32 %v4743, %v4745
        %v4747 = vrot.slane %v4740, %v4746
        %v4748 = vcombine.low %v4723, %v4731
        %v4749 = vcombine.high %v4723, %v4731
        %v4751 = vunpack.c.l.s4 1934713408
        %v4752 = vunpack.c.0.s8 %v4751
        %v4753 = vlaneseq
        %v4754 = vshrl.u32 %v4753, 7
        %v4755 = vsub.s32 %v4752, %v4754
        %v4756 = vrot.slane %v4748, %v4755
        %v4758 = vunpack.c.l.s4 1934713408
        %v4759 = vunpack.c.0.s8 %v4758
        %v4760 = vlaneseq
        %v4761 = vshrl.u32 %v4760, 7
        %v4762 = vsub.s32 %v4759, %v4761
        %v4763 = vrot.slane %v4749, %v4762
        %v4764 = vcombine.low %v4739, %v4747
        %v4765 = vcombine.high %v4739, %v4747
        %v4767 = vunpack.c.l.s4 1934713408
        %v4768 = vunpack.c.0.s8 %v4767
        %v4769 = vlaneseq
        %v4770 = vshrl.u32 %v4769, 7
        %v4771 = vsub.s32 %v4768, %v4770
        %v4772 = vrot.slane %v4764, %v4771
        %v4774 = vunpack.c.l.s4 1934713408
        %v4775 = vunpack.c.0.s8 %v4774
        %v4776 = vlaneseq
        %v4777 = vshrl.u32 %v4776, 7
        %v4778 = vsub.s32 %v4775, %v4777
        %v4779 = vrot.slane %v4765, %v4778
        %v4780 = vcombine.low %v4756, %v4772
        %v4781 = vcombine.high %v4756, %v4772
        %v4782 = vcombine.low %v4763, %v4779
        %v4783 = vcombine.high %v4763, %v4779
        %4788 = vrot.lane.b32.xlu0 %v4577, 32
        %v4789 = vpop.permute.xlu0 %4788
        %4790 = vrot.lane.b32.xlu0 %v4645, 32
        %v4791 = vpop.permute.xlu0 %4790
        %4792 = vrot.lane.b32.xlu0 %v4713, 32
        %v4793 = vpop.permute.xlu0 %4792
        %4794 = vrot.lane.b32.xlu0 %v4781, 32
        %v4795 = vpop.permute.xlu0 %4794
        %4804 = vrot.lane.b32.xlu0 %v4578, 64
        %v4805 = vpop.permute.xlu0 %4804
        %4806 = vrot.lane.b32.xlu0 %v4646, 64
        %v4807 = vpop.permute.xlu0 %4806
        %4808 = vrot.lane.b32.xlu0 %v4714, 64
        %v4809 = vpop.permute.xlu0 %4808
        %4810 = vrot.lane.b32.xlu0 %v4782, 64
        %v4811 = vpop.permute.xlu0 %4810
        %4820 = vrot.lane.b32.xlu0 %v4579, 96
        %v4821 = vpop.permute.xlu0 %4820
        %4822 = vrot.lane.b32.xlu0 %v4647, 96
        %v4823 = vpop.permute.xlu0 %4822
        %4824 = vrot.lane.b32.xlu0 %v4715, 96
        %v4825 = vpop.permute.xlu0 %4824
        %4826 = vrot.lane.b32.xlu0 %v4783, 96
        %v4827 = vpop.permute.xlu0 %4826
        %v4832 = vsel %vm3307, %v4576, %v4789
        %v4833 = vsel %vm3307, %v4644, %v4791
        %v4834 = vsel %vm3307, %v4712, %v4793
        %v4835 = vsel %vm3307, %v4780, %v4795
        %vm4836 = vcmask 523264
        %v4837 = vsel %vm4836, %v4832, %v4805
        %v4838 = vsel %vm4836, %v4833, %v4807
        %v4839 = vsel %vm4836, %v4834, %v4809
        %v4840 = vsel %vm4836, %v4835, %v4811
        %vm4841 = vcmask 785408
        %v4842 = vsel %vm4841, %v4837, %v4821
        %v4843 = vsel %vm4841, %v4838, %v4823
        %v4844 = vsel %vm4841, %v4839, %v4825
        %v4845 = vsel %vm4841, %v4840, %v4827
        %v4846 = vpack.c.bf16 %v4843, %v4842
        %v4847 = vpack.c.bf16 %v4845, %v4844
        %v4848 = vld [vmem:[%s927] sm:$0xf]
        %v4849 = vld [vmem:[%s927 + $0x4] sm:$0xf]
        %v4850 = vld [vmem:[%s927 + $0x8] sm:$0xf]
        %v4851 = vld [vmem:[%s927 + $0xc] sm:$0xf]
        %v4852 = vld [vmem:[%s927 + $0x10] sm:$0xf]
        %v4853 = vld [vmem:[%s927 + $0x14] sm:$0xf]
        %v4854 = vld [vmem:[%s927 + $0x18] sm:$0xf]
        %v4855 = vld [vmem:[%s927 + $0x1c] sm:$0xf]
        %v4856 = vld [vmem:[%s927 + $0x20] sm:$0xf]
        %v4857 = vld [vmem:[%s927 + $0x24] sm:$0xf]
        %v4858 = vld [vmem:[%s927 + $0x28] sm:$0xf]
        %v4859 = vld [vmem:[%s927 + $0x2c] sm:$0xf]
        %v4860 = vld [vmem:[%s927 + $0x30] sm:$0xf]
        %v4861 = vld [vmem:[%s927 + $0x34] sm:$0xf]
        %v4862 = vld [vmem:[%s927 + $0x38] sm:$0xf]
        %v4863 = vld [vmem:[%s927 + $0x3c] sm:$0xf]
        %v4864 = vld [vmem:[%s1065] sm:$0x1]
        %v4866 = vlaneseq
        %v4867 = vshrl.u32 %v4866, 7
        %v4868 = vsub.s32 0, %v4867
        %v4869 = vrot.slane %v4864, %v4868
        %v4887 = vunpack.c.l.b16 %v4848
        %v4888 = vunpack.c.l.b16 %v4849
        %v4889 = vunpack.c.l.b16 %v4850
        %v4890 = vunpack.c.l.b16 %v4851
        %v4891 = vunpack.c.l.b16 %v4852
        %v4892 = vunpack.c.l.b16 %v4853
        %v4893 = vunpack.c.l.b16 %v4854
        %v4894 = vunpack.c.l.b16 %v4855
        %v4895 = vunpack.c.l.b16 %v4856
        %v4896 = vunpack.c.l.b16 %v4857
        %v4897 = vunpack.c.l.b16 %v4858
        %v4898 = vunpack.c.l.b16 %v4859
        %v4899 = vunpack.c.l.b16 %v4860
        %v4900 = vunpack.c.l.b16 %v4861
        %v4901 = vunpack.c.l.b16 %v4862
        %v4902 = vunpack.c.l.b16 %v4863
        %v4903 = vpack.c.b16 %v4888, %v4887
        %v4904 = vpack.c.b16 %v4890, %v4889
        %v4905 = vpack.c.b16 %v4892, %v4891
        %v4906 = vpack.c.b16 %v4894, %v4893
        %v4907 = vpack.c.b16 %v4896, %v4895
        %v4908 = vpack.c.b16 %v4898, %v4897
        %v4909 = vpack.c.b16 %v4900, %v4899
        %v4910 = vpack.c.b16 %v4902, %v4901
        %4919 = vmatprep.subr.bf16.mxu0 0
        %4920 = vmatpush1.bf16.msra.mxu0 %v4903
        %4921 = vmatprep.subr.bf16.mxu0 0
        %4922 = vmatpush1.bf16.msra.mxu0 %v4904
        %4923 = vmatprep.subr.bf16.mxu0 0
        %4924 = vmatpush1.bf16.msra.mxu0 %v4905
        %4925 = vmatprep.subr.bf16.mxu0 0
        %4926 = vmatpush1.bf16.msra.mxu0 %v4906
        %4927 = vmatprep.subr.bf16.mxu0 0
        %4928 = vmatpush1.bf16.msra.mxu0 %v4907
        %4929 = vmatprep.subr.bf16.mxu0 0
        %4930 = vmatpush1.bf16.msra.mxu0 %v4908
        %4931 = vmatprep.subr.bf16.mxu0 0
        %4932 = vmatpush1.bf16.msra.mxu0 %v4909
        %4933 = vmatprep.subr.bf16.mxu0 0
        %4934 = vmatpush1.bf16.msra.mxu0 %v4910
        %4935 = vmatprep.subr.bf16.mxu0 0
        %4936 = vmatpush1.bf16.msra.mxu0 0
        %4937 = vmatprep.subr.bf16.mxu0 0
        %4938 = vmatpush1.bf16.msra.mxu0 0
        %4939 = vmatprep.subr.bf16.mxu0 0
        %4940 = vmatpush1.bf16.msra.mxu0 0
        %4941 = vmatprep.subr.bf16.mxu0 0
        %4942 = vmatpush1.bf16.msra.mxu0 0
        %4943 = vmatprep.subr.bf16.mxu0 0
        %4944 = vmatpush1.bf16.msra.mxu0 0
        %4945 = vmatprep.subr.bf16.mxu0 0
        %4946 = vmatpush1.bf16.msra.mxu0 0
        %4947 = vmatprep.subr.bf16.mxu0 0
        %4948 = vmatpush1.bf16.msra.mxu0 0
        %4949 = vmatprep.subr.bf16.mxu0 0
        %4950 = vmatpush1.bf16.msra.mxu0 0
        %4951 = vmatprep.mubr.bf16.mxu0 0
        %4952 = vmatmul.mubr.bf16.gmra.mrb[0].mxu0 %v4846
        %v4953 = vpop.f32.mrb[0].mxu0
        %v4954 = vadd.f32 %v4869, %v4953
        %v4955 = vpop.f32.mrb[0].mxu0
        %v4956 = vpop.f32.mrb[0].mxu0
        %v4957 = vadd.f32 %v4869, %v4956
        %v4958 = vpop.f32.mrb[0].mxu0
        %4959 = vmatprep.mubr.bf16.mxu0 0
        %4960 = vmatmul.mubr.bf16.gmra.mrb[0].mxu0 %v4847
        %v4961 = vpop.f32.mrb[0].mxu0
        %v4962 = vadd.f32 %v4869, %v4961
        %v4963 = vpop.f32.mrb[0].mxu0
        %v4964 = vpop.f32.mrb[0].mxu0
        %v4965 = vadd.f32 %v4869, %v4964
        %v4966 = vpop.f32.mrb[0].mxu0
        %4967 = vdwg.mxu0
        %v4968 = vadd.f32 %v1163, %v4954
        %v4969 = vadd.f32 %v1164, %v4957
        %v4970 = vadd.f32 %v1165, %v4962
        %v4971 = vadd.f32 %v1166, %v4965
        %v4972 = vld [vmem:[%s1068] sm:$0x1]
        %v4973 = vld [vmem:[%s1071] sm:$0x1]
        %4974 = vadd.xlane.f32.xlu0 %v4968
        %v4975 = vpop.xlane.xlu0 %4974
        %4976 = vadd.xlane.f32.xlu0 %v4969
        %v4977 = vpop.xlane.xlu0 %4976
        %4978 = vadd.xlane.f32.xlu0 %v4970
        %v4979 = vpop.xlane.xlu0 %4978
        %4980 = vadd.xlane.f32.xlu0 %v4971
        %v4981 = vpop.xlane.xlu0 %4980
        %v4982 = vmul.f32 %v4975, %v1181
        %v4983 = vmul.f32 %v4977, %v1181
        %v4984 = vmul.f32 %v4979, %v1181
        %v4985 = vmul.f32 %v4981, %v1181
        %v4986 = vsub.f32 %v4968, %v4982
        %v4987 = vsub.f32 %v4969, %v4983
        %v4988 = vsub.f32 %v4970, %v4984
        %v4989 = vsub.f32 %v4971, %v4985
        %v4990 = vmul.f32 %v4986, %v4986
        %v4991 = vmul.f32 %v4987, %v4987
        %v4992 = vmul.f32 %v4988, %v4988
        %v4993 = vmul.f32 %v4989, %v4989
        %4994 = vadd.xlane.f32.xlu0 %v4990
        %v4995 = vpop.xlane.xlu0 %4994
        %4996 = vadd.xlane.f32.xlu0 %v4991
        %v4997 = vpop.xlane.xlu0 %4996
        %4998 = vadd.xlane.f32.xlu0 %v4992
        %v4999 = vpop.xlane.xlu0 %4998
        %5000 = vadd.xlane.f32.xlu0 %v4993
        %v5001 = vpop.xlane.xlu0 %5000
        %v5002 = vmul.f32 %v4995, %v1181
        %v5003 = vmul.f32 %v4997, %v1181
        %v5004 = vmul.f32 %v4999, %v1181
        %v5005 = vmul.f32 %v5001, %v1181
        %v5006 = vadd.f32 %v5002, 1e-05
        %v5007 = vadd.f32 %v5003, 1e-05
        %v5008 = vadd.f32 %v5004, 1e-05
        %v5009 = vadd.f32 %v5005, 1e-05
        %v5010 = vrsqrt.pop %v5006
        %v5011 = vrsqrt.pop %v5007
        %v5012 = vrsqrt.pop %v5008
        %v5013 = vrsqrt.pop %v5009
        %v5014 = vmul.f32 %v4986, %v5010
        %v5015 = vmul.f32 %v4987, %v5011
        %v5016 = vmul.f32 %v4988, %v5012
        %v5017 = vmul.f32 %v4989, %v5013
        %v5019 = vlaneseq
        %v5020 = vshrl.u32 %v5019, 7
        %v5021 = vsub.s32 0, %v5020
        %v5022 = vrot.slane %v4972, %v5021
        %v5024 = vmul.f32 %v5014, %v5022
        %v5025 = vmul.f32 %v5015, %v5022
        %v5026 = vmul.f32 %v5016, %v5022
        %v5027 = vmul.f32 %v5017, %v5022
        %v5029 = vlaneseq
        %v5030 = vshrl.u32 %v5029, 7
        %v5031 = vsub.s32 0, %v5030
        %v5032 = vrot.slane %v4973, %v5031
        %v5034 = vadd.f32 %v5024, %v5032
        %v5035 = vadd.f32 %v5025, %v5032
        %v5036 = vadd.f32 %v5026, %v5032
        %v5037 = vadd.f32 %v5027, %v5032
        %v5038 = vpack.c.bf16 %v5035, %v5034
        %v5039 = vpack.c.bf16 %v5037, %v5036
        %v5040 = vld [vmem:[%s936] sm:$0xff]
        %v5041 = vld [vmem:[%s936 + $0x8] sm:$0xff]
        %v5042 = vld [vmem:[%s936 + $0x10] sm:$0xff]
        %v5043 = vld [vmem:[%s936 + $0x18] sm:$0xff]
        %v5044 = vld [vmem:[%s936 + $0x20] sm:$0xff]
        %v5045 = vld [vmem:[%s936 + $0x28] sm:$0xff]
        %v5046 = vld [vmem:[%s936 + $0x30] sm:$0xff]
        %v5047 = vld [vmem:[%s936 + $0x38] sm:$0xff]
        %v5048 = vld [vmem:[%s936 + $0x40] sm:$0xff]
        %v5049 = vld [vmem:[%s936 + $0x48] sm:$0xff]
        %v5050 = vld [vmem:[%s936 + $0x50] sm:$0xff]
        %v5051 = vld [vmem:[%s936 + $0x58] sm:$0xff]
        %v5052 = vld [vmem:[%s936 + $0x60] sm:$0xff]
        %v5053 = vld [vmem:[%s936 + $0x68] sm:$0xff]
        %v5054 = vld [vmem:[%s936 + $0x70] sm:$0xff]
        %v5055 = vld [vmem:[%s936 + $0x78] sm:$0xff]
        %v5056 = vld [vmem:[%s1075] sm:$0x3]
        %v5058 = vlaneseq
        %v5059 = vshrl.u32 %v5058, 7
        %v5060 = vsub.s32 0, %v5059
        %v5061 = vrot.slane %v5056, %v5060
        %v5062 = vlaneseq
        %v5063 = vshrl.u32 %v5062, 7
        %v5064 = vsub.s32 1, %v5063
        %v5065 = vrot.slane %v5056, %v5064
        %v5084 = vunpack.c.l.b16 %v5040
        %v5085 = vunpack.c.h.b16 %v5040
        %v5086 = vunpack.c.l.b16 %v5041
        %v5087 = vunpack.c.h.b16 %v5041
        %v5088 = vunpack.c.l.b16 %v5042
        %v5089 = vunpack.c.h.b16 %v5042
        %v5090 = vunpack.c.l.b16 %v5043
        %v5091 = vunpack.c.h.b16 %v5043
        %v5092 = vunpack.c.l.b16 %v5044
        %v5093 = vunpack.c.h.b16 %v5044
        %v5094 = vunpack.c.l.b16 %v5045
        %v5095 = vunpack.c.h.b16 %v5045
        %v5096 = vunpack.c.l.b16 %v5046
        %v5097 = vunpack.c.h.b16 %v5046
        %v5098 = vunpack.c.l.b16 %v5047
        %v5099 = vunpack.c.h.b16 %v5047
        %v5100 = vunpack.c.l.b16 %v5048
        %v5101 = vunpack.c.h.b16 %v5048
        %v5102 = vunpack.c.l.b16 %v5049
        %v5103 = vunpack.c.h.b16 %v5049
        %v5104 = vunpack.c.l.b16 %v5050
        %v5105 = vunpack.c.h.b16 %v5050
        %v5106 = vunpack.c.l.b16 %v5051
        %v5107 = vunpack.c.h.b16 %v5051
        %v5108 = vunpack.c.l.b16 %v5052
        %v5109 = vunpack.c.h.b16 %v5052
        %v5110 = vunpack.c.l.b16 %v5053
        %v5111 = vunpack.c.h.b16 %v5053
        %v5112 = vunpack.c.l.b16 %v5054
        %v5113 = vunpack.c.h.b16 %v5054
        %v5114 = vunpack.c.l.b16 %v5055
        %v5115 = vunpack.c.h.b16 %v5055
        %v5116 = vpack.c.b16 %v5086, %v5084
        %v5117 = vpack.c.b16 %v5087, %v5085
        %v5118 = vpack.c.b16 %v5090, %v5088
        %v5119 = vpack.c.b16 %v5091, %v5089
        %v5120 = vpack.c.b16 %v5094, %v5092
        %v5121 = vpack.c.b16 %v5095, %v5093
        %v5122 = vpack.c.b16 %v5098, %v5096
        %v5123 = vpack.c.b16 %v5099, %v5097
        %v5124 = vpack.c.b16 %v5102, %v5100
        %v5125 = vpack.c.b16 %v5103, %v5101
        %v5126 = vpack.c.b16 %v5106, %v5104
        %v5127 = vpack.c.b16 %v5107, %v5105
        %v5128 = vpack.c.b16 %v5110, %v5108
        %v5129 = vpack.c.b16 %v5111, %v5109
        %v5130 = vpack.c.b16 %v5114, %v5112
        %v5131 = vpack.c.b16 %v5115, %v5113
        %5148 = vmatprep.subr.bf16.mxu0 %v5117
        %5149 = vmatpush1.bf16.msra.mxu0 %v5116
        %5150 = vmatprep.subr.bf16.mxu0 %v5119
        %5151 = vmatpush1.bf16.msra.mxu0 %v5118
        %5152 = vmatprep.subr.bf16.mxu0 %v5121
        %5153 = vmatpush1.bf16.msra.mxu0 %v5120
        %5154 = vmatprep.subr.bf16.mxu0 %v5123
        %5155 = vmatpush1.bf16.msra.mxu0 %v5122
        %5156 = vmatprep.subr.bf16.mxu0 %v5125
        %5157 = vmatpush1.bf16.msra.mxu0 %v5124
        %5158 = vmatprep.subr.bf16.mxu0 %v5127
        %5159 = vmatpush1.bf16.msra.mxu0 %v5126
        %5160 = vmatprep.subr.bf16.mxu0 %v5129
        %5161 = vmatpush1.bf16.msra.mxu0 %v5128
        %5162 = vmatprep.subr.bf16.mxu0 %v5131
        %5163 = vmatpush1.bf16.msra.mxu0 %v5130
        %5164 = vmatprep.subr.bf16.mxu0 0
        %5165 = vmatpush1.bf16.msra.mxu0 0
        %5166 = vmatprep.subr.bf16.mxu0 0
        %5167 = vmatpush1.bf16.msra.mxu0 0
        %5168 = vmatprep.subr.bf16.mxu0 0
        %5169 = vmatpush1.bf16.msra.mxu0 0
        %5170 = vmatprep.subr.bf16.mxu0 0
        %5171 = vmatpush1.bf16.msra.mxu0 0
        %5172 = vmatprep.subr.bf16.mxu0 0
        %5173 = vmatpush1.bf16.msra.mxu0 0
        %5174 = vmatprep.subr.bf16.mxu0 0
        %5175 = vmatpush1.bf16.msra.mxu0 0
        %5176 = vmatprep.subr.bf16.mxu0 0
        %5177 = vmatpush1.bf16.msra.mxu0 0
        %5178 = vmatprep.subr.bf16.mxu0 0
        %5179 = vmatpush1.bf16.msra.mxu0 0
        %5180 = vmatprep.mubr.bf16.mxu0 0
        %5181 = vmatmul.mubr.bf16.gmra.mrb[0].mxu0 %v5038
        %v5182 = vpop.f32.mrb[0].mxu0
        %v5183 = vadd.f32 %v5061, %v5182
        %v5184 = vpop.f32.mrb[0].mxu0
        %v5185 = vadd.f32 %v5065, %v5184
        %v5186 = vpop.f32.mrb[0].mxu0
        %v5187 = vadd.f32 %v5061, %v5186
        %v5188 = vpop.f32.mrb[0].mxu0
        %v5189 = vadd.f32 %v5065, %v5188
        %5190 = vmatprep.mubr.bf16.mxu0 0
        %5191 = vmatmul.mubr.bf16.gmra.mrb[0].mxu0 %v5039
        %v5192 = vpop.f32.mrb[0].mxu0
        %v5193 = vadd.f32 %v5061, %v5192
        %v5194 = vpop.f32.mrb[0].mxu0
        %v5195 = vadd.f32 %v5065, %v5194
        %v5196 = vpop.f32.mrb[0].mxu0
        %v5197 = vadd.f32 %v5061, %v5196
        %v5198 = vpop.f32.mrb[0].mxu0
        %v5199 = vadd.f32 %v5065, %v5198
        %5200 = vdwg.mxu0
        %v5201 = vmul.f32 %v5183, %v5183
        %v5202 = vmul.f32 %v5185, %v5185
        %v5203 = vmul.f32 %v5187, %v5187
        %v5204 = vmul.f32 %v5189, %v5189
        %v5205 = vmul.f32 %v5193, %v5193
        %v5206 = vmul.f32 %v5195, %v5195
        %v5207 = vmul.f32 %v5197, %v5197
        %v5208 = vmul.f32 %v5199, %v5199
        %v5209 = vmul.f32 %v5183, %v5201
        %v5210 = vmul.f32 %v5185, %v5202
        %v5211 = vmul.f32 %v5187, %v5203
        %v5212 = vmul.f32 %v5189, %v5204
        %v5213 = vmul.f32 %v5193, %v5205
        %v5214 = vmul.f32 %v5195, %v5206
        %v5215 = vmul.f32 %v5197, %v5207
        %v5216 = vmul.f32 %v5199, %v5208
        %v5217 = vmul.f32 %v5209, 0.044715
        %v5218 = vmul.f32 %v5210, 0.044715
        %v5219 = vmul.f32 %v5211, 0.044715
        %v5220 = vmul.f32 %v5212, 0.044715
        %v5221 = vmul.f32 %v5213, 0.044715
        %v5222 = vmul.f32 %v5214, 0.044715
        %v5223 = vmul.f32 %v5215, 0.044715
        %v5224 = vmul.f32 %v5216, 0.044715
        %v5225 = vadd.f32 %v5183, %v5217
        %v5226 = vadd.f32 %v5185, %v5218
        %v5227 = vadd.f32 %v5187, %v5219
        %v5228 = vadd.f32 %v5189, %v5220
        %v5229 = vadd.f32 %v5193, %v5221
        %v5230 = vadd.f32 %v5195, %v5222
        %v5231 = vadd.f32 %v5197, %v5223
        %v5232 = vadd.f32 %v5199, %v5224
        %v5233 = vmul.f32 %v5225, 0.7978846
        %v5234 = vmul.f32 %v5226, 0.7978846
        %v5235 = vmul.f32 %v5227, 0.7978846
        %v5236 = vmul.f32 %v5228, 0.7978846
        %v5237 = vmul.f32 %v5229, 0.7978846
        %v5238 = vmul.f32 %v5230, 0.7978846
        %v5239 = vmul.f32 %v5231, 0.7978846
        %v5240 = vmul.f32 %v5232, 0.7978846
        %v5241 = vtanh.pop %v5233
        %v5242 = vtanh.pop %v5234
        %v5243 = vtanh.pop %v5235
        %v5244 = vtanh.pop %v5236
        %v5245 = vtanh.pop %v5237
        %v5246 = vtanh.pop %v5238
        %v5247 = vtanh.pop %v5239
        %v5248 = vtanh.pop %v5240
        %v5249 = vadd.f32 %v5241, 1.0
        %v5250 = vadd.f32 %v5242, 1.0
        %v5251 = vadd.f32 %v5243, 1.0
        %v5252 = vadd.f32 %v5244, 1.0
        %v5253 = vadd.f32 %v5245, 1.0
        %v5254 = vadd.f32 %v5246, 1.0
        %v5255 = vadd.f32 %v5247, 1.0
        %v5256 = vadd.f32 %v5248, 1.0
        %v5257 = vmul.f32 %v5249, 0.5
        %v5258 = vmul.f32 %v5250, 0.5
        %v5259 = vmul.f32 %v5251, 0.5
        %v5260 = vmul.f32 %v5252, 0.5
        %v5261 = vmul.f32 %v5253, 0.5
        %v5262 = vmul.f32 %v5254, 0.5
        %v5263 = vmul.f32 %v5255, 0.5
        %v5264 = vmul.f32 %v5256, 0.5
        %v5265 = vmul.f32 %v5183, %v5257
        %v5266 = vmul.f32 %v5185, %v5258
        %v5267 = vmul.f32 %v5187, %v5259
        %v5268 = vmul.f32 %v5189, %v5260
        %v5269 = vmul.f32 %v5193, %v5261
        %v5270 = vmul.f32 %v5195, %v5262
        %v5271 = vmul.f32 %v5197, %v5263
        %v5272 = vmul.f32 %v5199, %v5264
        %v5273 = vpack.c.bf16 %v5267, %v5265
        %v5274 = vpack.c.bf16 %v5268, %v5266
        %v5275 = vpack.c.bf16 %v5271, %v5269
        %v5276 = vpack.c.bf16 %v5272, %v5270
        %v5277 = vld [vmem:[%s945] sm:$0xf]
        %v5278 = vld [vmem:[%s945 + $0x4] sm:$0xf]
        %v5279 = vld [vmem:[%s945 + $0x8] sm:$0xf]
        %v5280 = vld [vmem:[%s945 + $0xc] sm:$0xf]
        %v5281 = vld [vmem:[%s945 + $0x10] sm:$0xf]
        %v5282 = vld [vmem:[%s945 + $0x14] sm:$0xf]
        %v5283 = vld [vmem:[%s945 + $0x18] sm:$0xf]
        %v5284 = vld [vmem:[%s945 + $0x1c] sm:$0xf]
        %v5285 = vld [vmem:[%s945 + $0x20] sm:$0xf]
        %v5286 = vld [vmem:[%s945 + $0x24] sm:$0xf]
        %v5287 = vld [vmem:[%s945 + $0x28] sm:$0xf]
        %v5288 = vld [vmem:[%s945 + $0x2c] sm:$0xf]
        %v5289 = vld [vmem:[%s945 + $0x30] sm:$0xf]
        %v5290 = vld [vmem:[%s945 + $0x34] sm:$0xf]
        %v5291 = vld [vmem:[%s945 + $0x38] sm:$0xf]
        %v5292 = vld [vmem:[%s945 + $0x3c] sm:$0xf]
        %v5293 = vld [vmem:[%s945 + $0x40] sm:$0xf]
        %v5294 = vld [vmem:[%s945 + $0x44] sm:$0xf]
        %v5295 = vld [vmem:[%s945 + $0x48] sm:$0xf]
        %v5296 = vld [vmem:[%s945 + $0x4c] sm:$0xf]
        %v5297 = vld [vmem:[%s945 + $0x50] sm:$0xf]
        %v5298 = vld [vmem:[%s945 + $0x54] sm:$0xf]
        %v5299 = vld [vmem:[%s945 + $0x58] sm:$0xf]
        %v5300 = vld [vmem:[%s945 + $0x5c] sm:$0xf]
        %v5301 = vld [vmem:[%s945 + $0x60] sm:$0xf]
        %v5302 = vld [vmem:[%s945 + $0x64] sm:$0xf]
        %v5303 = vld [vmem:[%s945 + $0x68] sm:$0xf]
        %v5304 = vld [vmem:[%s945 + $0x6c] sm:$0xf]
        %v5305 = vld [vmem:[%s945 + $0x70] sm:$0xf]
        %v5306 = vld [vmem:[%s945 + $0x74] sm:$0xf]
        %v5307 = vld [vmem:[%s945 + $0x78] sm:$0xf]
        %v5308 = vld [vmem:[%s945 + $0x7c] sm:$0xf]
        %v5309 = vld [vmem:[%s1078] sm:$0x1]
        %v5311 = vlaneseq
        %v5312 = vshrl.u32 %v5311, 7
        %v5313 = vsub.s32 0, %v5312
        %v5314 = vrot.slane %v5309, %v5313
        %v5348 = vunpack.c.l.b16 %v5277
        %v5349 = vunpack.c.l.b16 %v5278
        %v5350 = vunpack.c.l.b16 %v5279
        %v5351 = vunpack.c.l.b16 %v5280
        %v5352 = vunpack.c.l.b16 %v5281
        %v5353 = vunpack.c.l.b16 %v5282
        %v5354 = vunpack.c.l.b16 %v5283
        %v5355 = vunpack.c.l.b16 %v5284
        %v5356 = vunpack.c.l.b16 %v5285
        %v5357 = vunpack.c.l.b16 %v5286
        %v5358 = vunpack.c.l.b16 %v5287
        %v5359 = vunpack.c.l.b16 %v5288
        %v5360 = vunpack.c.l.b16 %v5289
        %v5361 = vunpack.c.l.b16 %v5290
        %v5362 = vunpack.c.l.b16 %v5291
        %v5363 = vunpack.c.l.b16 %v5292
        %v5364 = vunpack.c.l.b16 %v5293
        %v5365 = vunpack.c.l.b16 %v5294
        %v5366 = vunpack.c.l.b16 %v5295
        %v5367 = vunpack.c.l.b16 %v5296
        %v5368 = vunpack.c.l.b16 %v5297
        %v5369 = vunpack.c.l.b16 %v5298
        %v5370 = vunpack.c.l.b16 %v5299
        %v5371 = vunpack.c.l.b16 %v5300
        %v5372 = vunpack.c.l.b16 %v5301
        %v5373 = vunpack.c.l.b16 %v5302
        %v5374 = vunpack.c.l.b16 %v5303
        %v5375 = vunpack.c.l.b16 %v5304
        %v5376 = vunpack.c.l.b16 %v5305
        %v5377 = vunpack.c.l.b16 %v5306
        %v5378 = vunpack.c.l.b16 %v5307
        %v5379 = vunpack.c.l.b16 %v5308
        %v5380 = vpack.c.b16 %v5349, %v5348
        %v5381 = vpack.c.b16 %v5351, %v5350
        %v5382 = vpack.c.b16 %v5353, %v5352
        %v5383 = vpack.c.b16 %v5355, %v5354
        %v5384 = vpack.c.b16 %v5357, %v5356
        %v5385 = vpack.c.b16 %v5359, %v5358
        %v5386 = vpack.c.b16 %v5361, %v5360
        %v5387 = vpack.c.b16 %v5363, %v5362
        %v5388 = vpack.c.b16 %v5365, %v5364
        %v5389 = vpack.c.b16 %v5367, %v5366
        %v5390 = vpack.c.b16 %v5369, %v5368
        %v5391 = vpack.c.b16 %v5371, %v5370
        %v5392 = vpack.c.b16 %v5373, %v5372
        %v5393 = vpack.c.b16 %v5375, %v5374
        %v5394 = vpack.c.b16 %v5377, %v5376
        %v5395 = vpack.c.b16 %v5379, %v5378
        %5412 = vmatprep.subr.bf16.mxu0 0
        %5413 = vmatpush1.bf16.msra.mxu0 %v5380
        %5414 = vmatprep.subr.bf16.mxu0 0
        %5415 = vmatpush1.bf16.msra.mxu0 %v5381
        %5416 = vmatprep.subr.bf16.mxu0 0
        %5417 = vmatpush1.bf16.msra.mxu0 %v5382
        %5418 = vmatprep.subr.bf16.mxu0 0
        %5419 = vmatpush1.bf16.msra.mxu0 %v5383
        %5420 = vmatprep.subr.bf16.mxu0 0
        %5421 = vmatpush1.bf16.msra.mxu0 %v5384
        %5422 = vmatprep.subr.bf16.mxu0 0
        %5423 = vmatpush1.bf16.msra.mxu0 %v5385
        %5424 = vmatprep.subr.bf16.mxu0 0
        %5425 = vmatpush1.bf16.msra.mxu0 %v5386
        %5426 = vmatprep.subr.bf16.mxu0 0
        %5427 = vmatpush1.bf16.msra.mxu0 %v5387
        %5428 = vmatprep.subr.bf16.mxu0 0
        %5429 = vmatpush1.bf16.msra.mxu0 %v5388
        %5430 = vmatprep.subr.bf16.mxu0 0
        %5431 = vmatpush1.bf16.msra.mxu0 %v5389
        %5432 = vmatprep.subr.bf16.mxu0 0
        %5433 = vmatpush1.bf16.msra.mxu0 %v5390
        %5434 = vmatprep.subr.bf16.mxu0 0
        %5435 = vmatpush1.bf16.msra.mxu0 %v5391
        %5436 = vmatprep.subr.bf16.mxu0 0
        %5437 = vmatpush1.bf16.msra.mxu0 %v5392
        %5438 = vmatprep.subr.bf16.mxu0 0
        %5439 = vmatpush1.bf16.msra.mxu0 %v5393
        %5440 = vmatprep.subr.bf16.mxu0 0
        %5441 = vmatpush1.bf16.msra.mxu0 %v5394
        %5442 = vmatprep.subr.bf16.mxu0 0
        %5443 = vmatpush1.bf16.msra.mxu0 %v5395
        %5444 = vmatprep.mubr.bf16.mxu0 %v5274
        %5445 = vmatmul.mubr.bf16.gmra.mrb[0].mxu0 %v5273
        %v5446 = vpop.f32.mrb[0].mxu0
        %v5447 = vadd.f32 %v5314, %v5446
        %v5448 = vpop.f32.mrb[0].mxu0
        %v5449 = vpop.f32.mrb[0].mxu0
        %v5450 = vadd.f32 %v5314, %v5449
        %v5451 = vpop.f32.mrb[0].mxu0
        %5452 = vmatprep.mubr.bf16.mxu0 %v5276
        %5453 = vmatmul.mubr.bf16.gmra.mrb[0].mxu0 %v5275
        %v5454 = vpop.f32.mrb[0].mxu0
        %v5455 = vadd.f32 %v5314, %v5454
        %v5456 = vpop.f32.mrb[0].mxu0
        %v5457 = vpop.f32.mrb[0].mxu0
        %v5458 = vadd.f32 %v5314, %v5457
        %v5459 = vpop.f32.mrb[0].mxu0
        %5460 = vdwg.mxu0
        %v5461 = vadd.f32 %v4968, %v5447
        %v5462 = vadd.f32 %v4969, %v5450
        %v5463 = vadd.f32 %v4970, %v5455
        %v5464 = vadd.f32 %v4971, %v5458
        %5465 = vst [vmem:[#allocation2] sm:$0xff] %v5461
        %5466 = vst [vmem:[#allocation2 + $0x8] sm:$0xff] %v5462
        %5467 = vst [vmem:[#allocation2 + $0x10] sm:$0xff] %v5463
        %5468 = vst [vmem:[#allocation2 + $0x18] sm:$0xff] %v5464
        %p5469 = scmp.eq.s32.totalorder %s51, 1
        // Predicated region
        $region157: #{tpu_custom_call.1} parent=103 // pred_check
          %p5470 = pneg %p5469
        $region158: #{tpu_custom_call.1} parent=103 // pred_check_branch
          %5472 = sbr.rel (%p5470) target = $region160
        $region159: #{tpu_custom_call.1} parent=103 // pred_region
          %v5473 = vld [vmem:[#allocation12] sm:$0x1]
          %v5474 = vld [vmem:[#allocation14] sm:$0x1]
          %5475 = vadd.xlane.f32.xlu0 %v5461
          %v5476 = vpop.xlane.xlu0 %5475
          %5477 = vadd.xlane.f32.xlu0 %v5462
          %v5478 = vpop.xlane.xlu0 %5477
          %5479 = vadd.xlane.f32.xlu0 %v5463
          %v5480 = vpop.xlane.xlu0 %5479
          %5481 = vadd.xlane.f32.xlu0 %v5464
          %v5482 = vpop.xlane.xlu0 %5481
          %v5483 = vmul.f32 %v5476, %v1181
          %v5484 = vmul.f32 %v5478, %v1181
          %v5485 = vmul.f32 %v5480, %v1181
          %v5486 = vmul.f32 %v5482, %v1181
          %v5487 = vsub.f32 %v5461, %v5483
          %v5488 = vsub.f32 %v5462, %v5484
          %v5489 = vsub.f32 %v5463, %v5485
          %v5490 = vsub.f32 %v5464, %v5486
          %v5491 = vmul.f32 %v5487, %v5487
          %v5492 = vmul.f32 %v5488, %v5488
          %v5493 = vmul.f32 %v5489, %v5489
          %v5494 = vmul.f32 %v5490, %v5490
          %5495 = vadd.xlane.f32.xlu0 %v5491
          %v5496 = vpop.xlane.xlu0 %5495
          %5497 = vadd.xlane.f32.xlu0 %v5492
          %v5498 = vpop.xlane.xlu0 %5497
          %5499 = vadd.xlane.f32.xlu0 %v5493
          %v5500 = vpop.xlane.xlu0 %5499
          %5501 = vadd.xlane.f32.xlu0 %v5494
          %v5502 = vpop.xlane.xlu0 %5501
          %v5503 = vmul.f32 %v5496, %v1181
          %v5504 = vmul.f32 %v5498, %v1181
          %v5505 = vmul.f32 %v5500, %v1181
          %v5506 = vmul.f32 %v5502, %v1181
          %v5507 = vadd.f32 %v5503, 1e-05
          %v5508 = vadd.f32 %v5504, 1e-05
          %v5509 = vadd.f32 %v5505, 1e-05
          %v5510 = vadd.f32 %v5506, 1e-05
          %v5511 = vrsqrt.pop %v5507
          %v5512 = vrsqrt.pop %v5508
          %v5513 = vrsqrt.pop %v5509
          %v5514 = vrsqrt.pop %v5510
          %v5515 = vmul.f32 %v5487, %v5511
          %v5516 = vmul.f32 %v5488, %v5512
          %v5517 = vmul.f32 %v5489, %v5513
          %v5518 = vmul.f32 %v5490, %v5514
          %v5520 = vlaneseq
          %v5521 = vshrl.u32 %v5520, 7
          %v5522 = vsub.s32 0, %v5521
          %v5523 = vrot.slane %v5473, %v5522
          %v5525 = vmul.f32 %v5515, %v5523
          %v5526 = vmul.f32 %v5516, %v5523
          %v5527 = vmul.f32 %v5517, %v5523
          %v5528 = vmul.f32 %v5518, %v5523
          %v5530 = vlaneseq
          %v5531 = vshrl.u32 %v5530, 7
          %v5532 = vsub.s32 0, %v5531
          %v5533 = vrot.slane %v5474, %v5532
          %v5535 = vadd.f32 %v5525, %v5533
          %v5536 = vadd.f32 %v5526, %v5533
          %v5537 = vadd.f32 %v5527, %v5533
          %v5538 = vadd.f32 %v5528, %v5533
          %5539 = vst [vmem:[#allocation23] sm:$0xff] %v5535
          %5540 = vst [vmem:[#allocation23 + $0x8] sm:$0xff] %v5536
          %5541 = vst [vmem:[#allocation23 + $0x10] sm:$0xff] %v5537
          %5542 = vst [vmem:[#allocation23 + $0x18] sm:$0xff] %v5538
        $region160: #{tpu_custom_call.1} parent=103 // pred_fallthru
          _
        // Predicated region
        $region161: #{tpu_custom_call.1} parent=103 // pred_check
          %p5543 = pneg %p597
        $region162: #{tpu_custom_call.1} parent=103 // pred_check_branch
          %5545 = sbr.rel (%p5543) target = $region164
        $region163: #{tpu_custom_call.1} parent=103 // pred_region
          %s5546 = smul.u32 2, %s50
          %s5548 = ssub.s32 512, 512
          %5549 = vsyncadd [#allocation5], %s5548
          %s5550 = smul.addr %s5546, 2
          %s5551 = smul.addr %s5550, 128
          %s5552 = scalar_lea.hbm %s21, %s5551
          %s5553 = sshll.u32 [#allocation23], 4
          %s5554 = int_to_ptr.vmem [resolvable:$true] %s5553
          %5559 = dma.vmem_to_hbm [thread:$0]  %s5554, 512, %s5552, [#allocation5], 128, 128, 8
        $region164: #{tpu_custom_call.1} parent=103 // pred_fallthru
          _
        // Predicated region
        $region165: #{tpu_custom_call.1} parent=103 // pred_check
          %p5560 = pneg %p597
        $region166: #{tpu_custom_call.1} parent=103 // pred_check_branch
          %5562 = sbr.rel (%p5560) target = $region168
        $region167: #{tpu_custom_call.1} parent=103 // pred_region
          %5563 = dma.done [#allocation5], 512
        $region168: #{tpu_custom_call.1} parent=103 // pred_fallthru
          _
      $region104: #{tpu_custom_call.1} parent=5 // pred_fallthru
        _
      %p5564 = scmp.le.s32.totalorder 2, %s41
      // Predicated region
      $region169: #{tpu_custom_call.1} parent=5 // pred_check
        %p5565 = pneg %p5564
      $region170: #{tpu_custom_call.1} parent=5 // pred_check_branch
        %5567 = sbr.rel (%p5565) target = $region172
      $region171: #{tpu_custom_call.1} parent=5 // pred_region
        %s5568 = ssub.s32 %s41, 2
      $region172: #{tpu_custom_call.1} parent=5 // pred_fallthru
        _
    $region6: #{tpu_custom_call.1} parent=1 // loop_footer
      %s45 = sadd.s32 1, %s41
    $region7: #{tpu_custom_call.1} parent=1 // loop_footer_branch
      %40 = sbr.rel target = $region3
    $region8: #{tpu_custom_call.1} parent=1 // loop_exit
      _
    %5569 = vsyncpa [#allocation4], 1
    %s5570 = scalar_lea.sflag [#allocation4], 1
    %5571 = vsyncpa %s5570, 1
    %5572 = vsyncpa [#allocation7], 1
    %5573 = vsyncpa [#allocation10], 1
    %5574 = vsyncpa [#allocation13], 1
    %5575 = vsyncpa [#allocation16], 1
    %s5576 = scalar_lea.sflag [#allocation16], 1
    %5577 = vsyncpa %s5576, 1
    %5578 = vsyncpa [#allocation19], 1
    %s5579 = scalar_lea.sflag [#allocation19], 1
    %5580 = vsyncpa %s5579, 1
    %5581 = vsyncpa [#allocation22], 1
    %s5582 = scalar_lea.sflag [#allocation22], 1
    %5583 = vsyncpa %s5582, 1
    %5584 = vsyncpa [#allocation5], 1
    %s5585 = scalar_lea.sflag [#allocation5], 1
    %5586 = vsyncpa %s5585, 1

</llo_original>
